<compile_context>
chip_gen: v5e
topology: v5e:2x2
jax: 0.10.0
libtpu: 0.0.40
codegen_flags: <defaults>
</compile_context>

<pallas_src>
import functools

import jax
import jax.numpy as jnp
from jax.experimental import pallas as pl
from jax.experimental.pallas import tpu as pltpu

# ----------------------------------------------------------------------------- config
NSAMPLES = 2
NPOINTS = 8
MAX_NEIGHS = 4
LENGTH = 10.0
DESCRIP_DIM = [1, 2, 4, 8]        # pyramid MLP: 1 -> 2 -> 4 -> 8 (tanh)
FITTING_DIM = [16, 8, 4, 2, 1]    # 2 * descriptorDim = 16 matches fittingDim[0]
DESCRIPTOR = DESCRIP_DIM[-1]
EPS = 1e-12                       # guards 1/r when a neighbor coincides with the point


# ----------------------------------------------------------------------------- params
def init_linear(key, size_in, size_out):
    kw, kb = jax.random.split(key)
    bound = 1.0 / jnp.sqrt(jnp.float32(size_in))
    W = jax.random.uniform(kw, (size_in, size_out), jnp.float32, -bound, bound)
    b = jax.random.uniform(kb, (1, size_out), jnp.float32, -bound, bound)
    return W, b


def init_params(key):
    keys = jax.random.split(key, 4)
    nets = []
    for net_key, sizes in zip(keys[:3], (DESCRIP_DIM, DESCRIP_DIM, FITTING_DIM)):
        lkeys = jax.random.split(net_key, len(sizes) - 1)
        layers = [init_linear(k, si, so)
                  for k, si, so in zip(lkeys, sizes[:-1], sizes[1:])]
        nets.append(layers)
    linfit = init_linear(keys[3], FITTING_DIM[-1], 1)
    return nets[0], nets[1], nets[2], linfit


# --------------------------------------------------------------------- genCoordinates
def gen_coordinates(pos, neigh_list, length, av, std):
    """Reference-side genCoordinates (neighbor index == -1 -> zero contribution)."""
    Ns, Np = pos.shape
    M = neigh_list.shape[-1]
    mask = neigh_list == -1
    safe_idx = jnp.where(mask, 0, neigh_list)
    neigh_pos = jnp.take_along_axis(pos, safe_idx.reshape(Ns, Np * M), axis=1)
    neigh_pos = neigh_pos.reshape(Ns, Np, M)
    diff = neigh_pos - pos[:, :, None]
    diff = diff - length * jnp.floor(diff / length + 0.5)      # periodic wrap
    dist_raw = jnp.abs(diff)
    dist_inv_raw = 1.0 / jnp.maximum(dist_raw, EPS)            # eps: no inf at r == 0
    dist = jnp.where(mask, 0.0, (dist_raw - av[0]) / std[0])
    dist_inv = jnp.where(mask, 0.0, (dist_inv_raw - av[1]) / std[1])
    return dist, dist_inv


# ------------------------------------------------------------------ host-side packing
def flatten_params(params, av, std):
    """Flatten all weights/biases + stats into one 1D f32 array for SMEM prefetch.

    Per layer: W is stored row-major (W[k, n] at off + k*N + n), bias at off + K*N + n.
    Returns the flat array and static (offset, K, N) metadata per layer.
    """
    pyr, pyr_inv, fit, linfit = params
    pieces = []
    off = 0

    def add_layer(W, b):
        nonlocal off
        K, N = W.shape
        pieces.append(W.reshape(-1))
        pieces.append(b.reshape(-1))
        entry = (off, K, N)
        off += K * N + N
        return entry

    meta_pyr = tuple(add_layer(W, b) for W, b in pyr)
    meta_pyri = tuple(add_layer(W, b) for W, b in pyr_inv)
    meta_fit = tuple(add_layer(W, b) for W, b in fit)
    meta_lin = add_layer(linfit[0], linfit[1])
    stats_off = off
    pieces.append(jnp.array([av[0], av[1], 1.0 / std[0], 1.0 / std[1]], jnp.float32))
    flat = jnp.concatenate(pieces).astype(jnp.float32)
    meta = (meta_pyr, meta_pyri, meta_fit, meta_lin, stats_off)
    return flat, meta


# ----------------------------------------------------------------------------- kernel
def deepmd_kernel(meta, dims, length, w_ref, geo_ref, out_ref):
    # w_ref  : flat f32 SMEM vector (scalar-prefetched weights/biases + av/1/std)
    # geo_ref: (3, rows) VMEM = [center_pos; neighbor_pos; valid], rows lane-dense
    # out_ref: (1, Ns) lane-dense per-sample energies
    (meta_pyr, meta_pyri, meta_fit, meta_lin, stats_off) = meta
    Ns, Np, M = dims
    pts = Ns * Np
    rows = pts * M

    def dense(h, entry):
        """out[n, :] = b[n] + sum_k W[k, n] * h[k, :]  (scalar-broadcast VPU FMAs)."""
        off, K, N = entry
        hk = [h[k:k + 1, :] for k in range(K)]
        outs = []
        for n in range(N):
            acc = jnp.full((1, h.shape[1]), w_ref[off + K * N + n], jnp.float32)
            for k in range(K):
                acc = acc + w_ref[off + k * N + n] * hk[k]
            outs.append(acc)
        return outs[0] if N == 1 else jnp.concatenate(outs, axis=0)

    av0 = w_ref[stats_off + 0]
    av1 = w_ref[stats_off + 1]
    istd0 = w_ref[stats_off + 2]
    istd1 = w_ref[stats_off + 3]

    cpos = geo_ref[0:1, :]           # (1, rows) center particle position
    npos = geo_ref[1:2, :]           # (1, rows) neighbor position (safe-gathered)
    valid = geo_ref[2:3, :]          # (1, rows) 1.0 = real neighbor, 0.0 = padding

    # --- genCoordinates tail (everything after the gather), fused on the VPU ---
    diff = npos - cpos
    diff = diff - length * jnp.floor(diff / length + 0.5)       # periodic wrap
    dist_raw = jnp.abs(diff)
    dinv_raw = 1.0 / jnp.maximum(dist_raw, EPS)
    d = (dist_raw - av0) * istd0 * valid                        # (1, rows)
    di = (dinv_raw - av1) * istd1 * valid                       # (1, rows)

    # --- descriptor pyramids (tanh MLPs), each gated by its own input ---
    h = d
    for entry in meta_pyr:
        h = jnp.tanh(dense(h, entry))
    L1 = h * d                                                  # (8, rows)

    h = di
    for entry in meta_pyri:
        h = jnp.tanh(dense(h, entry))
    L2 = h * di                                                 # (8, rows)

    # --- neighbor segment sum: rows ordered (k, p, s) with k slowest -> M-1 adds ---
    D1 = L1[:, 0:pts]
    D2 = L2[:, 0:pts]
    for k in range(1, M):
        D1 = D1 + L1[:, k * pts:(k + 1) * pts]
        D2 = D2 + L2[:, k * pts:(k + 1) * pts]
    D = jnp.concatenate([D1, D2], axis=0)                       # (16, pts)

    # --- fitting network (tanh) + final linear fit, all on the VPU ---
    hf = D
    for entry in meta_fit:
        hf = jnp.tanh(dense(hf, entry))
    F1 = dense(hf, meta_lin)                                    # (1, pts)

    # --- per-sample energy: pts ordered (p, s) with p slowest -> Np-1 adds ---
    e = F1[:, 0:Ns]
    for p in range(1, Np):
        e = e + F1[:, p * Ns:(p + 1) * Ns]
    out_ref[...] = e                                            # (1, Ns) lane-dense


# ---------------------------------------------------------------------------- wrapper
def make_forward(length, Ns, Np, M, meta):
    rows = Ns * Np * M
    kernel = functools.partial(deepmd_kernel, meta, (Ns, Np, M), float(length))

    grid_spec = pltpu.PrefetchScalarGridSpec(
        num_scalar_prefetch=1,                 # flat f32 weights/biases/stats -> SMEM
        grid=(1,),                             # single step: all samples at once
        in_specs=[pl.BlockSpec((3, rows), lambda i, w: (0, 0))],
        out_specs=pl.BlockSpec((1, Ns), lambda i, w: (0, 0)),
    )
    # TODO(synk): for large Ns, tile `rows` over a leading "parallel" grid axis so
    # v7x megacore shards across both TensorCores; at Ns=2 one step is fastest.
    pcall = pl.pallas_call(
        kernel,
        out_shape=jax.ShapeDtypeStruct((1, Ns), jnp.float32),
        grid_spec=grid_spec,
        compiler_params=pltpu.CompilerParams(dimension_semantics=("arbitrary",)),
    )

    @jax.jit
    def forward(pos, neigh_list, w_flat):
        # TODO(synk): genCoordinates source was not provided with the module; the
        # neighbor gather has no clean in-kernel Pallas equivalent, so it stays in
        # XLA.  Everything after the gather runs inside the kernel.
        mask = neigh_list == -1
        safe = jnp.where(mask, 0, neigh_list)
        npos = jnp.take_along_axis(pos, safe.reshape(Ns, Np * M), axis=1)
        npos = npos.reshape(Ns, Np, M)
        cpos = jnp.broadcast_to(pos[:, :, None], (Ns, Np, M))
        valid = jnp.where(mask, 0.0, 1.0).astype(jnp.float32)

        def lanes(a):   # (Ns, Np, M) -> (1, rows), row index = k*Np*Ns + p*Ns + s
            return jnp.transpose(a, (2, 1, 0)).reshape(1, rows)

        geo = jnp.concatenate([lanes(cpos), lanes(npos), lanes(valid)], axis=0)
        energy = pcall(w_flat, geo)            # (1, Ns) lane-dense kernel output
        return energy.T                        # (Ns, 1) to match the module

    return forward


# ------------------------------------------------------------------- pure-JAX reference
def deepmd_energy_ref(pos, neigh_list, params, length, av, std):
    pyr, pyr_inv, fit, linfit = params
    Ns, Np = pos.shape
    M = neigh_list.shape[-1]
    dist, dinv = gen_coordinates(pos, neigh_list, length, av, std)
    d = dist.reshape(-1, 1)
    di = dinv.reshape(-1, 1)
    h = d
    for W, b in pyr:
        h = jnp.tanh(h @ W + b)
    L1 = h * d
    h = di
    for W, b in pyr_inv:
        h = jnp.tanh(h @ W + b)
    L2 = h * di
    LL = jnp.concatenate([L1, L2], axis=1)
    D = LL.reshape(-1, M, 2 * DESCRIPTOR).sum(axis=1)
    h = D
    for W, b in fit:
        h = jnp.tanh(h @ W + b)
    F1 = h @ linfit[0] + linfit[1]
    return F1.reshape(-1, Np).sum(axis=1, keepdims=True)


# ------------------------------------------------------------------------------- main
if __name__ == "__main__":
    key = jax.random.PRNGKey(0)
    kpos, kparams = jax.random.split(key)

    # particle positions on a periodic line of length LENGTH
    pos = jax.random.uniform(kpos, (NSAMPLES, NPOINTS), jnp.float32, 0.0, LENGTH)

    # neighbor list: i-2, i-1, i+1, i+2 (mod Npoints); one -1 to exercise masking
    base = jnp.arange(NPOINTS)
    offsets = jnp.array([-2, -1, 1, 2])
    neigh = (base[:, None] + offsets[None, :]) % NPOINTS
    neigh = jnp.broadcast_to(neigh[None], (NSAMPLES, NPOINTS, MAX_NEIGHS)).astype(jnp.int32)
    neigh = neigh.at[:, 0, 3].set(-1)

    params = init_params(kparams)
    av = jnp.array([0.0, 0.0], jnp.float32)
    std = jnp.array([1.0, 1.0], jnp.float32)

    # host-side prep: flatten every weight/bias (+ av, 1/std) into one SMEM vector
    w_flat, meta = flatten_params(params, av, std)
    forward = make_forward(LENGTH, NSAMPLES, NPOINTS, MAX_NEIGHS, meta)

    energy = forward(pos, neigh, w_flat)
    energy = jax.block_until_ready(energy)

    ref = deepmd_energy_ref(pos, neigh, params, LENGTH, av, std)
    assert energy.shape == (NSAMPLES, 1)
    assert bool(jnp.all(jnp.isfinite(energy)))
    assert bool(jnp.allclose(energy, ref, rtol=1e-3, atol=1e-3)), (energy, ref)

    print("KERNEL_OK")
</pallas_src>

<mosaic_0001>
module attributes {stable_mosaic.version = 11 : i64} {
  func.func @deepmd_kernel(%arg0: i32, %arg1: memref<303xf32, #tpu.memory_space<smem>>, %arg2: memref<3x64xf32, #tpu.memory_space<vmem>>, %arg3: memref<1x2xf32, #tpu.memory_space<vmem>>) attributes {dimension_semantics = [#tpu.dimension_semantics<arbitrary>], iteration_bounds = array<i64: 1>, scalar_prefetch = 1 : i64, scratch_operands = 0 : i64, tpu.core_type = #tpu.core_type<tc>, window_params = [{pipeline_mode = #tpu.pipeline_mode<synchronous>, transform_indices = @transform_0, window_bounds = array<i64: 3, 64>}, {pipeline_mode = #tpu.pipeline_mode<synchronous>, transform_indices = @transform_1, window_bounds = array<i64: 1, 2>}]} {
    %c299 = arith.constant 299 : index
    %0 = memref.load %arg1[%c299] : memref<303xf32, #tpu.memory_space<smem>>
    %c300 = arith.constant 300 : index
    %1 = memref.load %arg1[%c300] : memref<303xf32, #tpu.memory_space<smem>>
    %c301 = arith.constant 301 : index
    %2 = memref.load %arg1[%c301] : memref<303xf32, #tpu.memory_space<smem>>
    %c302 = arith.constant 302 : index
    %3 = memref.load %arg1[%c302] : memref<303xf32, #tpu.memory_space<smem>>
    %c0 = arith.constant 0 : index
    %c0_0 = arith.constant 0 : index
    %4 = vector.load %arg2[%c0, %c0_0] : memref<3x64xf32, #tpu.memory_space<vmem>>, vector<1x64xf32>
    %c1 = arith.constant 1 : index
    %c0_1 = arith.constant 0 : index
    %5 = vector.load %arg2[%c1, %c0_1] : memref<3x64xf32, #tpu.memory_space<vmem>>, vector<1x64xf32>
    %c2 = arith.constant 2 : index
    %c0_2 = arith.constant 0 : index
    %6 = vector.load %arg2[%c2, %c0_2] : memref<3x64xf32, #tpu.memory_space<vmem>>, vector<1x64xf32>
    %7 = arith.subf %5, %4 : vector<1x64xf32>
    %cst = arith.constant 1.000000e+01 : f32
    %8 = vector.broadcast %cst : f32 to vector<1x64xf32>
    %9 = arith.divf %7, %8 : vector<1x64xf32>
    %cst_3 = arith.constant 5.000000e-01 : f32
    %10 = vector.broadcast %cst_3 : f32 to vector<1x64xf32>
    %11 = arith.addf %9, %10 : vector<1x64xf32>
    %12 = math.floor %11 : vector<1x64xf32>
    %cst_4 = arith.constant 1.000000e+01 : f32
    %13 = vector.broadcast %cst_4 : f32 to vector<1x64xf32>
    %14 = arith.mulf %13, %12 : vector<1x64xf32>
    %15 = arith.subf %7, %14 : vector<1x64xf32>
    %16 = math.absf %15 : vector<1x64xf32>
    %cst_5 = arith.constant 9.99999996E-13 : f32
    %17 = vector.broadcast %cst_5 : f32 to vector<1x64xf32>
    %18 = arith.maximumf %16, %17 : vector<1x64xf32>
    %cst_6 = arith.constant 1.000000e+00 : f32
    %19 = vector.broadcast %cst_6 : f32 to vector<1x64xf32>
    %20 = arith.divf %19, %18 : vector<1x64xf32>
    %21 = vector.broadcast %0 : f32 to vector<1x64xf32>
    %22 = arith.subf %16, %21 : vector<1x64xf32>
    %23 = vector.broadcast %2 : f32 to vector<1x64xf32>
    %24 = arith.mulf %22, %23 : vector<1x64xf32>
    %25 = arith.mulf %24, %6 : vector<1x64xf32>
    %26 = vector.broadcast %1 : f32 to vector<1x64xf32>
    %27 = arith.subf %20, %26 : vector<1x64xf32>
    %28 = vector.broadcast %3 : f32 to vector<1x64xf32>
    %29 = arith.mulf %27, %28 : vector<1x64xf32>
    %30 = arith.mulf %29, %6 : vector<1x64xf32>
    %c2_7 = arith.constant 2 : index
    %31 = memref.load %arg1[%c2_7] : memref<303xf32, #tpu.memory_space<smem>>
    %32 = vector.broadcast %31 : f32 to vector<1x64xf32>
    %c0_8 = arith.constant 0 : index
    %33 = memref.load %arg1[%c0_8] : memref<303xf32, #tpu.memory_space<smem>>
    %34 = vector.broadcast %33 : f32 to vector<1x64xf32>
    %35 = arith.mulf %34, %25 : vector<1x64xf32>
    %36 = arith.addf %32, %35 : vector<1x64xf32>
    %c3 = arith.constant 3 : index
    %37 = memref.load %arg1[%c3] : memref<303xf32, #tpu.memory_space<smem>>
    %38 = vector.broadcast %37 : f32 to vector<1x64xf32>
    %c1_9 = arith.constant 1 : index
    %39 = memref.load %arg1[%c1_9] : memref<303xf32, #tpu.memory_space<smem>>
    %40 = vector.broadcast %39 : f32 to vector<1x64xf32>
    %41 = arith.mulf %40, %25 : vector<1x64xf32>
    %42 = arith.addf %38, %41 : vector<1x64xf32>
    %43 = tpu.concatenate %36, %42 in 0 : vector<1x64xf32>, vector<1x64xf32> -> vector<2x64xf32>
    %44 = math.tanh %43 : vector<2x64xf32>
    %45 = vector.extract_strided_slice %44 {offsets = [0, 0], sizes = [1, 64], strides = [1, 1]} : vector<2x64xf32> to vector<1x64xf32>
    %46 = vector.extract_strided_slice %44 {offsets = [1, 0], sizes = [1, 64], strides = [1, 1]} : vector<2x64xf32> to vector<1x64xf32>
    %c12 = arith.constant 12 : index
    %47 = memref.load %arg1[%c12] : memref<303xf32, #tpu.memory_space<smem>>
    %48 = vector.broadcast %47 : f32 to vector<1x64xf32>
    %c4 = arith.constant 4 : index
    %49 = memref.load %arg1[%c4] : memref<303xf32, #tpu.memory_space<smem>>
    %50 = vector.broadcast %49 : f32 to vector<1x64xf32>
    %51 = arith.mulf %50, %45 : vector<1x64xf32>
    %52 = arith.addf %48, %51 : vector<1x64xf32>
    %c8 = arith.constant 8 : index
    %53 = memref.load %arg1[%c8] : memref<303xf32, #tpu.memory_space<smem>>
    %54 = vector.broadcast %53 : f32 to vector<1x64xf32>
    %55 = arith.mulf %54, %46 : vector<1x64xf32>
    %56 = arith.addf %52, %55 : vector<1x64xf32>
    %c13 = arith.constant 13 : index
    %57 = memref.load %arg1[%c13] : memref<303xf32, #tpu.memory_space<smem>>
    %58 = vector.broadcast %57 : f32 to vector<1x64xf32>
    %c5 = arith.constant 5 : index
    %59 = memref.load %arg1[%c5] : memref<303xf32, #tpu.memory_space<smem>>
    %60 = vector.broadcast %59 : f32 to vector<1x64xf32>
    %61 = arith.mulf %60, %45 : vector<1x64xf32>
    %62 = arith.addf %58, %61 : vector<1x64xf32>
    %c9 = arith.constant 9 : index
    %63 = memref.load %arg1[%c9] : memref<303xf32, #tpu.memory_space<smem>>
    %64 = vector.broadcast %63 : f32 to vector<1x64xf32>
    %65 = arith.mulf %64, %46 : vector<1x64xf32>
    %66 = arith.addf %62, %65 : vector<1x64xf32>
    %c14 = arith.constant 14 : index
    %67 = memref.load %arg1[%c14] : memref<303xf32, #tpu.memory_space<smem>>
    %68 = vector.broadcast %67 : f32 to vector<1x64xf32>
    %c6 = arith.constant 6 : index
    %69 = memref.load %arg1[%c6] : memref<303xf32, #tpu.memory_space<smem>>
    %70 = vector.broadcast %69 : f32 to vector<1x64xf32>
    %71 = arith.mulf %70, %45 : vector<1x64xf32>
    %72 = arith.addf %68, %71 : vector<1x64xf32>
    %c10 = arith.constant 10 : index
    %73 = memref.load %arg1[%c10] : memref<303xf32, #tpu.memory_space<smem>>
    %74 = vector.broadcast %73 : f32 to vector<1x64xf32>
    %75 = arith.mulf %74, %46 : vector<1x64xf32>
    %76 = arith.addf %72, %75 : vector<1x64xf32>
    %c15 = arith.constant 15 : index
    %77 = memref.load %arg1[%c15] : memref<303xf32, #tpu.memory_space<smem>>
    %78 = vector.broadcast %77 : f32 to vector<1x64xf32>
    %c7 = arith.constant 7 : index
    %79 = memref.load %arg1[%c7] : memref<303xf32, #tpu.memory_space<smem>>
    %80 = vector.broadcast %79 : f32 to vector<1x64xf32>
    %81 = arith.mulf %80, %45 : vector<1x64xf32>
    %82 = arith.addf %78, %81 : vector<1x64xf32>
    %c11 = arith.constant 11 : index
    %83 = memref.load %arg1[%c11] : memref<303xf32, #tpu.memory_space<smem>>
    %84 = vector.broadcast %83 : f32 to vector<1x64xf32>
    %85 = arith.mulf %84, %46 : vector<1x64xf32>
    %86 = arith.addf %82, %85 : vector<1x64xf32>
    %87 = tpu.concatenate %56, %66, %76, %86 in 0 : vector<1x64xf32>, vector<1x64xf32>, vector<1x64xf32>, vector<1x64xf32> -> vector<4x64xf32>
    %88 = math.tanh %87 : vector<4x64xf32>
    %89 = vector.extract_strided_slice %88 {offsets = [0, 0], sizes = [1, 64], strides = [1, 1]} : vector<4x64xf32> to vector<1x64xf32>
    %90 = vector.extract_strided_slice %88 {offsets = [1, 0], sizes = [1, 64], strides = [1, 1]} : vector<4x64xf32> to vector<1x64xf32>
    %91 = vector.extract_strided_slice %88 {offsets = [2, 0], sizes = [1, 64], strides = [1, 1]} : vector<4x64xf32> to vector<1x64xf32>
    %92 = vector.extract_strided_slice %88 {offsets = [3, 0], sizes = [1, 64], strides = [1, 1]} : vector<4x64xf32> to vector<1x64xf32>
    %c48 = arith.constant 48 : index
    %93 = memref.load %arg1[%c48] : memref<303xf32, #tpu.memory_space<smem>>
    %94 = vector.broadcast %93 : f32 to vector<1x64xf32>
    %c16 = arith.constant 16 : index
    %95 = memref.load %arg1[%c16] : memref<303xf32, #tpu.memory_space<smem>>
    %96 = vector.broadcast %95 : f32 to vector<1x64xf32>
    %97 = arith.mulf %96, %89 : vector<1x64xf32>
    %98 = arith.addf %94, %97 : vector<1x64xf32>
    %c24 = arith.constant 24 : index
    %99 = memref.load %arg1[%c24] : memref<303xf32, #tpu.memory_space<smem>>
    %100 = vector.broadcast %99 : f32 to vector<1x64xf32>
    %101 = arith.mulf %100, %90 : vector<1x64xf32>
    %102 = arith.addf %98, %101 : vector<1x64xf32>
    %c32 = arith.constant 32 : index
    %103 = memref.load %arg1[%c32] : memref<303xf32, #tpu.memory_space<smem>>
    %104 = vector.broadcast %103 : f32 to vector<1x64xf32>
    %105 = arith.mulf %104, %91 : vector<1x64xf32>
    %106 = arith.addf %102, %105 : vector<1x64xf32>
    %c40 = arith.constant 40 : index
    %107 = memref.load %arg1[%c40] : memref<303xf32, #tpu.memory_space<smem>>
    %108 = vector.broadcast %107 : f32 to vector<1x64xf32>
    %109 = arith.mulf %108, %92 : vector<1x64xf32>
    %110 = arith.addf %106, %109 : vector<1x64xf32>
    %c49 = arith.constant 49 : index
    %111 = memref.load %arg1[%c49] : memref<303xf32, #tpu.memory_space<smem>>
    %112 = vector.broadcast %111 : f32 to vector<1x64xf32>
    %c17 = arith.constant 17 : index
    %113 = memref.load %arg1[%c17] : memref<303xf32, #tpu.memory_space<smem>>
    %114 = vector.broadcast %113 : f32 to vector<1x64xf32>
    %115 = arith.mulf %114, %89 : vector<1x64xf32>
    %116 = arith.addf %112, %115 : vector<1x64xf32>
    %c25 = arith.constant 25 : index
    %117 = memref.load %arg1[%c25] : memref<303xf32, #tpu.memory_space<smem>>
    %118 = vector.broadcast %117 : f32 to vector<1x64xf32>
    %119 = arith.mulf %118, %90 : vector<1x64xf32>
    %120 = arith.addf %116, %119 : vector<1x64xf32>
    %c33 = arith.constant 33 : index
    %121 = memref.load %arg1[%c33] : memref<303xf32, #tpu.memory_space<smem>>
    %122 = vector.broadcast %121 : f32 to vector<1x64xf32>
    %123 = arith.mulf %122, %91 : vector<1x64xf32>
    %124 = arith.addf %120, %123 : vector<1x64xf32>
    %c41 = arith.constant 41 : index
    %125 = memref.load %arg1[%c41] : memref<303xf32, #tpu.memory_space<smem>>
    %126 = vector.broadcast %125 : f32 to vector<1x64xf32>
    %127 = arith.mulf %126, %92 : vector<1x64xf32>
    %128 = arith.addf %124, %127 : vector<1x64xf32>
    %c50 = arith.constant 50 : index
    %129 = memref.load %arg1[%c50] : memref<303xf32, #tpu.memory_space<smem>>
    %130 = vector.broadcast %129 : f32 to vector<1x64xf32>
    %c18 = arith.constant 18 : index
    %131 = memref.load %arg1[%c18] : memref<303xf32, #tpu.memory_space<smem>>
    %132 = vector.broadcast %131 : f32 to vector<1x64xf32>
    %133 = arith.mulf %132, %89 : vector<1x64xf32>
    %134 = arith.addf %130, %133 : vector<1x64xf32>
    %c26 = arith.constant 26 : index
    %135 = memref.load %arg1[%c26] : memref<303xf32, #tpu.memory_space<smem>>
    %136 = vector.broadcast %135 : f32 to vector<1x64xf32>
    %137 = arith.mulf %136, %90 : vector<1x64xf32>
    %138 = arith.addf %134, %137 : vector<1x64xf32>
    %c34 = arith.constant 34 : index
    %139 = memref.load %arg1[%c34] : memref<303xf32, #tpu.memory_space<smem>>
    %140 = vector.broadcast %139 : f32 to vector<1x64xf32>
    %141 = arith.mulf %140, %91 : vector<1x64xf32>
    %142 = arith.addf %138, %141 : vector<1x64xf32>
    %c42 = arith.constant 42 : index
    %143 = memref.load %arg1[%c42] : memref<303xf32, #tpu.memory_space<smem>>
    %144 = vector.broadcast %143 : f32 to vector<1x64xf32>
    %145 = arith.mulf %144, %92 : vector<1x64xf32>
    %146 = arith.addf %142, %145 : vector<1x64xf32>
    %c51 = arith.constant 51 : index
    %147 = memref.load %arg1[%c51] : memref<303xf32, #tpu.memory_space<smem>>
    %148 = vector.broadcast %147 : f32 to vector<1x64xf32>
    %c19 = arith.constant 19 : index
    %149 = memref.load %arg1[%c19] : memref<303xf32, #tpu.memory_space<smem>>
    %150 = vector.broadcast %149 : f32 to vector<1x64xf32>
    %151 = arith.mulf %150, %89 : vector<1x64xf32>
    %152 = arith.addf %148, %151 : vector<1x64xf32>
    %c27 = arith.constant 27 : index
    %153 = memref.load %arg1[%c27] : memref<303xf32, #tpu.memory_space<smem>>
    %154 = vector.broadcast %153 : f32 to vector<1x64xf32>
    %155 = arith.mulf %154, %90 : vector<1x64xf32>
    %156 = arith.addf %152, %155 : vector<1x64xf32>
    %c35 = arith.constant 35 : index
    %157 = memref.load %arg1[%c35] : memref<303xf32, #tpu.memory_space<smem>>
    %158 = vector.broadcast %157 : f32 to vector<1x64xf32>
    %159 = arith.mulf %158, %91 : vector<1x64xf32>
    %160 = arith.addf %156, %159 : vector<1x64xf32>
    %c43 = arith.constant 43 : index
    %161 = memref.load %arg1[%c43] : memref<303xf32, #tpu.memory_space<smem>>
    %162 = vector.broadcast %161 : f32 to vector<1x64xf32>
    %163 = arith.mulf %162, %92 : vector<1x64xf32>
    %164 = arith.addf %160, %163 : vector<1x64xf32>
    %c52 = arith.constant 52 : index
    %165 = memref.load %arg1[%c52] : memref<303xf32, #tpu.memory_space<smem>>
    %166 = vector.broadcast %165 : f32 to vector<1x64xf32>
    %c20 = arith.constant 20 : index
    %167 = memref.load %arg1[%c20] : memref<303xf32, #tpu.memory_space<smem>>
    %168 = vector.broadcast %167 : f32 to vector<1x64xf32>
    %169 = arith.mulf %168, %89 : vector<1x64xf32>
    %170 = arith.addf %166, %169 : vector<1x64xf32>
    %c28 = arith.constant 28 : index
    %171 = memref.load %arg1[%c28] : memref<303xf32, #tpu.memory_space<smem>>
    %172 = vector.broadcast %171 : f32 to vector<1x64xf32>
    %173 = arith.mulf %172, %90 : vector<1x64xf32>
    %174 = arith.addf %170, %173 : vector<1x64xf32>
    %c36 = arith.constant 36 : index
    %175 = memref.load %arg1[%c36] : memref<303xf32, #tpu.memory_space<smem>>
    %176 = vector.broadcast %175 : f32 to vector<1x64xf32>
    %177 = arith.mulf %176, %91 : vector<1x64xf32>
    %178 = arith.addf %174, %177 : vector<1x64xf32>
    %c44 = arith.constant 44 : index
    %179 = memref.load %arg1[%c44] : memref<303xf32, #tpu.memory_space<smem>>
    %180 = vector.broadcast %179 : f32 to vector<1x64xf32>
    %181 = arith.mulf %180, %92 : vector<1x64xf32>
    %182 = arith.addf %178, %181 : vector<1x64xf32>
    %c53 = arith.constant 53 : index
    %183 = memref.load %arg1[%c53] : memref<303xf32, #tpu.memory_space<smem>>
    %184 = vector.broadcast %183 : f32 to vector<1x64xf32>
    %c21 = arith.constant 21 : index
    %185 = memref.load %arg1[%c21] : memref<303xf32, #tpu.memory_space<smem>>
    %186 = vector.broadcast %185 : f32 to vector<1x64xf32>
    %187 = arith.mulf %186, %89 : vector<1x64xf32>
    %188 = arith.addf %184, %187 : vector<1x64xf32>
    %c29 = arith.constant 29 : index
    %189 = memref.load %arg1[%c29] : memref<303xf32, #tpu.memory_space<smem>>
    %190 = vector.broadcast %189 : f32 to vector<1x64xf32>
    %191 = arith.mulf %190, %90 : vector<1x64xf32>
    %192 = arith.addf %188, %191 : vector<1x64xf32>
    %c37 = arith.constant 37 : index
    %193 = memref.load %arg1[%c37] : memref<303xf32, #tpu.memory_space<smem>>
    %194 = vector.broadcast %193 : f32 to vector<1x64xf32>
    %195 = arith.mulf %194, %91 : vector<1x64xf32>
    %196 = arith.addf %192, %195 : vector<1x64xf32>
    %c45 = arith.constant 45 : index
    %197 = memref.load %arg1[%c45] : memref<303xf32, #tpu.memory_space<smem>>
    %198 = vector.broadcast %197 : f32 to vector<1x64xf32>
    %199 = arith.mulf %198, %92 : vector<1x64xf32>
    %200 = arith.addf %196, %199 : vector<1x64xf32>
    %c54 = arith.constant 54 : index
    %201 = memref.load %arg1[%c54] : memref<303xf32, #tpu.memory_space<smem>>
    %202 = vector.broadcast %201 : f32 to vector<1x64xf32>
    %c22 = arith.constant 22 : index
    %203 = memref.load %arg1[%c22] : memref<303xf32, #tpu.memory_space<smem>>
    %204 = vector.broadcast %203 : f32 to vector<1x64xf32>
    %205 = arith.mulf %204, %89 : vector<1x64xf32>
    %206 = arith.addf %202, %205 : vector<1x64xf32>
    %c30 = arith.constant 30 : index
    %207 = memref.load %arg1[%c30] : memref<303xf32, #tpu.memory_space<smem>>
    %208 = vector.broadcast %207 : f32 to vector<1x64xf32>
    %209 = arith.mulf %208, %90 : vector<1x64xf32>
    %210 = arith.addf %206, %209 : vector<1x64xf32>
    %c38 = arith.constant 38 : index
    %211 = memref.load %arg1[%c38] : memref<303xf32, #tpu.memory_space<smem>>
    %212 = vector.broadcast %211 : f32 to vector<1x64xf32>
    %213 = arith.mulf %212, %91 : vector<1x64xf32>
    %214 = arith.addf %210, %213 : vector<1x64xf32>
    %c46 = arith.constant 46 : index
    %215 = memref.load %arg1[%c46] : memref<303xf32, #tpu.memory_space<smem>>
    %216 = vector.broadcast %215 : f32 to vector<1x64xf32>
    %217 = arith.mulf %216, %92 : vector<1x64xf32>
    %218 = arith.addf %214, %217 : vector<1x64xf32>
    %c55 = arith.constant 55 : index
    %219 = memref.load %arg1[%c55] : memref<303xf32, #tpu.memory_space<smem>>
    %220 = vector.broadcast %219 : f32 to vector<1x64xf32>
    %c23 = arith.constant 23 : index
    %221 = memref.load %arg1[%c23] : memref<303xf32, #tpu.memory_space<smem>>
    %222 = vector.broadcast %221 : f32 to vector<1x64xf32>
    %223 = arith.mulf %222, %89 : vector<1x64xf32>
    %224 = arith.addf %220, %223 : vector<1x64xf32>
    %c31 = arith.constant 31 : index
    %225 = memref.load %arg1[%c31] : memref<303xf32, #tpu.memory_space<smem>>
    %226 = vector.broadcast %225 : f32 to vector<1x64xf32>
    %227 = arith.mulf %226, %90 : vector<1x64xf32>
    %228 = arith.addf %224, %227 : vector<1x64xf32>
    %c39 = arith.constant 39 : index
    %229 = memref.load %arg1[%c39] : memref<303xf32, #tpu.memory_space<smem>>
    %230 = vector.broadcast %229 : f32 to vector<1x64xf32>
    %231 = arith.mulf %230, %91 : vector<1x64xf32>
    %232 = arith.addf %228, %231 : vector<1x64xf32>
    %c47 = arith.constant 47 : index
    %233 = memref.load %arg1[%c47] : memref<303xf32, #tpu.memory_space<smem>>
    %234 = vector.broadcast %233 : f32 to vector<1x64xf32>
    %235 = arith.mulf %234, %92 : vector<1x64xf32>
    %236 = arith.addf %232, %235 : vector<1x64xf32>
    %237 = tpu.concatenate %110, %128, %146, %164, %182, %200, %218, %236 in 0 : vector<1x64xf32>, vector<1x64xf32>, vector<1x64xf32>, vector<1x64xf32>, vector<1x64xf32>, vector<1x64xf32>, vector<1x64xf32>, vector<1x64xf32> -> vector<8x64xf32>
    %238 = math.tanh %237 : vector<8x64xf32>
    %239 = vector.broadcast %25 : vector<1x64xf32> to vector<8x64xf32>
    %240 = arith.mulf %238, %239 : vector<8x64xf32>
    %c58 = arith.constant 58 : index
    %241 = memref.load %arg1[%c58] : memref<303xf32, #tpu.memory_space<smem>>
    %242 = vector.broadcast %241 : f32 to vector<1x64xf32>
    %c56 = arith.constant 56 : index
    %243 = memref.load %arg1[%c56] : memref<303xf32, #tpu.memory_space<smem>>
    %244 = vector.broadcast %243 : f32 to vector<1x64xf32>
    %245 = arith.mulf %244, %30 : vector<1x64xf32>
    %246 = arith.addf %242, %245 : vector<1x64xf32>
    %c59 = arith.constant 59 : index
    %247 = memref.load %arg1[%c59] : memref<303xf32, #tpu.memory_space<smem>>
    %248 = vector.broadcast %247 : f32 to vector<1x64xf32>
    %c57 = arith.constant 57 : index
    %249 = memref.load %arg1[%c57] : memref<303xf32, #tpu.memory_space<smem>>
    %250 = vector.broadcast %249 : f32 to vector<1x64xf32>
    %251 = arith.mulf %250, %30 : vector<1x64xf32>
    %252 = arith.addf %248, %251 : vector<1x64xf32>
    %253 = tpu.concatenate %246, %252 in 0 : vector<1x64xf32>, vector<1x64xf32> -> vector<2x64xf32>
    %254 = math.tanh %253 : vector<2x64xf32>
    %255 = vector.extract_strided_slice %254 {offsets = [0, 0], sizes = [1, 64], strides = [1, 1]} : vector<2x64xf32> to vector<1x64xf32>
    %256 = vector.extract_strided_slice %254 {offsets = [1, 0], sizes = [1, 64], strides = [1, 1]} : vector<2x64xf32> to vector<1x64xf32>
    %c68 = arith.constant 68 : index
    %257 = memref.load %arg1[%c68] : memref<303xf32, #tpu.memory_space<smem>>
    %258 = vector.broadcast %257 : f32 to vector<1x64xf32>
    %c60 = arith.constant 60 : index
    %259 = memref.load %arg1[%c60] : memref<303xf32, #tpu.memory_space<smem>>
    %260 = vector.broadcast %259 : f32 to vector<1x64xf32>
    %261 = arith.mulf %260, %255 : vector<1x64xf32>
    %262 = arith.addf %258, %261 : vector<1x64xf32>
    %c64 = arith.constant 64 : index
    %263 = memref.load %arg1[%c64] : memref<303xf32, #tpu.memory_space<smem>>
    %264 = vector.broadcast %263 : f32 to vector<1x64xf32>
    %265 = arith.mulf %264, %256 : vector<1x64xf32>
    %266 = arith.addf %262, %265 : vector<1x64xf32>
    %c69 = arith.constant 69 : index
    %267 = memref.load %arg1[%c69] : memref<303xf32, #tpu.memory_space<smem>>
    %268 = vector.broadcast %267 : f32 to vector<1x64xf32>
    %c61 = arith.constant 61 : index
    %269 = memref.load %arg1[%c61] : memref<303xf32, #tpu.memory_space<smem>>
    %270 = vector.broadcast %269 : f32 to vector<1x64xf32>
    %271 = arith.mulf %270, %255 : vector<1x64xf32>
    %272 = arith.addf %268, %271 : vector<1x64xf32>
    %c65 = arith.constant 65 : index
    %273 = memref.load %arg1[%c65] : memref<303xf32, #tpu.memory_space<smem>>
    %274 = vector.broadcast %273 : f32 to vector<1x64xf32>
    %275 = arith.mulf %274, %256 : vector<1x64xf32>
    %276 = arith.addf %272, %275 : vector<1x64xf32>
    %c70 = arith.constant 70 : index
    %277 = memref.load %arg1[%c70] : memref<303xf32, #tpu.memory_space<smem>>
    %278 = vector.broadcast %277 : f32 to vector<1x64xf32>
    %c62 = arith.constant 62 : index
    %279 = memref.load %arg1[%c62] : memref<303xf32, #tpu.memory_space<smem>>
    %280 = vector.broadcast %279 : f32 to vector<1x64xf32>
    %281 = arith.mulf %280, %255 : vector<1x64xf32>
    %282 = arith.addf %278, %281 : vector<1x64xf32>
    %c66 = arith.constant 66 : index
    %283 = memref.load %arg1[%c66] : memref<303xf32, #tpu.memory_space<smem>>
    %284 = vector.broadcast %283 : f32 to vector<1x64xf32>
    %285 = arith.mulf %284, %256 : vector<1x64xf32>
    %286 = arith.addf %282, %285 : vector<1x64xf32>
    %c71 = arith.constant 71 : index
    %287 = memref.load %arg1[%c71] : memref<303xf32, #tpu.memory_space<smem>>
    %288 = vector.broadcast %287 : f32 to vector<1x64xf32>
    %c63 = arith.constant 63 : index
    %289 = memref.load %arg1[%c63] : memref<303xf32, #tpu.memory_space<smem>>
    %290 = vector.broadcast %289 : f32 to vector<1x64xf32>
    %291 = arith.mulf %290, %255 : vector<1x64xf32>
    %292 = arith.addf %288, %291 : vector<1x64xf32>
    %c67 = arith.constant 67 : index
    %293 = memref.load %arg1[%c67] : memref<303xf32, #tpu.memory_space<smem>>
    %294 = vector.broadcast %293 : f32 to vector<1x64xf32>
    %295 = arith.mulf %294, %256 : vector<1x64xf32>
    %296 = arith.addf %292, %295 : vector<1x64xf32>
    %297 = tpu.concatenate %266, %276, %286, %296 in 0 : vector<1x64xf32>, vector<1x64xf32>, vector<1x64xf32>, vector<1x64xf32> -> vector<4x64xf32>
    %298 = math.tanh %297 : vector<4x64xf32>
    %299 = vector.extract_strided_slice %298 {offsets = [0, 0], sizes = [1, 64], strides = [1, 1]} : vector<4x64xf32> to vector<1x64xf32>
    %300 = vector.extract_strided_slice %298 {offsets = [1, 0], sizes = [1, 64], strides = [1, 1]} : vector<4x64xf32> to vector<1x64xf32>
    %301 = vector.extract_strided_slice %298 {offsets = [2, 0], sizes = [1, 64], strides = [1, 1]} : vector<4x64xf32> to vector<1x64xf32>
    %302 = vector.extract_strided_slice %298 {offsets = [3, 0], sizes = [1, 64], strides = [1, 1]} : vector<4x64xf32> to vector<1x64xf32>
    %c104 = arith.constant 104 : index
    %303 = memref.load %arg1[%c104] : memref<303xf32, #tpu.memory_space<smem>>
    %304 = vector.broadcast %303 : f32 to vector<1x64xf32>
    %c72 = arith.constant 72 : index
    %305 = memref.load %arg1[%c72] : memref<303xf32, #tpu.memory_space<smem>>
    %306 = vector.broadcast %305 : f32 to vector<1x64xf32>
    %307 = arith.mulf %306, %299 : vector<1x64xf32>
    %308 = arith.addf %304, %307 : vector<1x64xf32>
    %c80 = arith.constant 80 : index
    %309 = memref.load %arg1[%c80] : memref<303xf32, #tpu.memory_space<smem>>
    %310 = vector.broadcast %309 : f32 to vector<1x64xf32>
    %311 = arith.mulf %310, %300 : vector<1x64xf32>
    %312 = arith.addf %308, %311 : vector<1x64xf32>
    %c88 = arith.constant 88 : index
    %313 = memref.load %arg1[%c88] : memref<303xf32, #tpu.memory_space<smem>>
    %314 = vector.broadcast %313 : f32 to vector<1x64xf32>
    %315 = arith.mulf %314, %301 : vector<1x64xf32>
    %316 = arith.addf %312, %315 : vector<1x64xf32>
    %c96 = arith.constant 96 : index
    %317 = memref.load %arg1[%c96] : memref<303xf32, #tpu.memory_space<smem>>
    %318 = vector.broadcast %317 : f32 to vector<1x64xf32>
    %319 = arith.mulf %318, %302 : vector<1x64xf32>
    %320 = arith.addf %316, %319 : vector<1x64xf32>
    %c105 = arith.constant 105 : index
    %321 = memref.load %arg1[%c105] : memref<303xf32, #tpu.memory_space<smem>>
    %322 = vector.broadcast %321 : f32 to vector<1x64xf32>
    %c73 = arith.constant 73 : index
    %323 = memref.load %arg1[%c73] : memref<303xf32, #tpu.memory_space<smem>>
    %324 = vector.broadcast %323 : f32 to vector<1x64xf32>
    %325 = arith.mulf %324, %299 : vector<1x64xf32>
    %326 = arith.addf %322, %325 : vector<1x64xf32>
    %c81 = arith.constant 81 : index
    %327 = memref.load %arg1[%c81] : memref<303xf32, #tpu.memory_space<smem>>
    %328 = vector.broadcast %327 : f32 to vector<1x64xf32>
    %329 = arith.mulf %328, %300 : vector<1x64xf32>
    %330 = arith.addf %326, %329 : vector<1x64xf32>
    %c89 = arith.constant 89 : index
    %331 = memref.load %arg1[%c89] : memref<303xf32, #tpu.memory_space<smem>>
    %332 = vector.broadcast %331 : f32 to vector<1x64xf32>
    %333 = arith.mulf %332, %301 : vector<1x64xf32>
    %334 = arith.addf %330, %333 : vector<1x64xf32>
    %c97 = arith.constant 97 : index
    %335 = memref.load %arg1[%c97] : memref<303xf32, #tpu.memory_space<smem>>
    %336 = vector.broadcast %335 : f32 to vector<1x64xf32>
    %337 = arith.mulf %336, %302 : vector<1x64xf32>
    %338 = arith.addf %334, %337 : vector<1x64xf32>
    %c106 = arith.constant 106 : index
    %339 = memref.load %arg1[%c106] : memref<303xf32, #tpu.memory_space<smem>>
    %340 = vector.broadcast %339 : f32 to vector<1x64xf32>
    %c74 = arith.constant 74 : index
    %341 = memref.load %arg1[%c74] : memref<303xf32, #tpu.memory_space<smem>>
    %342 = vector.broadcast %341 : f32 to vector<1x64xf32>
    %343 = arith.mulf %342, %299 : vector<1x64xf32>
    %344 = arith.addf %340, %343 : vector<1x64xf32>
    %c82 = arith.constant 82 : index
    %345 = memref.load %arg1[%c82] : memref<303xf32, #tpu.memory_space<smem>>
    %346 = vector.broadcast %345 : f32 to vector<1x64xf32>
    %347 = arith.mulf %346, %300 : vector<1x64xf32>
    %348 = arith.addf %344, %347 : vector<1x64xf32>
    %c90 = arith.constant 90 : index
    %349 = memref.load %arg1[%c90] : memref<303xf32, #tpu.memory_space<smem>>
    %350 = vector.broadcast %349 : f32 to vector<1x64xf32>
    %351 = arith.mulf %350, %301 : vector<1x64xf32>
    %352 = arith.addf %348, %351 : vector<1x64xf32>
    %c98 = arith.constant 98 : index
    %353 = memref.load %arg1[%c98] : memref<303xf32, #tpu.memory_space<smem>>
    %354 = vector.broadcast %353 : f32 to vector<1x64xf32>
    %355 = arith.mulf %354, %302 : vector<1x64xf32>
    %356 = arith.addf %352, %355 : vector<1x64xf32>
    %c107 = arith.constant 107 : index
    %357 = memref.load %arg1[%c107] : memref<303xf32, #tpu.memory_space<smem>>
    %358 = vector.broadcast %357 : f32 to vector<1x64xf32>
    %c75 = arith.constant 75 : index
    %359 = memref.load %arg1[%c75] : memref<303xf32, #tpu.memory_space<smem>>
    %360 = vector.broadcast %359 : f32 to vector<1x64xf32>
    %361 = arith.mulf %360, %299 : vector<1x64xf32>
    %362 = arith.addf %358, %361 : vector<1x64xf32>
    %c83 = arith.constant 83 : index
    %363 = memref.load %arg1[%c83] : memref<303xf32, #tpu.memory_space<smem>>
    %364 = vector.broadcast %363 : f32 to vector<1x64xf32>
    %365 = arith.mulf %364, %300 : vector<1x64xf32>
    %366 = arith.addf %362, %365 : vector<1x64xf32>
    %c91 = arith.constant 91 : index
    %367 = memref.load %arg1[%c91] : memref<303xf32, #tpu.memory_space<smem>>
    %368 = vector.broadcast %367 : f32 to vector<1x64xf32>
    %369 = arith.mulf %368, %301 : vector<1x64xf32>
    %370 = arith.addf %366, %369 : vector<1x64xf32>
    %c99 = arith.constant 99 : index
    %371 = memref.load %arg1[%c99] : memref<303xf32, #tpu.memory_space<smem>>
    %372 = vector.broadcast %371 : f32 to vector<1x64xf32>
    %373 = arith.mulf %372, %302 : vector<1x64xf32>
    %374 = arith.addf %370, %373 : vector<1x64xf32>
    %c108 = arith.constant 108 : index
    %375 = memref.load %arg1[%c108] : memref<303xf32, #tpu.memory_space<smem>>
    %376 = vector.broadcast %375 : f32 to vector<1x64xf32>
    %c76 = arith.constant 76 : index
    %377 = memref.load %arg1[%c76] : memref<303xf32, #tpu.memory_space<smem>>
    %378 = vector.broadcast %377 : f32 to vector<1x64xf32>
    %379 = arith.mulf %378, %299 : vector<1x64xf32>
    %380 = arith.addf %376, %379 : vector<1x64xf32>
    %c84 = arith.constant 84 : index
    %381 = memref.load %arg1[%c84] : memref<303xf32, #tpu.memory_space<smem>>
    %382 = vector.broadcast %381 : f32 to vector<1x64xf32>
    %383 = arith.mulf %382, %300 : vector<1x64xf32>
    %384 = arith.addf %380, %383 : vector<1x64xf32>
    %c92 = arith.constant 92 : index
    %385 = memref.load %arg1[%c92] : memref<303xf32, #tpu.memory_space<smem>>
    %386 = vector.broadcast %385 : f32 to vector<1x64xf32>
    %387 = arith.mulf %386, %301 : vector<1x64xf32>
    %388 = arith.addf %384, %387 : vector<1x64xf32>
    %c100 = arith.constant 100 : index
    %389 = memref.load %arg1[%c100] : memref<303xf32, #tpu.memory_space<smem>>
    %390 = vector.broadcast %389 : f32 to vector<1x64xf32>
    %391 = arith.mulf %390, %302 : vector<1x64xf32>
    %392 = arith.addf %388, %391 : vector<1x64xf32>
    %c109 = arith.constant 109 : index
    %393 = memref.load %arg1[%c109] : memref<303xf32, #tpu.memory_space<smem>>
    %394 = vector.broadcast %393 : f32 to vector<1x64xf32>
    %c77 = arith.constant 77 : index
    %395 = memref.load %arg1[%c77] : memref<303xf32, #tpu.memory_space<smem>>
    %396 = vector.broadcast %395 : f32 to vector<1x64xf32>
    %397 = arith.mulf %396, %299 : vector<1x64xf32>
    %398 = arith.addf %394, %397 : vector<1x64xf32>
    %c85 = arith.constant 85 : index
    %399 = memref.load %arg1[%c85] : memref<303xf32, #tpu.memory_space<smem>>
    %400 = vector.broadcast %399 : f32 to vector<1x64xf32>
    %401 = arith.mulf %400, %300 : vector<1x64xf32>
    %402 = arith.addf %398, %401 : vector<1x64xf32>
    %c93 = arith.constant 93 : index
    %403 = memref.load %arg1[%c93] : memref<303xf32, #tpu.memory_space<smem>>
    %404 = vector.broadcast %403 : f32 to vector<1x64xf32>
    %405 = arith.mulf %404, %301 : vector<1x64xf32>
    %406 = arith.addf %402, %405 : vector<1x64xf32>
    %c101 = arith.constant 101 : index
    %407 = memref.load %arg1[%c101] : memref<303xf32, #tpu.memory_space<smem>>
    %408 = vector.broadcast %407 : f32 to vector<1x64xf32>
    %409 = arith.mulf %408, %302 : vector<1x64xf32>
    %410 = arith.addf %406, %409 : vector<1x64xf32>
    %c110 = arith.constant 110 : index
    %411 = memref.load %arg1[%c110] : memref<303xf32, #tpu.memory_space<smem>>
    %412 = vector.broadcast %411 : f32 to vector<1x64xf32>
    %c78 = arith.constant 78 : index
    %413 = memref.load %arg1[%c78] : memref<303xf32, #tpu.memory_space<smem>>
    %414 = vector.broadcast %413 : f32 to vector<1x64xf32>
    %415 = arith.mulf %414, %299 : vector<1x64xf32>
    %416 = arith.addf %412, %415 : vector<1x64xf32>
    %c86 = arith.constant 86 : index
    %417 = memref.load %arg1[%c86] : memref<303xf32, #tpu.memory_space<smem>>
    %418 = vector.broadcast %417 : f32 to vector<1x64xf32>
    %419 = arith.mulf %418, %300 : vector<1x64xf32>
    %420 = arith.addf %416, %419 : vector<1x64xf32>
    %c94 = arith.constant 94 : index
    %421 = memref.load %arg1[%c94] : memref<303xf32, #tpu.memory_space<smem>>
    %422 = vector.broadcast %421 : f32 to vector<1x64xf32>
    %423 = arith.mulf %422, %301 : vector<1x64xf32>
    %424 = arith.addf %420, %423 : vector<1x64xf32>
    %c102 = arith.constant 102 : index
    %425 = memref.load %arg1[%c102] : memref<303xf32, #tpu.memory_space<smem>>
    %426 = vector.broadcast %425 : f32 to vector<1x64xf32>
    %427 = arith.mulf %426, %302 : vector<1x64xf32>
    %428 = arith.addf %424, %427 : vector<1x64xf32>
    %c111 = arith.constant 111 : index
    %429 = memref.load %arg1[%c111] : memref<303xf32, #tpu.memory_space<smem>>
    %430 = vector.broadcast %429 : f32 to vector<1x64xf32>
    %c79 = arith.constant 79 : index
    %431 = memref.load %arg1[%c79] : memref<303xf32, #tpu.memory_space<smem>>
    %432 = vector.broadcast %431 : f32 to vector<1x64xf32>
    %433 = arith.mulf %432, %299 : vector<1x64xf32>
    %434 = arith.addf %430, %433 : vector<1x64xf32>
    %c87 = arith.constant 87 : index
    %435 = memref.load %arg1[%c87] : memref<303xf32, #tpu.memory_space<smem>>
    %436 = vector.broadcast %435 : f32 to vector<1x64xf32>
    %437 = arith.mulf %436, %300 : vector<1x64xf32>
    %438 = arith.addf %434, %437 : vector<1x64xf32>
    %c95 = arith.constant 95 : index
    %439 = memref.load %arg1[%c95] : memref<303xf32, #tpu.memory_space<smem>>
    %440 = vector.broadcast %439 : f32 to vector<1x64xf32>
    %441 = arith.mulf %440, %301 : vector<1x64xf32>
    %442 = arith.addf %438, %441 : vector<1x64xf32>
    %c103 = arith.constant 103 : index
    %443 = memref.load %arg1[%c103] : memref<303xf32, #tpu.memory_space<smem>>
    %444 = vector.broadcast %443 : f32 to vector<1x64xf32>
    %445 = arith.mulf %444, %302 : vector<1x64xf32>
    %446 = arith.addf %442, %445 : vector<1x64xf32>
    %447 = tpu.concatenate %320, %338, %356, %374, %392, %410, %428, %446 in 0 : vector<1x64xf32>, vector<1x64xf32>, vector<1x64xf32>, vector<1x64xf32>, vector<1x64xf32>, vector<1x64xf32>, vector<1x64xf32>, vector<1x64xf32> -> vector<8x64xf32>
    %448 = math.tanh %447 : vector<8x64xf32>
    %449 = vector.broadcast %30 : vector<1x64xf32> to vector<8x64xf32>
    %450 = arith.mulf %448, %449 : vector<8x64xf32>
    %451 = vector.extract_strided_slice %240 {offsets = [0, 0], sizes = [8, 16], strides = [1, 1]} : vector<8x64xf32> to vector<8x16xf32>
    %452 = vector.extract_strided_slice %450 {offsets = [0, 0], sizes = [8, 16], strides = [1, 1]} : vector<8x64xf32> to vector<8x16xf32>
    %453 = vector.extract_strided_slice %240 {offsets = [0, 16], sizes = [8, 16], strides = [1, 1]} : vector<8x64xf32> to vector<8x16xf32>
    %454 = arith.addf %451, %453 : vector<8x16xf32>
    %455 = vector.extract_strided_slice %450 {offsets = [0, 16], sizes = [8, 16], strides = [1, 1]} : vector<8x64xf32> to vector<8x16xf32>
    %456 = arith.addf %452, %455 : vector<8x16xf32>
    %457 = vector.extract_strided_slice %240 {offsets = [0, 32], sizes = [8, 16], strides = [1, 1]} : vector<8x64xf32> to vector<8x16xf32>
    %458 = arith.addf %454, %457 : vector<8x16xf32>
    %459 = vector.extract_strided_slice %450 {offsets = [0, 32], sizes = [8, 16], strides = [1, 1]} : vector<8x64xf32> to vector<8x16xf32>
    %460 = arith.addf %456, %459 : vector<8x16xf32>
    %461 = vector.extract_strided_slice %240 {offsets = [0, 48], sizes = [8, 16], strides = [1, 1]} : vector<8x64xf32> to vector<8x16xf32>
    %462 = arith.addf %458, %461 : vector<8x16xf32>
    %463 = vector.extract_strided_slice %450 {offsets = [0, 48], sizes = [8, 16], strides = [1, 1]} : vector<8x64xf32> to vector<8x16xf32>
    %464 = arith.addf %460, %463 : vector<8x16xf32>
    %465 = tpu.concatenate %462, %464 in 0 : vector<8x16xf32>, vector<8x16xf32> -> vector<16x16xf32>
    %466 = vector.extract_strided_slice %465 {offsets = [0, 0], sizes = [1, 16], strides = [1, 1]} : vector<16x16xf32> to vector<1x16xf32>
    %467 = vector.extract_strided_slice %465 {offsets = [1, 0], sizes = [1, 16], strides = [1, 1]} : vector<16x16xf32> to vector<1x16xf32>
    %468 = vector.extract_strided_slice %465 {offsets = [2, 0], sizes = [1, 16], strides = [1, 1]} : vector<16x16xf32> to vector<1x16xf32>
    %469 = vector.extract_strided_slice %465 {offsets = [3, 0], sizes = [1, 16], strides = [1, 1]} : vector<16x16xf32> to vector<1x16xf32>
    %470 = vector.extract_strided_slice %465 {offsets = [4, 0], sizes = [1, 16], strides = [1, 1]} : vector<16x16xf32> to vector<1x16xf32>
    %471 = vector.extract_strided_slice %465 {offsets = [5, 0], sizes = [1, 16], strides = [1, 1]} : vector<16x16xf32> to vector<1x16xf32>
    %472 = vector.extract_strided_slice %465 {offsets = [6, 0], sizes = [1, 16], strides = [1, 1]} : vector<16x16xf32> to vector<1x16xf32>
    %473 = vector.extract_strided_slice %465 {offsets = [7, 0], sizes = [1, 16], strides = [1, 1]} : vector<16x16xf32> to vector<1x16xf32>
    %474 = vector.extract_strided_slice %465 {offsets = [8, 0], sizes = [1, 16], strides = [1, 1]} : vector<16x16xf32> to vector<1x16xf32>
    %475 = vector.extract_strided_slice %465 {offsets = [9, 0], sizes = [1, 16], strides = [1, 1]} : vector<16x16xf32> to vector<1x16xf32>
    %476 = vector.extract_strided_slice %465 {offsets = [10, 0], sizes = [1, 16], strides = [1, 1]} : vector<16x16xf32> to vector<1x16xf32>
    %477 = vector.extract_strided_slice %465 {offsets = [11, 0], sizes = [1, 16], strides = [1, 1]} : vector<16x16xf32> to vector<1x16xf32>
    %478 = vector.extract_strided_slice %465 {offsets = [12, 0], sizes = [1, 16], strides = [1, 1]} : vector<16x16xf32> to vector<1x16xf32>
    %479 = vector.extract_strided_slice %465 {offsets = [13, 0], sizes = [1, 16], strides = [1, 1]} : vector<16x16xf32> to vector<1x16xf32>
    %480 = vector.extract_strided_slice %465 {offsets = [14, 0], sizes = [1, 16], strides = [1, 1]} : vector<16x16xf32> to vector<1x16xf32>
    %481 = vector.extract_strided_slice %465 {offsets = [15, 0], sizes = [1, 16], strides = [1, 1]} : vector<16x16xf32> to vector<1x16xf32>
    %c240 = arith.constant 240 : index
    %482 = memref.load %arg1[%c240] : memref<303xf32, #tpu.memory_space<smem>>
    %483 = vector.broadcast %482 : f32 to vector<1x16xf32>
    %c112 = arith.constant 112 : index
    %484 = memref.load %arg1[%c112] : memref<303xf32, #tpu.memory_space<smem>>
    %485 = vector.broadcast %484 : f32 to vector<1x16xf32>
    %486 = arith.mulf %485, %466 : vector<1x16xf32>
    %487 = arith.addf %483, %486 : vector<1x16xf32>
    %c120 = arith.constant 120 : index
    %488 = memref.load %arg1[%c120] : memref<303xf32, #tpu.memory_space<smem>>
    %489 = vector.broadcast %488 : f32 to vector<1x16xf32>
    %490 = arith.mulf %489, %467 : vector<1x16xf32>
    %491 = arith.addf %487, %490 : vector<1x16xf32>
    %c128 = arith.constant 128 : index
    %492 = memref.load %arg1[%c128] : memref<303xf32, #tpu.memory_space<smem>>
    %493 = vector.broadcast %492 : f32 to vector<1x16xf32>
    %494 = arith.mulf %493, %468 : vector<1x16xf32>
    %495 = arith.addf %491, %494 : vector<1x16xf32>
    %c136 = arith.constant 136 : index
    %496 = memref.load %arg1[%c136] : memref<303xf32, #tpu.memory_space<smem>>
    %497 = vector.broadcast %496 : f32 to vector<1x16xf32>
    %498 = arith.mulf %497, %469 : vector<1x16xf32>
    %499 = arith.addf %495, %498 : vector<1x16xf32>
    %c144 = arith.constant 144 : index
    %500 = memref.load %arg1[%c144] : memref<303xf32, #tpu.memory_space<smem>>
    %501 = vector.broadcast %500 : f32 to vector<1x16xf32>
    %502 = arith.mulf %501, %470 : vector<1x16xf32>
    %503 = arith.addf %499, %502 : vector<1x16xf32>
    %c152 = arith.constant 152 : index
    %504 = memref.load %arg1[%c152] : memref<303xf32, #tpu.memory_space<smem>>
    %505 = vector.broadcast %504 : f32 to vector<1x16xf32>
    %506 = arith.mulf %505, %471 : vector<1x16xf32>
    %507 = arith.addf %503, %506 : vector<1x16xf32>
    %c160 = arith.constant 160 : index
    %508 = memref.load %arg1[%c160] : memref<303xf32, #tpu.memory_space<smem>>
    %509 = vector.broadcast %508 : f32 to vector<1x16xf32>
    %510 = arith.mulf %509, %472 : vector<1x16xf32>
    %511 = arith.addf %507, %510 : vector<1x16xf32>
    %c168 = arith.constant 168 : index
    %512 = memref.load %arg1[%c168] : memref<303xf32, #tpu.memory_space<smem>>
    %513 = vector.broadcast %512 : f32 to vector<1x16xf32>
    %514 = arith.mulf %513, %473 : vector<1x16xf32>
    %515 = arith.addf %511, %514 : vector<1x16xf32>
    %c176 = arith.constant 176 : index
    %516 = memref.load %arg1[%c176] : memref<303xf32, #tpu.memory_space<smem>>
    %517 = vector.broadcast %516 : f32 to vector<1x16xf32>
    %518 = arith.mulf %517, %474 : vector<1x16xf32>
    %519 = arith.addf %515, %518 : vector<1x16xf32>
    %c184 = arith.constant 184 : index
    %520 = memref.load %arg1[%c184] : memref<303xf32, #tpu.memory_space<smem>>
    %521 = vector.broadcast %520 : f32 to vector<1x16xf32>
    %522 = arith.mulf %521, %475 : vector<1x16xf32>
    %523 = arith.addf %519, %522 : vector<1x16xf32>
    %c192 = arith.constant 192 : index
    %524 = memref.load %arg1[%c192] : memref<303xf32, #tpu.memory_space<smem>>
    %525 = vector.broadcast %524 : f32 to vector<1x16xf32>
    %526 = arith.mulf %525, %476 : vector<1x16xf32>
    %527 = arith.addf %523, %526 : vector<1x16xf32>
    %c200 = arith.constant 200 : index
    %528 = memref.load %arg1[%c200] : memref<303xf32, #tpu.memory_space<smem>>
    %529 = vector.broadcast %528 : f32 to vector<1x16xf32>
    %530 = arith.mulf %529, %477 : vector<1x16xf32>
    %531 = arith.addf %527, %530 : vector<1x16xf32>
    %c208 = arith.constant 208 : index
    %532 = memref.load %arg1[%c208] : memref<303xf32, #tpu.memory_space<smem>>
    %533 = vector.broadcast %532 : f32 to vector<1x16xf32>
    %534 = arith.mulf %533, %478 : vector<1x16xf32>
    %535 = arith.addf %531, %534 : vector<1x16xf32>
    %c216 = arith.constant 216 : index
    %536 = memref.load %arg1[%c216] : memref<303xf32, #tpu.memory_space<smem>>
    %537 = vector.broadcast %536 : f32 to vector<1x16xf32>
    %538 = arith.mulf %537, %479 : vector<1x16xf32>
    %539 = arith.addf %535, %538 : vector<1x16xf32>
    %c224 = arith.constant 224 : index
    %540 = memref.load %arg1[%c224] : memref<303xf32, #tpu.memory_space<smem>>
    %541 = vector.broadcast %540 : f32 to vector<1x16xf32>
    %542 = arith.mulf %541, %480 : vector<1x16xf32>
    %543 = arith.addf %539, %542 : vector<1x16xf32>
    %c232 = arith.constant 232 : index
    %544 = memref.load %arg1[%c232] : memref<303xf32, #tpu.memory_space<smem>>
    %545 = vector.broadcast %544 : f32 to vector<1x16xf32>
    %546 = arith.mulf %545, %481 : vector<1x16xf32>
    %547 = arith.addf %543, %546 : vector<1x16xf32>
    %c241 = arith.constant 241 : index
    %548 = memref.load %arg1[%c241] : memref<303xf32, #tpu.memory_space<smem>>
    %549 = vector.broadcast %548 : f32 to vector<1x16xf32>
    %c113 = arith.constant 113 : index
    %550 = memref.load %arg1[%c113] : memref<303xf32, #tpu.memory_space<smem>>
    %551 = vector.broadcast %550 : f32 to vector<1x16xf32>
    %552 = arith.mulf %551, %466 : vector<1x16xf32>
    %553 = arith.addf %549, %552 : vector<1x16xf32>
    %c121 = arith.constant 121 : index
    %554 = memref.load %arg1[%c121] : memref<303xf32, #tpu.memory_space<smem>>
    %555 = vector.broadcast %554 : f32 to vector<1x16xf32>
    %556 = arith.mulf %555, %467 : vector<1x16xf32>
    %557 = arith.addf %553, %556 : vector<1x16xf32>
    %c129 = arith.constant 129 : index
    %558 = memref.load %arg1[%c129] : memref<303xf32, #tpu.memory_space<smem>>
    %559 = vector.broadcast %558 : f32 to vector<1x16xf32>
    %560 = arith.mulf %559, %468 : vector<1x16xf32>
    %561 = arith.addf %557, %560 : vector<1x16xf32>
    %c137 = arith.constant 137 : index
    %562 = memref.load %arg1[%c137] : memref<303xf32, #tpu.memory_space<smem>>
    %563 = vector.broadcast %562 : f32 to vector<1x16xf32>
    %564 = arith.mulf %563, %469 : vector<1x16xf32>
    %565 = arith.addf %561, %564 : vector<1x16xf32>
    %c145 = arith.constant 145 : index
    %566 = memref.load %arg1[%c145] : memref<303xf32, #tpu.memory_space<smem>>
    %567 = vector.broadcast %566 : f32 to vector<1x16xf32>
    %568 = arith.mulf %567, %470 : vector<1x16xf32>
    %569 = arith.addf %565, %568 : vector<1x16xf32>
    %c153 = arith.constant 153 : index
    %570 = memref.load %arg1[%c153] : memref<303xf32, #tpu.memory_space<smem>>
    %571 = vector.broadcast %570 : f32 to vector<1x16xf32>
    %572 = arith.mulf %571, %471 : vector<1x16xf32>
    %573 = arith.addf %569, %572 : vector<1x16xf32>
    %c161 = arith.constant 161 : index
    %574 = memref.load %arg1[%c161] : memref<303xf32, #tpu.memory_space<smem>>
    %575 = vector.broadcast %574 : f32 to vector<1x16xf32>
    %576 = arith.mulf %575, %472 : vector<1x16xf32>
    %577 = arith.addf %573, %576 : vector<1x16xf32>
    %c169 = arith.constant 169 : index
    %578 = memref.load %arg1[%c169] : memref<303xf32, #tpu.memory_space<smem>>
    %579 = vector.broadcast %578 : f32 to vector<1x16xf32>
    %580 = arith.mulf %579, %473 : vector<1x16xf32>
    %581 = arith.addf %577, %580 : vector<1x16xf32>
    %c177 = arith.constant 177 : index
    %582 = memref.load %arg1[%c177] : memref<303xf32, #tpu.memory_space<smem>>
    %583 = vector.broadcast %582 : f32 to vector<1x16xf32>
    %584 = arith.mulf %583, %474 : vector<1x16xf32>
    %585 = arith.addf %581, %584 : vector<1x16xf32>
    %c185 = arith.constant 185 : index
    %586 = memref.load %arg1[%c185] : memref<303xf32, #tpu.memory_space<smem>>
    %587 = vector.broadcast %586 : f32 to vector<1x16xf32>
    %588 = arith.mulf %587, %475 : vector<1x16xf32>
    %589 = arith.addf %585, %588 : vector<1x16xf32>
    %c193 = arith.constant 193 : index
    %590 = memref.load %arg1[%c193] : memref<303xf32, #tpu.memory_space<smem>>
    %591 = vector.broadcast %590 : f32 to vector<1x16xf32>
    %592 = arith.mulf %591, %476 : vector<1x16xf32>
    %593 = arith.addf %589, %592 : vector<1x16xf32>
    %c201 = arith.constant 201 : index
    %594 = memref.load %arg1[%c201] : memref<303xf32, #tpu.memory_space<smem>>
    %595 = vector.broadcast %594 : f32 to vector<1x16xf32>
    %596 = arith.mulf %595, %477 : vector<1x16xf32>
    %597 = arith.addf %593, %596 : vector<1x16xf32>
    %c209 = arith.constant 209 : index
    %598 = memref.load %arg1[%c209] : memref<303xf32, #tpu.memory_space<smem>>
    %599 = vector.broadcast %598 : f32 to vector<1x16xf32>
    %600 = arith.mulf %599, %478 : vector<1x16xf32>
    %601 = arith.addf %597, %600 : vector<1x16xf32>
    %c217 = arith.constant 217 : index
    %602 = memref.load %arg1[%c217] : memref<303xf32, #tpu.memory_space<smem>>
    %603 = vector.broadcast %602 : f32 to vector<1x16xf32>
    %604 = arith.mulf %603, %479 : vector<1x16xf32>
    %605 = arith.addf %601, %604 : vector<1x16xf32>
    %c225 = arith.constant 225 : index
    %606 = memref.load %arg1[%c225] : memref<303xf32, #tpu.memory_space<smem>>
    %607 = vector.broadcast %606 : f32 to vector<1x16xf32>
    %608 = arith.mulf %607, %480 : vector<1x16xf32>
    %609 = arith.addf %605, %608 : vector<1x16xf32>
    %c233 = arith.constant 233 : index
    %610 = memref.load %arg1[%c233] : memref<303xf32, #tpu.memory_space<smem>>
    %611 = vector.broadcast %610 : f32 to vector<1x16xf32>
    %612 = arith.mulf %611, %481 : vector<1x16xf32>
    %613 = arith.addf %609, %612 : vector<1x16xf32>
    %c242 = arith.constant 242 : index
    %614 = memref.load %arg1[%c242] : memref<303xf32, #tpu.memory_space<smem>>
    %615 = vector.broadcast %614 : f32 to vector<1x16xf32>
    %c114 = arith.constant 114 : index
    %616 = memref.load %arg1[%c114] : memref<303xf32, #tpu.memory_space<smem>>
    %617 = vector.broadcast %616 : f32 to vector<1x16xf32>
    %618 = arith.mulf %617, %466 : vector<1x16xf32>
    %619 = arith.addf %615, %618 : vector<1x16xf32>
    %c122 = arith.constant 122 : index
    %620 = memref.load %arg1[%c122] : memref<303xf32, #tpu.memory_space<smem>>
    %621 = vector.broadcast %620 : f32 to vector<1x16xf32>
    %622 = arith.mulf %621, %467 : vector<1x16xf32>
    %623 = arith.addf %619, %622 : vector<1x16xf32>
    %c130 = arith.constant 130 : index
    %624 = memref.load %arg1[%c130] : memref<303xf32, #tpu.memory_space<smem>>
    %625 = vector.broadcast %624 : f32 to vector<1x16xf32>
    %626 = arith.mulf %625, %468 : vector<1x16xf32>
    %627 = arith.addf %623, %626 : vector<1x16xf32>
    %c138 = arith.constant 138 : index
    %628 = memref.load %arg1[%c138] : memref<303xf32, #tpu.memory_space<smem>>
    %629 = vector.broadcast %628 : f32 to vector<1x16xf32>
    %630 = arith.mulf %629, %469 : vector<1x16xf32>
    %631 = arith.addf %627, %630 : vector<1x16xf32>
    %c146 = arith.constant 146 : index
    %632 = memref.load %arg1[%c146] : memref<303xf32, #tpu.memory_space<smem>>
    %633 = vector.broadcast %632 : f32 to vector<1x16xf32>
    %634 = arith.mulf %633, %470 : vector<1x16xf32>
    %635 = arith.addf %631, %634 : vector<1x16xf32>
    %c154 = arith.constant 154 : index
    %636 = memref.load %arg1[%c154] : memref<303xf32, #tpu.memory_space<smem>>
    %637 = vector.broadcast %636 : f32 to vector<1x16xf32>
    %638 = arith.mulf %637, %471 : vector<1x16xf32>
    %639 = arith.addf %635, %638 : vector<1x16xf32>
    %c162 = arith.constant 162 : index
    %640 = memref.load %arg1[%c162] : memref<303xf32, #tpu.memory_space<smem>>
    %641 = vector.broadcast %640 : f32 to vector<1x16xf32>
    %642 = arith.mulf %641, %472 : vector<1x16xf32>
    %643 = arith.addf %639, %642 : vector<1x16xf32>
    %c170 = arith.constant 170 : index
    %644 = memref.load %arg1[%c170] : memref<303xf32, #tpu.memory_space<smem>>
    %645 = vector.broadcast %644 : f32 to vector<1x16xf32>
    %646 = arith.mulf %645, %473 : vector<1x16xf32>
    %647 = arith.addf %643, %646 : vector<1x16xf32>
    %c178 = arith.constant 178 : index
    %648 = memref.load %arg1[%c178] : memref<303xf32, #tpu.memory_space<smem>>
    %649 = vector.broadcast %648 : f32 to vector<1x16xf32>
    %650 = arith.mulf %649, %474 : vector<1x16xf32>
    %651 = arith.addf %647, %650 : vector<1x16xf32>
    %c186 = arith.constant 186 : index
    %652 = memref.load %arg1[%c186] : memref<303xf32, #tpu.memory_space<smem>>
    %653 = vector.broadcast %652 : f32 to vector<1x16xf32>
    %654 = arith.mulf %653, %475 : vector<1x16xf32>
    %655 = arith.addf %651, %654 : vector<1x16xf32>
    %c194 = arith.constant 194 : index
    %656 = memref.load %arg1[%c194] : memref<303xf32, #tpu.memory_space<smem>>
    %657 = vector.broadcast %656 : f32 to vector<1x16xf32>
    %658 = arith.mulf %657, %476 : vector<1x16xf32>
    %659 = arith.addf %655, %658 : vector<1x16xf32>
    %c202 = arith.constant 202 : index
    %660 = memref.load %arg1[%c202] : memref<303xf32, #tpu.memory_space<smem>>
    %661 = vector.broadcast %660 : f32 to vector<1x16xf32>
    %662 = arith.mulf %661, %477 : vector<1x16xf32>
    %663 = arith.addf %659, %662 : vector<1x16xf32>
    %c210 = arith.constant 210 : index
    %664 = memref.load %arg1[%c210] : memref<303xf32, #tpu.memory_space<smem>>
    %665 = vector.broadcast %664 : f32 to vector<1x16xf32>
    %666 = arith.mulf %665, %478 : vector<1x16xf32>
    %667 = arith.addf %663, %666 : vector<1x16xf32>
    %c218 = arith.constant 218 : index
    %668 = memref.load %arg1[%c218] : memref<303xf32, #tpu.memory_space<smem>>
    %669 = vector.broadcast %668 : f32 to vector<1x16xf32>
    %670 = arith.mulf %669, %479 : vector<1x16xf32>
    %671 = arith.addf %667, %670 : vector<1x16xf32>
    %c226 = arith.constant 226 : index
    %672 = memref.load %arg1[%c226] : memref<303xf32, #tpu.memory_space<smem>>
    %673 = vector.broadcast %672 : f32 to vector<1x16xf32>
    %674 = arith.mulf %673, %480 : vector<1x16xf32>
    %675 = arith.addf %671, %674 : vector<1x16xf32>
    %c234 = arith.constant 234 : index
    %676 = memref.load %arg1[%c234] : memref<303xf32, #tpu.memory_space<smem>>
    %677 = vector.broadcast %676 : f32 to vector<1x16xf32>
    %678 = arith.mulf %677, %481 : vector<1x16xf32>
    %679 = arith.addf %675, %678 : vector<1x16xf32>
    %c243 = arith.constant 243 : index
    %680 = memref.load %arg1[%c243] : memref<303xf32, #tpu.memory_space<smem>>
    %681 = vector.broadcast %680 : f32 to vector<1x16xf32>
    %c115 = arith.constant 115 : index
    %682 = memref.load %arg1[%c115] : memref<303xf32, #tpu.memory_space<smem>>
    %683 = vector.broadcast %682 : f32 to vector<1x16xf32>
    %684 = arith.mulf %683, %466 : vector<1x16xf32>
    %685 = arith.addf %681, %684 : vector<1x16xf32>
    %c123 = arith.constant 123 : index
    %686 = memref.load %arg1[%c123] : memref<303xf32, #tpu.memory_space<smem>>
    %687 = vector.broadcast %686 : f32 to vector<1x16xf32>
    %688 = arith.mulf %687, %467 : vector<1x16xf32>
    %689 = arith.addf %685, %688 : vector<1x16xf32>
    %c131 = arith.constant 131 : index
    %690 = memref.load %arg1[%c131] : memref<303xf32, #tpu.memory_space<smem>>
    %691 = vector.broadcast %690 : f32 to vector<1x16xf32>
    %692 = arith.mulf %691, %468 : vector<1x16xf32>
    %693 = arith.addf %689, %692 : vector<1x16xf32>
    %c139 = arith.constant 139 : index
    %694 = memref.load %arg1[%c139] : memref<303xf32, #tpu.memory_space<smem>>
    %695 = vector.broadcast %694 : f32 to vector<1x16xf32>
    %696 = arith.mulf %695, %469 : vector<1x16xf32>
    %697 = arith.addf %693, %696 : vector<1x16xf32>
    %c147 = arith.constant 147 : index
    %698 = memref.load %arg1[%c147] : memref<303xf32, #tpu.memory_space<smem>>
    %699 = vector.broadcast %698 : f32 to vector<1x16xf32>
    %700 = arith.mulf %699, %470 : vector<1x16xf32>
    %701 = arith.addf %697, %700 : vector<1x16xf32>
    %c155 = arith.constant 155 : index
    %702 = memref.load %arg1[%c155] : memref<303xf32, #tpu.memory_space<smem>>
    %703 = vector.broadcast %702 : f32 to vector<1x16xf32>
    %704 = arith.mulf %703, %471 : vector<1x16xf32>
    %705 = arith.addf %701, %704 : vector<1x16xf32>
    %c163 = arith.constant 163 : index
    %706 = memref.load %arg1[%c163] : memref<303xf32, #tpu.memory_space<smem>>
    %707 = vector.broadcast %706 : f32 to vector<1x16xf32>
    %708 = arith.mulf %707, %472 : vector<1x16xf32>
    %709 = arith.addf %705, %708 : vector<1x16xf32>
    %c171 = arith.constant 171 : index
    %710 = memref.load %arg1[%c171] : memref<303xf32, #tpu.memory_space<smem>>
    %711 = vector.broadcast %710 : f32 to vector<1x16xf32>
    %712 = arith.mulf %711, %473 : vector<1x16xf32>
    %713 = arith.addf %709, %712 : vector<1x16xf32>
    %c179 = arith.constant 179 : index
    %714 = memref.load %arg1[%c179] : memref<303xf32, #tpu.memory_space<smem>>
    %715 = vector.broadcast %714 : f32 to vector<1x16xf32>
    %716 = arith.mulf %715, %474 : vector<1x16xf32>
    %717 = arith.addf %713, %716 : vector<1x16xf32>
    %c187 = arith.constant 187 : index
    %718 = memref.load %arg1[%c187] : memref<303xf32, #tpu.memory_space<smem>>
    %719 = vector.broadcast %718 : f32 to vector<1x16xf32>
    %720 = arith.mulf %719, %475 : vector<1x16xf32>
    %721 = arith.addf %717, %720 : vector<1x16xf32>
    %c195 = arith.constant 195 : index
    %722 = memref.load %arg1[%c195] : memref<303xf32, #tpu.memory_space<smem>>
    %723 = vector.broadcast %722 : f32 to vector<1x16xf32>
    %724 = arith.mulf %723, %476 : vector<1x16xf32>
    %725 = arith.addf %721, %724 : vector<1x16xf32>
    %c203 = arith.constant 203 : index
    %726 = memref.load %arg1[%c203] : memref<303xf32, #tpu.memory_space<smem>>
    %727 = vector.broadcast %726 : f32 to vector<1x16xf32>
    %728 = arith.mulf %727, %477 : vector<1x16xf32>
    %729 = arith.addf %725, %728 : vector<1x16xf32>
    %c211 = arith.constant 211 : index
    %730 = memref.load %arg1[%c211] : memref<303xf32, #tpu.memory_space<smem>>
    %731 = vector.broadcast %730 : f32 to vector<1x16xf32>
    %732 = arith.mulf %731, %478 : vector<1x16xf32>
    %733 = arith.addf %729, %732 : vector<1x16xf32>
    %c219 = arith.constant 219 : index
    %734 = memref.load %arg1[%c219] : memref<303xf32, #tpu.memory_space<smem>>
    %735 = vector.broadcast %734 : f32 to vector<1x16xf32>
    %736 = arith.mulf %735, %479 : vector<1x16xf32>
    %737 = arith.addf %733, %736 : vector<1x16xf32>
    %c227 = arith.constant 227 : index
    %738 = memref.load %arg1[%c227] : memref<303xf32, #tpu.memory_space<smem>>
    %739 = vector.broadcast %738 : f32 to vector<1x16xf32>
    %740 = arith.mulf %739, %480 : vector<1x16xf32>
    %741 = arith.addf %737, %740 : vector<1x16xf32>
    %c235 = arith.constant 235 : index
    %742 = memref.load %arg1[%c235] : memref<303xf32, #tpu.memory_space<smem>>
    %743 = vector.broadcast %742 : f32 to vector<1x16xf32>
    %744 = arith.mulf %743, %481 : vector<1x16xf32>
    %745 = arith.addf %741, %744 : vector<1x16xf32>
    %c244 = arith.constant 244 : index
    %746 = memref.load %arg1[%c244] : memref<303xf32, #tpu.memory_space<smem>>
    %747 = vector.broadcast %746 : f32 to vector<1x16xf32>
    %c116 = arith.constant 116 : index
    %748 = memref.load %arg1[%c116] : memref<303xf32, #tpu.memory_space<smem>>
    %749 = vector.broadcast %748 : f32 to vector<1x16xf32>
    %750 = arith.mulf %749, %466 : vector<1x16xf32>
    %751 = arith.addf %747, %750 : vector<1x16xf32>
    %c124 = arith.constant 124 : index
    %752 = memref.load %arg1[%c124] : memref<303xf32, #tpu.memory_space<smem>>
    %753 = vector.broadcast %752 : f32 to vector<1x16xf32>
    %754 = arith.mulf %753, %467 : vector<1x16xf32>
    %755 = arith.addf %751, %754 : vector<1x16xf32>
    %c132 = arith.constant 132 : index
    %756 = memref.load %arg1[%c132] : memref<303xf32, #tpu.memory_space<smem>>
    %757 = vector.broadcast %756 : f32 to vector<1x16xf32>
    %758 = arith.mulf %757, %468 : vector<1x16xf32>
    %759 = arith.addf %755, %758 : vector<1x16xf32>
    %c140 = arith.constant 140 : index
    %760 = memref.load %arg1[%c140] : memref<303xf32, #tpu.memory_space<smem>>
    %761 = vector.broadcast %760 : f32 to vector<1x16xf32>
    %762 = arith.mulf %761, %469 : vector<1x16xf32>
    %763 = arith.addf %759, %762 : vector<1x16xf32>
    %c148 = arith.constant 148 : index
    %764 = memref.load %arg1[%c148] : memref<303xf32, #tpu.memory_space<smem>>
    %765 = vector.broadcast %764 : f32 to vector<1x16xf32>
    %766 = arith.mulf %765, %470 : vector<1x16xf32>
    %767 = arith.addf %763, %766 : vector<1x16xf32>
    %c156 = arith.constant 156 : index
    %768 = memref.load %arg1[%c156] : memref<303xf32, #tpu.memory_space<smem>>
    %769 = vector.broadcast %768 : f32 to vector<1x16xf32>
    %770 = arith.mulf %769, %471 : vector<1x16xf32>
    %771 = arith.addf %767, %770 : vector<1x16xf32>
    %c164 = arith.constant 164 : index
    %772 = memref.load %arg1[%c164] : memref<303xf32, #tpu.memory_space<smem>>
    %773 = vector.broadcast %772 : f32 to vector<1x16xf32>
    %774 = arith.mulf %773, %472 : vector<1x16xf32>
    %775 = arith.addf %771, %774 : vector<1x16xf32>
    %c172 = arith.constant 172 : index
    %776 = memref.load %arg1[%c172] : memref<303xf32, #tpu.memory_space<smem>>
    %777 = vector.broadcast %776 : f32 to vector<1x16xf32>
    %778 = arith.mulf %777, %473 : vector<1x16xf32>
    %779 = arith.addf %775, %778 : vector<1x16xf32>
    %c180 = arith.constant 180 : index
    %780 = memref.load %arg1[%c180] : memref<303xf32, #tpu.memory_space<smem>>
    %781 = vector.broadcast %780 : f32 to vector<1x16xf32>
    %782 = arith.mulf %781, %474 : vector<1x16xf32>
    %783 = arith.addf %779, %782 : vector<1x16xf32>
    %c188 = arith.constant 188 : index
    %784 = memref.load %arg1[%c188] : memref<303xf32, #tpu.memory_space<smem>>
    %785 = vector.broadcast %784 : f32 to vector<1x16xf32>
    %786 = arith.mulf %785, %475 : vector<1x16xf32>
    %787 = arith.addf %783, %786 : vector<1x16xf32>
    %c196 = arith.constant 196 : index
    %788 = memref.load %arg1[%c196] : memref<303xf32, #tpu.memory_space<smem>>
    %789 = vector.broadcast %788 : f32 to vector<1x16xf32>
    %790 = arith.mulf %789, %476 : vector<1x16xf32>
    %791 = arith.addf %787, %790 : vector<1x16xf32>
    %c204 = arith.constant 204 : index
    %792 = memref.load %arg1[%c204] : memref<303xf32, #tpu.memory_space<smem>>
    %793 = vector.broadcast %792 : f32 to vector<1x16xf32>
    %794 = arith.mulf %793, %477 : vector<1x16xf32>
    %795 = arith.addf %791, %794 : vector<1x16xf32>
    %c212 = arith.constant 212 : index
    %796 = memref.load %arg1[%c212] : memref<303xf32, #tpu.memory_space<smem>>
    %797 = vector.broadcast %796 : f32 to vector<1x16xf32>
    %798 = arith.mulf %797, %478 : vector<1x16xf32>
    %799 = arith.addf %795, %798 : vector<1x16xf32>
    %c220 = arith.constant 220 : index
    %800 = memref.load %arg1[%c220] : memref<303xf32, #tpu.memory_space<smem>>
    %801 = vector.broadcast %800 : f32 to vector<1x16xf32>
    %802 = arith.mulf %801, %479 : vector<1x16xf32>
    %803 = arith.addf %799, %802 : vector<1x16xf32>
    %c228 = arith.constant 228 : index
    %804 = memref.load %arg1[%c228] : memref<303xf32, #tpu.memory_space<smem>>
    %805 = vector.broadcast %804 : f32 to vector<1x16xf32>
    %806 = arith.mulf %805, %480 : vector<1x16xf32>
    %807 = arith.addf %803, %806 : vector<1x16xf32>
    %c236 = arith.constant 236 : index
    %808 = memref.load %arg1[%c236] : memref<303xf32, #tpu.memory_space<smem>>
    %809 = vector.broadcast %808 : f32 to vector<1x16xf32>
    %810 = arith.mulf %809, %481 : vector<1x16xf32>
    %811 = arith.addf %807, %810 : vector<1x16xf32>
    %c245 = arith.constant 245 : index
    %812 = memref.load %arg1[%c245] : memref<303xf32, #tpu.memory_space<smem>>
    %813 = vector.broadcast %812 : f32 to vector<1x16xf32>
    %c117 = arith.constant 117 : index
    %814 = memref.load %arg1[%c117] : memref<303xf32, #tpu.memory_space<smem>>
    %815 = vector.broadcast %814 : f32 to vector<1x16xf32>
    %816 = arith.mulf %815, %466 : vector<1x16xf32>
    %817 = arith.addf %813, %816 : vector<1x16xf32>
    %c125 = arith.constant 125 : index
    %818 = memref.load %arg1[%c125] : memref<303xf32, #tpu.memory_space<smem>>
    %819 = vector.broadcast %818 : f32 to vector<1x16xf32>
    %820 = arith.mulf %819, %467 : vector<1x16xf32>
    %821 = arith.addf %817, %820 : vector<1x16xf32>
    %c133 = arith.constant 133 : index
    %822 = memref.load %arg1[%c133] : memref<303xf32, #tpu.memory_space<smem>>
    %823 = vector.broadcast %822 : f32 to vector<1x16xf32>
    %824 = arith.mulf %823, %468 : vector<1x16xf32>
    %825 = arith.addf %821, %824 : vector<1x16xf32>
    %c141 = arith.constant 141 : index
    %826 = memref.load %arg1[%c141] : memref<303xf32, #tpu.memory_space<smem>>
    %827 = vector.broadcast %826 : f32 to vector<1x16xf32>
    %828 = arith.mulf %827, %469 : vector<1x16xf32>
    %829 = arith.addf %825, %828 : vector<1x16xf32>
    %c149 = arith.constant 149 : index
    %830 = memref.load %arg1[%c149] : memref<303xf32, #tpu.memory_space<smem>>
    %831 = vector.broadcast %830 : f32 to vector<1x16xf32>
    %832 = arith.mulf %831, %470 : vector<1x16xf32>
    %833 = arith.addf %829, %832 : vector<1x16xf32>
    %c157 = arith.constant 157 : index
    %834 = memref.load %arg1[%c157] : memref<303xf32, #tpu.memory_space<smem>>
    %835 = vector.broadcast %834 : f32 to vector<1x16xf32>
    %836 = arith.mulf %835, %471 : vector<1x16xf32>
    %837 = arith.addf %833, %836 : vector<1x16xf32>
    %c165 = arith.constant 165 : index
    %838 = memref.load %arg1[%c165] : memref<303xf32, #tpu.memory_space<smem>>
    %839 = vector.broadcast %838 : f32 to vector<1x16xf32>
    %840 = arith.mulf %839, %472 : vector<1x16xf32>
    %841 = arith.addf %837, %840 : vector<1x16xf32>
    %c173 = arith.constant 173 : index
    %842 = memref.load %arg1[%c173] : memref<303xf32, #tpu.memory_space<smem>>
    %843 = vector.broadcast %842 : f32 to vector<1x16xf32>
    %844 = arith.mulf %843, %473 : vector<1x16xf32>
    %845 = arith.addf %841, %844 : vector<1x16xf32>
    %c181 = arith.constant 181 : index
    %846 = memref.load %arg1[%c181] : memref<303xf32, #tpu.memory_space<smem>>
    %847 = vector.broadcast %846 : f32 to vector<1x16xf32>
    %848 = arith.mulf %847, %474 : vector<1x16xf32>
    %849 = arith.addf %845, %848 : vector<1x16xf32>
    %c189 = arith.constant 189 : index
    %850 = memref.load %arg1[%c189] : memref<303xf32, #tpu.memory_space<smem>>
    %851 = vector.broadcast %850 : f32 to vector<1x16xf32>
    %852 = arith.mulf %851, %475 : vector<1x16xf32>
    %853 = arith.addf %849, %852 : vector<1x16xf32>
    %c197 = arith.constant 197 : index
    %854 = memref.load %arg1[%c197] : memref<303xf32, #tpu.memory_space<smem>>
    %855 = vector.broadcast %854 : f32 to vector<1x16xf32>
    %856 = arith.mulf %855, %476 : vector<1x16xf32>
    %857 = arith.addf %853, %856 : vector<1x16xf32>
    %c205 = arith.constant 205 : index
    %858 = memref.load %arg1[%c205] : memref<303xf32, #tpu.memory_space<smem>>
    %859 = vector.broadcast %858 : f32 to vector<1x16xf32>
    %860 = arith.mulf %859, %477 : vector<1x16xf32>
    %861 = arith.addf %857, %860 : vector<1x16xf32>
    %c213 = arith.constant 213 : index
    %862 = memref.load %arg1[%c213] : memref<303xf32, #tpu.memory_space<smem>>
    %863 = vector.broadcast %862 : f32 to vector<1x16xf32>
    %864 = arith.mulf %863, %478 : vector<1x16xf32>
    %865 = arith.addf %861, %864 : vector<1x16xf32>
    %c221 = arith.constant 221 : index
    %866 = memref.load %arg1[%c221] : memref<303xf32, #tpu.memory_space<smem>>
    %867 = vector.broadcast %866 : f32 to vector<1x16xf32>
    %868 = arith.mulf %867, %479 : vector<1x16xf32>
    %869 = arith.addf %865, %868 : vector<1x16xf32>
    %c229 = arith.constant 229 : index
    %870 = memref.load %arg1[%c229] : memref<303xf32, #tpu.memory_space<smem>>
    %871 = vector.broadcast %870 : f32 to vector<1x16xf32>
    %872 = arith.mulf %871, %480 : vector<1x16xf32>
    %873 = arith.addf %869, %872 : vector<1x16xf32>
    %c237 = arith.constant 237 : index
    %874 = memref.load %arg1[%c237] : memref<303xf32, #tpu.memory_space<smem>>
    %875 = vector.broadcast %874 : f32 to vector<1x16xf32>
    %876 = arith.mulf %875, %481 : vector<1x16xf32>
    %877 = arith.addf %873, %876 : vector<1x16xf32>
    %c246 = arith.constant 246 : index
    %878 = memref.load %arg1[%c246] : memref<303xf32, #tpu.memory_space<smem>>
    %879 = vector.broadcast %878 : f32 to vector<1x16xf32>
    %c118 = arith.constant 118 : index
    %880 = memref.load %arg1[%c118] : memref<303xf32, #tpu.memory_space<smem>>
    %881 = vector.broadcast %880 : f32 to vector<1x16xf32>
    %882 = arith.mulf %881, %466 : vector<1x16xf32>
    %883 = arith.addf %879, %882 : vector<1x16xf32>
    %c126 = arith.constant 126 : index
    %884 = memref.load %arg1[%c126] : memref<303xf32, #tpu.memory_space<smem>>
    %885 = vector.broadcast %884 : f32 to vector<1x16xf32>
    %886 = arith.mulf %885, %467 : vector<1x16xf32>
    %887 = arith.addf %883, %886 : vector<1x16xf32>
    %c134 = arith.constant 134 : index
    %888 = memref.load %arg1[%c134] : memref<303xf32, #tpu.memory_space<smem>>
    %889 = vector.broadcast %888 : f32 to vector<1x16xf32>
    %890 = arith.mulf %889, %468 : vector<1x16xf32>
    %891 = arith.addf %887, %890 : vector<1x16xf32>
    %c142 = arith.constant 142 : index
    %892 = memref.load %arg1[%c142] : memref<303xf32, #tpu.memory_space<smem>>
    %893 = vector.broadcast %892 : f32 to vector<1x16xf32>
    %894 = arith.mulf %893, %469 : vector<1x16xf32>
    %895 = arith.addf %891, %894 : vector<1x16xf32>
    %c150 = arith.constant 150 : index
    %896 = memref.load %arg1[%c150] : memref<303xf32, #tpu.memory_space<smem>>
    %897 = vector.broadcast %896 : f32 to vector<1x16xf32>
    %898 = arith.mulf %897, %470 : vector<1x16xf32>
    %899 = arith.addf %895, %898 : vector<1x16xf32>
    %c158 = arith.constant 158 : index
    %900 = memref.load %arg1[%c158] : memref<303xf32, #tpu.memory_space<smem>>
    %901 = vector.broadcast %900 : f32 to vector<1x16xf32>
    %902 = arith.mulf %901, %471 : vector<1x16xf32>
    %903 = arith.addf %899, %902 : vector<1x16xf32>
    %c166 = arith.constant 166 : index
    %904 = memref.load %arg1[%c166] : memref<303xf32, #tpu.memory_space<smem>>
    %905 = vector.broadcast %904 : f32 to vector<1x16xf32>
    %906 = arith.mulf %905, %472 : vector<1x16xf32>
    %907 = arith.addf %903, %906 : vector<1x16xf32>
    %c174 = arith.constant 174 : index
    %908 = memref.load %arg1[%c174] : memref<303xf32, #tpu.memory_space<smem>>
    %909 = vector.broadcast %908 : f32 to vector<1x16xf32>
    %910 = arith.mulf %909, %473 : vector<1x16xf32>
    %911 = arith.addf %907, %910 : vector<1x16xf32>
    %c182 = arith.constant 182 : index
    %912 = memref.load %arg1[%c182] : memref<303xf32, #tpu.memory_space<smem>>
    %913 = vector.broadcast %912 : f32 to vector<1x16xf32>
    %914 = arith.mulf %913, %474 : vector<1x16xf32>
    %915 = arith.addf %911, %914 : vector<1x16xf32>
    %c190 = arith.constant 190 : index
    %916 = memref.load %arg1[%c190] : memref<303xf32, #tpu.memory_space<smem>>
    %917 = vector.broadcast %916 : f32 to vector<1x16xf32>
    %918 = arith.mulf %917, %475 : vector<1x16xf32>
    %919 = arith.addf %915, %918 : vector<1x16xf32>
    %c198 = arith.constant 198 : index
    %920 = memref.load %arg1[%c198] : memref<303xf32, #tpu.memory_space<smem>>
    %921 = vector.broadcast %920 : f32 to vector<1x16xf32>
    %922 = arith.mulf %921, %476 : vector<1x16xf32>
    %923 = arith.addf %919, %922 : vector<1x16xf32>
    %c206 = arith.constant 206 : index
    %924 = memref.load %arg1[%c206] : memref<303xf32, #tpu.memory_space<smem>>
    %925 = vector.broadcast %924 : f32 to vector<1x16xf32>
    %926 = arith.mulf %925, %477 : vector<1x16xf32>
    %927 = arith.addf %923, %926 : vector<1x16xf32>
    %c214 = arith.constant 214 : index
    %928 = memref.load %arg1[%c214] : memref<303xf32, #tpu.memory_space<smem>>
    %929 = vector.broadcast %928 : f32 to vector<1x16xf32>
    %930 = arith.mulf %929, %478 : vector<1x16xf32>
    %931 = arith.addf %927, %930 : vector<1x16xf32>
    %c222 = arith.constant 222 : index
    %932 = memref.load %arg1[%c222] : memref<303xf32, #tpu.memory_space<smem>>
    %933 = vector.broadcast %932 : f32 to vector<1x16xf32>
    %934 = arith.mulf %933, %479 : vector<1x16xf32>
    %935 = arith.addf %931, %934 : vector<1x16xf32>
    %c230 = arith.constant 230 : index
    %936 = memref.load %arg1[%c230] : memref<303xf32, #tpu.memory_space<smem>>
    %937 = vector.broadcast %936 : f32 to vector<1x16xf32>
    %938 = arith.mulf %937, %480 : vector<1x16xf32>
    %939 = arith.addf %935, %938 : vector<1x16xf32>
    %c238 = arith.constant 238 : index
    %940 = memref.load %arg1[%c238] : memref<303xf32, #tpu.memory_space<smem>>
    %941 = vector.broadcast %940 : f32 to vector<1x16xf32>
    %942 = arith.mulf %941, %481 : vector<1x16xf32>
    %943 = arith.addf %939, %942 : vector<1x16xf32>
    %c247 = arith.constant 247 : index
    %944 = memref.load %arg1[%c247] : memref<303xf32, #tpu.memory_space<smem>>
    %945 = vector.broadcast %944 : f32 to vector<1x16xf32>
    %c119 = arith.constant 119 : index
    %946 = memref.load %arg1[%c119] : memref<303xf32, #tpu.memory_space<smem>>
    %947 = vector.broadcast %946 : f32 to vector<1x16xf32>
    %948 = arith.mulf %947, %466 : vector<1x16xf32>
    %949 = arith.addf %945, %948 : vector<1x16xf32>
    %c127 = arith.constant 127 : index
    %950 = memref.load %arg1[%c127] : memref<303xf32, #tpu.memory_space<smem>>
    %951 = vector.broadcast %950 : f32 to vector<1x16xf32>
    %952 = arith.mulf %951, %467 : vector<1x16xf32>
    %953 = arith.addf %949, %952 : vector<1x16xf32>
    %c135 = arith.constant 135 : index
    %954 = memref.load %arg1[%c135] : memref<303xf32, #tpu.memory_space<smem>>
    %955 = vector.broadcast %954 : f32 to vector<1x16xf32>
    %956 = arith.mulf %955, %468 : vector<1x16xf32>
    %957 = arith.addf %953, %956 : vector<1x16xf32>
    %c143 = arith.constant 143 : index
    %958 = memref.load %arg1[%c143] : memref<303xf32, #tpu.memory_space<smem>>
    %959 = vector.broadcast %958 : f32 to vector<1x16xf32>
    %960 = arith.mulf %959, %469 : vector<1x16xf32>
    %961 = arith.addf %957, %960 : vector<1x16xf32>
    %c151 = arith.constant 151 : index
    %962 = memref.load %arg1[%c151] : memref<303xf32, #tpu.memory_space<smem>>
    %963 = vector.broadcast %962 : f32 to vector<1x16xf32>
    %964 = arith.mulf %963, %470 : vector<1x16xf32>
    %965 = arith.addf %961, %964 : vector<1x16xf32>
    %c159 = arith.constant 159 : index
    %966 = memref.load %arg1[%c159] : memref<303xf32, #tpu.memory_space<smem>>
    %967 = vector.broadcast %966 : f32 to vector<1x16xf32>
    %968 = arith.mulf %967, %471 : vector<1x16xf32>
    %969 = arith.addf %965, %968 : vector<1x16xf32>
    %c167 = arith.constant 167 : index
    %970 = memref.load %arg1[%c167] : memref<303xf32, #tpu.memory_space<smem>>
    %971 = vector.broadcast %970 : f32 to vector<1x16xf32>
    %972 = arith.mulf %971, %472 : vector<1x16xf32>
    %973 = arith.addf %969, %972 : vector<1x16xf32>
    %c175 = arith.constant 175 : index
    %974 = memref.load %arg1[%c175] : memref<303xf32, #tpu.memory_space<smem>>
    %975 = vector.broadcast %974 : f32 to vector<1x16xf32>
    %976 = arith.mulf %975, %473 : vector<1x16xf32>
    %977 = arith.addf %973, %976 : vector<1x16xf32>
    %c183 = arith.constant 183 : index
    %978 = memref.load %arg1[%c183] : memref<303xf32, #tpu.memory_space<smem>>
    %979 = vector.broadcast %978 : f32 to vector<1x16xf32>
    %980 = arith.mulf %979, %474 : vector<1x16xf32>
    %981 = arith.addf %977, %980 : vector<1x16xf32>
    %c191 = arith.constant 191 : index
    %982 = memref.load %arg1[%c191] : memref<303xf32, #tpu.memory_space<smem>>
    %983 = vector.broadcast %982 : f32 to vector<1x16xf32>
    %984 = arith.mulf %983, %475 : vector<1x16xf32>
    %985 = arith.addf %981, %984 : vector<1x16xf32>
    %c199 = arith.constant 199 : index
    %986 = memref.load %arg1[%c199] : memref<303xf32, #tpu.memory_space<smem>>
    %987 = vector.broadcast %986 : f32 to vector<1x16xf32>
    %988 = arith.mulf %987, %476 : vector<1x16xf32>
    %989 = arith.addf %985, %988 : vector<1x16xf32>
    %c207 = arith.constant 207 : index
    %990 = memref.load %arg1[%c207] : memref<303xf32, #tpu.memory_space<smem>>
    %991 = vector.broadcast %990 : f32 to vector<1x16xf32>
    %992 = arith.mulf %991, %477 : vector<1x16xf32>
    %993 = arith.addf %989, %992 : vector<1x16xf32>
    %c215 = arith.constant 215 : index
    %994 = memref.load %arg1[%c215] : memref<303xf32, #tpu.memory_space<smem>>
    %995 = vector.broadcast %994 : f32 to vector<1x16xf32>
    %996 = arith.mulf %995, %478 : vector<1x16xf32>
    %997 = arith.addf %993, %996 : vector<1x16xf32>
    %c223 = arith.constant 223 : index
    %998 = memref.load %arg1[%c223] : memref<303xf32, #tpu.memory_space<smem>>
    %999 = vector.broadcast %998 : f32 to vector<1x16xf32>
    %1000 = arith.mulf %999, %479 : vector<1x16xf32>
    %1001 = arith.addf %997, %1000 : vector<1x16xf32>
    %c231 = arith.constant 231 : index
    %1002 = memref.load %arg1[%c231] : memref<303xf32, #tpu.memory_space<smem>>
    %1003 = vector.broadcast %1002 : f32 to vector<1x16xf32>
    %1004 = arith.mulf %1003, %480 : vector<1x16xf32>
    %1005 = arith.addf %1001, %1004 : vector<1x16xf32>
    %c239 = arith.constant 239 : index
    %1006 = memref.load %arg1[%c239] : memref<303xf32, #tpu.memory_space<smem>>
    %1007 = vector.broadcast %1006 : f32 to vector<1x16xf32>
    %1008 = arith.mulf %1007, %481 : vector<1x16xf32>
    %1009 = arith.addf %1005, %1008 : vector<1x16xf32>
    %1010 = tpu.concatenate %547, %613, %679, %745, %811, %877, %943, %1009 in 0 : vector<1x16xf32>, vector<1x16xf32>, vector<1x16xf32>, vector<1x16xf32>, vector<1x16xf32>, vector<1x16xf32>, vector<1x16xf32>, vector<1x16xf32> -> vector<8x16xf32>
    %1011 = math.tanh %1010 : vector<8x16xf32>
    %1012 = vector.extract_strided_slice %1011 {offsets = [0, 0], sizes = [1, 16], strides = [1, 1]} : vector<8x16xf32> to vector<1x16xf32>
    %1013 = vector.extract_strided_slice %1011 {offsets = [1, 0], sizes = [1, 16], strides = [1, 1]} : vector<8x16xf32> to vector<1x16xf32>
    %1014 = vector.extract_strided_slice %1011 {offsets = [2, 0], sizes = [1, 16], strides = [1, 1]} : vector<8x16xf32> to vector<1x16xf32>
    %1015 = vector.extract_strided_slice %1011 {offsets = [3, 0], sizes = [1, 16], strides = [1, 1]} : vector<8x16xf32> to vector<1x16xf32>
    %1016 = vector.extract_strided_slice %1011 {offsets = [4, 0], sizes = [1, 16], strides = [1, 1]} : vector<8x16xf32> to vector<1x16xf32>
    %1017 = vector.extract_strided_slice %1011 {offsets = [5, 0], sizes = [1, 16], strides = [1, 1]} : vector<8x16xf32> to vector<1x16xf32>
    %1018 = vector.extract_strided_slice %1011 {offsets = [6, 0], sizes = [1, 16], strides = [1, 1]} : vector<8x16xf32> to vector<1x16xf32>
    %1019 = vector.extract_strided_slice %1011 {offsets = [7, 0], sizes = [1, 16], strides = [1, 1]} : vector<8x16xf32> to vector<1x16xf32>
    %c280 = arith.constant 280 : index
    %1020 = memref.load %arg1[%c280] : memref<303xf32, #tpu.memory_space<smem>>
    %1021 = vector.broadcast %1020 : f32 to vector<1x16xf32>
    %c248 = arith.constant 248 : index
    %1022 = memref.load %arg1[%c248] : memref<303xf32, #tpu.memory_space<smem>>
    %1023 = vector.broadcast %1022 : f32 to vector<1x16xf32>
    %1024 = arith.mulf %1023, %1012 : vector<1x16xf32>
    %1025 = arith.addf %1021, %1024 : vector<1x16xf32>
    %c252 = arith.constant 252 : index
    %1026 = memref.load %arg1[%c252] : memref<303xf32, #tpu.memory_space<smem>>
    %1027 = vector.broadcast %1026 : f32 to vector<1x16xf32>
    %1028 = arith.mulf %1027, %1013 : vector<1x16xf32>
    %1029 = arith.addf %1025, %1028 : vector<1x16xf32>
    %c256 = arith.constant 256 : index
    %1030 = memref.load %arg1[%c256] : memref<303xf32, #tpu.memory_space<smem>>
    %1031 = vector.broadcast %1030 : f32 to vector<1x16xf32>
    %1032 = arith.mulf %1031, %1014 : vector<1x16xf32>
    %1033 = arith.addf %1029, %1032 : vector<1x16xf32>
    %c260 = arith.constant 260 : index
    %1034 = memref.load %arg1[%c260] : memref<303xf32, #tpu.memory_space<smem>>
    %1035 = vector.broadcast %1034 : f32 to vector<1x16xf32>
    %1036 = arith.mulf %1035, %1015 : vector<1x16xf32>
    %1037 = arith.addf %1033, %1036 : vector<1x16xf32>
    %c264 = arith.constant 264 : index
    %1038 = memref.load %arg1[%c264] : memref<303xf32, #tpu.memory_space<smem>>
    %1039 = vector.broadcast %1038 : f32 to vector<1x16xf32>
    %1040 = arith.mulf %1039, %1016 : vector<1x16xf32>
    %1041 = arith.addf %1037, %1040 : vector<1x16xf32>
    %c268 = arith.constant 268 : index
    %1042 = memref.load %arg1[%c268] : memref<303xf32, #tpu.memory_space<smem>>
    %1043 = vector.broadcast %1042 : f32 to vector<1x16xf32>
    %1044 = arith.mulf %1043, %1017 : vector<1x16xf32>
    %1045 = arith.addf %1041, %1044 : vector<1x16xf32>
    %c272 = arith.constant 272 : index
    %1046 = memref.load %arg1[%c272] : memref<303xf32, #tpu.memory_space<smem>>
    %1047 = vector.broadcast %1046 : f32 to vector<1x16xf32>
    %1048 = arith.mulf %1047, %1018 : vector<1x16xf32>
    %1049 = arith.addf %1045, %1048 : vector<1x16xf32>
    %c276 = arith.constant 276 : index
    %1050 = memref.load %arg1[%c276] : memref<303xf32, #tpu.memory_space<smem>>
    %1051 = vector.broadcast %1050 : f32 to vector<1x16xf32>
    %1052 = arith.mulf %1051, %1019 : vector<1x16xf32>
    %1053 = arith.addf %1049, %1052 : vector<1x16xf32>
    %c281 = arith.constant 281 : index
    %1054 = memref.load %arg1[%c281] : memref<303xf32, #tpu.memory_space<smem>>
    %1055 = vector.broadcast %1054 : f32 to vector<1x16xf32>
    %c249 = arith.constant 249 : index
    %1056 = memref.load %arg1[%c249] : memref<303xf32, #tpu.memory_space<smem>>
    %1057 = vector.broadcast %1056 : f32 to vector<1x16xf32>
    %1058 = arith.mulf %1057, %1012 : vector<1x16xf32>
    %1059 = arith.addf %1055, %1058 : vector<1x16xf32>
    %c253 = arith.constant 253 : index
    %1060 = memref.load %arg1[%c253] : memref<303xf32, #tpu.memory_space<smem>>
    %1061 = vector.broadcast %1060 : f32 to vector<1x16xf32>
    %1062 = arith.mulf %1061, %1013 : vector<1x16xf32>
    %1063 = arith.addf %1059, %1062 : vector<1x16xf32>
    %c257 = arith.constant 257 : index
    %1064 = memref.load %arg1[%c257] : memref<303xf32, #tpu.memory_space<smem>>
    %1065 = vector.broadcast %1064 : f32 to vector<1x16xf32>
    %1066 = arith.mulf %1065, %1014 : vector<1x16xf32>
    %1067 = arith.addf %1063, %1066 : vector<1x16xf32>
    %c261 = arith.constant 261 : index
    %1068 = memref.load %arg1[%c261] : memref<303xf32, #tpu.memory_space<smem>>
    %1069 = vector.broadcast %1068 : f32 to vector<1x16xf32>
    %1070 = arith.mulf %1069, %1015 : vector<1x16xf32>
    %1071 = arith.addf %1067, %1070 : vector<1x16xf32>
    %c265 = arith.constant 265 : index
    %1072 = memref.load %arg1[%c265] : memref<303xf32, #tpu.memory_space<smem>>
    %1073 = vector.broadcast %1072 : f32 to vector<1x16xf32>
    %1074 = arith.mulf %1073, %1016 : vector<1x16xf32>
    %1075 = arith.addf %1071, %1074 : vector<1x16xf32>
    %c269 = arith.constant 269 : index
    %1076 = memref.load %arg1[%c269] : memref<303xf32, #tpu.memory_space<smem>>
    %1077 = vector.broadcast %1076 : f32 to vector<1x16xf32>
    %1078 = arith.mulf %1077, %1017 : vector<1x16xf32>
    %1079 = arith.addf %1075, %1078 : vector<1x16xf32>
    %c273 = arith.constant 273 : index
    %1080 = memref.load %arg1[%c273] : memref<303xf32, #tpu.memory_space<smem>>
    %1081 = vector.broadcast %1080 : f32 to vector<1x16xf32>
    %1082 = arith.mulf %1081, %1018 : vector<1x16xf32>
    %1083 = arith.addf %1079, %1082 : vector<1x16xf32>
    %c277 = arith.constant 277 : index
    %1084 = memref.load %arg1[%c277] : memref<303xf32, #tpu.memory_space<smem>>
    %1085 = vector.broadcast %1084 : f32 to vector<1x16xf32>
    %1086 = arith.mulf %1085, %1019 : vector<1x16xf32>
    %1087 = arith.addf %1083, %1086 : vector<1x16xf32>
    %c282 = arith.constant 282 : index
    %1088 = memref.load %arg1[%c282] : memref<303xf32, #tpu.memory_space<smem>>
    %1089 = vector.broadcast %1088 : f32 to vector<1x16xf32>
    %c250 = arith.constant 250 : index
    %1090 = memref.load %arg1[%c250] : memref<303xf32, #tpu.memory_space<smem>>
    %1091 = vector.broadcast %1090 : f32 to vector<1x16xf32>
    %1092 = arith.mulf %1091, %1012 : vector<1x16xf32>
    %1093 = arith.addf %1089, %1092 : vector<1x16xf32>
    %c254 = arith.constant 254 : index
    %1094 = memref.load %arg1[%c254] : memref<303xf32, #tpu.memory_space<smem>>
    %1095 = vector.broadcast %1094 : f32 to vector<1x16xf32>
    %1096 = arith.mulf %1095, %1013 : vector<1x16xf32>
    %1097 = arith.addf %1093, %1096 : vector<1x16xf32>
    %c258 = arith.constant 258 : index
    %1098 = memref.load %arg1[%c258] : memref<303xf32, #tpu.memory_space<smem>>
    %1099 = vector.broadcast %1098 : f32 to vector<1x16xf32>
    %1100 = arith.mulf %1099, %1014 : vector<1x16xf32>
    %1101 = arith.addf %1097, %1100 : vector<1x16xf32>
    %c262 = arith.constant 262 : index
    %1102 = memref.load %arg1[%c262] : memref<303xf32, #tpu.memory_space<smem>>
    %1103 = vector.broadcast %1102 : f32 to vector<1x16xf32>
    %1104 = arith.mulf %1103, %1015 : vector<1x16xf32>
    %1105 = arith.addf %1101, %1104 : vector<1x16xf32>
    %c266 = arith.constant 266 : index
    %1106 = memref.load %arg1[%c266] : memref<303xf32, #tpu.memory_space<smem>>
    %1107 = vector.broadcast %1106 : f32 to vector<1x16xf32>
    %1108 = arith.mulf %1107, %1016 : vector<1x16xf32>
    %1109 = arith.addf %1105, %1108 : vector<1x16xf32>
    %c270 = arith.constant 270 : index
    %1110 = memref.load %arg1[%c270] : memref<303xf32, #tpu.memory_space<smem>>
    %1111 = vector.broadcast %1110 : f32 to vector<1x16xf32>
    %1112 = arith.mulf %1111, %1017 : vector<1x16xf32>
    %1113 = arith.addf %1109, %1112 : vector<1x16xf32>
    %c274 = arith.constant 274 : index
    %1114 = memref.load %arg1[%c274] : memref<303xf32, #tpu.memory_space<smem>>
    %1115 = vector.broadcast %1114 : f32 to vector<1x16xf32>
    %1116 = arith.mulf %1115, %1018 : vector<1x16xf32>
    %1117 = arith.addf %1113, %1116 : vector<1x16xf32>
    %c278 = arith.constant 278 : index
    %1118 = memref.load %arg1[%c278] : memref<303xf32, #tpu.memory_space<smem>>
    %1119 = vector.broadcast %1118 : f32 to vector<1x16xf32>
    %1120 = arith.mulf %1119, %1019 : vector<1x16xf32>
    %1121 = arith.addf %1117, %1120 : vector<1x16xf32>
    %c283 = arith.constant 283 : index
    %1122 = memref.load %arg1[%c283] : memref<303xf32, #tpu.memory_space<smem>>
    %1123 = vector.broadcast %1122 : f32 to vector<1x16xf32>
    %c251 = arith.constant 251 : index
    %1124 = memref.load %arg1[%c251] : memref<303xf32, #tpu.memory_space<smem>>
    %1125 = vector.broadcast %1124 : f32 to vector<1x16xf32>
    %1126 = arith.mulf %1125, %1012 : vector<1x16xf32>
    %1127 = arith.addf %1123, %1126 : vector<1x16xf32>
    %c255 = arith.constant 255 : index
    %1128 = memref.load %arg1[%c255] : memref<303xf32, #tpu.memory_space<smem>>
    %1129 = vector.broadcast %1128 : f32 to vector<1x16xf32>
    %1130 = arith.mulf %1129, %1013 : vector<1x16xf32>
    %1131 = arith.addf %1127, %1130 : vector<1x16xf32>
    %c259 = arith.constant 259 : index
    %1132 = memref.load %arg1[%c259] : memref<303xf32, #tpu.memory_space<smem>>
    %1133 = vector.broadcast %1132 : f32 to vector<1x16xf32>
    %1134 = arith.mulf %1133, %1014 : vector<1x16xf32>
    %1135 = arith.addf %1131, %1134 : vector<1x16xf32>
    %c263 = arith.constant 263 : index
    %1136 = memref.load %arg1[%c263] : memref<303xf32, #tpu.memory_space<smem>>
    %1137 = vector.broadcast %1136 : f32 to vector<1x16xf32>
    %1138 = arith.mulf %1137, %1015 : vector<1x16xf32>
    %1139 = arith.addf %1135, %1138 : vector<1x16xf32>
    %c267 = arith.constant 267 : index
    %1140 = memref.load %arg1[%c267] : memref<303xf32, #tpu.memory_space<smem>>
    %1141 = vector.broadcast %1140 : f32 to vector<1x16xf32>
    %1142 = arith.mulf %1141, %1016 : vector<1x16xf32>
    %1143 = arith.addf %1139, %1142 : vector<1x16xf32>
    %c271 = arith.constant 271 : index
    %1144 = memref.load %arg1[%c271] : memref<303xf32, #tpu.memory_space<smem>>
    %1145 = vector.broadcast %1144 : f32 to vector<1x16xf32>
    %1146 = arith.mulf %1145, %1017 : vector<1x16xf32>
    %1147 = arith.addf %1143, %1146 : vector<1x16xf32>
    %c275 = arith.constant 275 : index
    %1148 = memref.load %arg1[%c275] : memref<303xf32, #tpu.memory_space<smem>>
    %1149 = vector.broadcast %1148 : f32 to vector<1x16xf32>
    %1150 = arith.mulf %1149, %1018 : vector<1x16xf32>
    %1151 = arith.addf %1147, %1150 : vector<1x16xf32>
    %c279 = arith.constant 279 : index
    %1152 = memref.load %arg1[%c279] : memref<303xf32, #tpu.memory_space<smem>>
    %1153 = vector.broadcast %1152 : f32 to vector<1x16xf32>
    %1154 = arith.mulf %1153, %1019 : vector<1x16xf32>
    %1155 = arith.addf %1151, %1154 : vector<1x16xf32>
    %1156 = tpu.concatenate %1053, %1087, %1121, %1155 in 0 : vector<1x16xf32>, vector<1x16xf32>, vector<1x16xf32>, vector<1x16xf32> -> vector<4x16xf32>
    %1157 = math.tanh %1156 : vector<4x16xf32>
    %1158 = vector.extract_strided_slice %1157 {offsets = [0, 0], sizes = [1, 16], strides = [1, 1]} : vector<4x16xf32> to vector<1x16xf32>
    %1159 = vector.extract_strided_slice %1157 {offsets = [1, 0], sizes = [1, 16], strides = [1, 1]} : vector<4x16xf32> to vector<1x16xf32>
    %1160 = vector.extract_strided_slice %1157 {offsets = [2, 0], sizes = [1, 16], strides = [1, 1]} : vector<4x16xf32> to vector<1x16xf32>
    %1161 = vector.extract_strided_slice %1157 {offsets = [3, 0], sizes = [1, 16], strides = [1, 1]} : vector<4x16xf32> to vector<1x16xf32>
    %c292 = arith.constant 292 : index
    %1162 = memref.load %arg1[%c292] : memref<303xf32, #tpu.memory_space<smem>>
    %1163 = vector.broadcast %1162 : f32 to vector<1x16xf32>
    %c284 = arith.constant 284 : index
    %1164 = memref.load %arg1[%c284] : memref<303xf32, #tpu.memory_space<smem>>
    %1165 = vector.broadcast %1164 : f32 to vector<1x16xf32>
    %1166 = arith.mulf %1165, %1158 : vector<1x16xf32>
    %1167 = arith.addf %1163, %1166 : vector<1x16xf32>
    %c286 = arith.constant 286 : index
    %1168 = memref.load %arg1[%c286] : memref<303xf32, #tpu.memory_space<smem>>
    %1169 = vector.broadcast %1168 : f32 to vector<1x16xf32>
    %1170 = arith.mulf %1169, %1159 : vector<1x16xf32>
    %1171 = arith.addf %1167, %1170 : vector<1x16xf32>
    %c288 = arith.constant 288 : index
    %1172 = memref.load %arg1[%c288] : memref<303xf32, #tpu.memory_space<smem>>
    %1173 = vector.broadcast %1172 : f32 to vector<1x16xf32>
    %1174 = arith.mulf %1173, %1160 : vector<1x16xf32>
    %1175 = arith.addf %1171, %1174 : vector<1x16xf32>
    %c290 = arith.constant 290 : index
    %1176 = memref.load %arg1[%c290] : memref<303xf32, #tpu.memory_space<smem>>
    %1177 = vector.broadcast %1176 : f32 to vector<1x16xf32>
    %1178 = arith.mulf %1177, %1161 : vector<1x16xf32>
    %1179 = arith.addf %1175, %1178 : vector<1x16xf32>
    %c293 = arith.constant 293 : index
    %1180 = memref.load %arg1[%c293] : memref<303xf32, #tpu.memory_space<smem>>
    %1181 = vector.broadcast %1180 : f32 to vector<1x16xf32>
    %c285 = arith.constant 285 : index
    %1182 = memref.load %arg1[%c285] : memref<303xf32, #tpu.memory_space<smem>>
    %1183 = vector.broadcast %1182 : f32 to vector<1x16xf32>
    %1184 = arith.mulf %1183, %1158 : vector<1x16xf32>
    %1185 = arith.addf %1181, %1184 : vector<1x16xf32>
    %c287 = arith.constant 287 : index
    %1186 = memref.load %arg1[%c287] : memref<303xf32, #tpu.memory_space<smem>>
    %1187 = vector.broadcast %1186 : f32 to vector<1x16xf32>
    %1188 = arith.mulf %1187, %1159 : vector<1x16xf32>
    %1189 = arith.addf %1185, %1188 : vector<1x16xf32>
    %c289 = arith.constant 289 : index
    %1190 = memref.load %arg1[%c289] : memref<303xf32, #tpu.memory_space<smem>>
    %1191 = vector.broadcast %1190 : f32 to vector<1x16xf32>
    %1192 = arith.mulf %1191, %1160 : vector<1x16xf32>
    %1193 = arith.addf %1189, %1192 : vector<1x16xf32>
    %c291 = arith.constant 291 : index
    %1194 = memref.load %arg1[%c291] : memref<303xf32, #tpu.memory_space<smem>>
    %1195 = vector.broadcast %1194 : f32 to vector<1x16xf32>
    %1196 = arith.mulf %1195, %1161 : vector<1x16xf32>
    %1197 = arith.addf %1193, %1196 : vector<1x16xf32>
    %1198 = tpu.concatenate %1179, %1197 in 0 : vector<1x16xf32>, vector<1x16xf32> -> vector<2x16xf32>
    %1199 = math.tanh %1198 : vector<2x16xf32>
    %1200 = vector.extract_strided_slice %1199 {offsets = [0, 0], sizes = [1, 16], strides = [1, 1]} : vector<2x16xf32> to vector<1x16xf32>
    %1201 = vector.extract_strided_slice %1199 {offsets = [1, 0], sizes = [1, 16], strides = [1, 1]} : vector<2x16xf32> to vector<1x16xf32>
    %c296 = arith.constant 296 : index
    %1202 = memref.load %arg1[%c296] : memref<303xf32, #tpu.memory_space<smem>>
    %1203 = vector.broadcast %1202 : f32 to vector<1x16xf32>
    %c294 = arith.constant 294 : index
    %1204 = memref.load %arg1[%c294] : memref<303xf32, #tpu.memory_space<smem>>
    %1205 = vector.broadcast %1204 : f32 to vector<1x16xf32>
    %1206 = arith.mulf %1205, %1200 : vector<1x16xf32>
    %1207 = arith.addf %1203, %1206 : vector<1x16xf32>
    %c295 = arith.constant 295 : index
    %1208 = memref.load %arg1[%c295] : memref<303xf32, #tpu.memory_space<smem>>
    %1209 = vector.broadcast %1208 : f32 to vector<1x16xf32>
    %1210 = arith.mulf %1209, %1201 : vector<1x16xf32>
    %1211 = arith.addf %1207, %1210 : vector<1x16xf32>
    %1212 = math.tanh %1211 : vector<1x16xf32>
    %c298 = arith.constant 298 : index
    %1213 = memref.load %arg1[%c298] : memref<303xf32, #tpu.memory_space<smem>>
    %1214 = vector.broadcast %1213 : f32 to vector<1x16xf32>
    %c297 = arith.constant 297 : index
    %1215 = memref.load %arg1[%c297] : memref<303xf32, #tpu.memory_space<smem>>
    %1216 = vector.broadcast %1215 : f32 to vector<1x16xf32>
    %1217 = arith.mulf %1216, %1212 : vector<1x16xf32>
    %1218 = arith.addf %1214, %1217 : vector<1x16xf32>
    %1219 = vector.extract_strided_slice %1218 {offsets = [0, 0], sizes = [1, 2], strides = [1, 1]} : vector<1x16xf32> to vector<1x2xf32>
    %1220 = vector.extract_strided_slice %1218 {offsets = [0, 2], sizes = [1, 2], strides = [1, 1]} : vector<1x16xf32> to vector<1x2xf32>
    %1221 = arith.addf %1219, %1220 : vector<1x2xf32>
    %1222 = vector.extract_strided_slice %1218 {offsets = [0, 4], sizes = [1, 2], strides = [1, 1]} : vector<1x16xf32> to vector<1x2xf32>
    %1223 = arith.addf %1221, %1222 : vector<1x2xf32>
    %1224 = vector.extract_strided_slice %1218 {offsets = [0, 6], sizes = [1, 2], strides = [1, 1]} : vector<1x16xf32> to vector<1x2xf32>
    %1225 = arith.addf %1223, %1224 : vector<1x2xf32>
    %1226 = vector.extract_strided_slice %1218 {offsets = [0, 8], sizes = [1, 2], strides = [1, 1]} : vector<1x16xf32> to vector<1x2xf32>
    %1227 = arith.addf %1225, %1226 : vector<1x2xf32>
    %1228 = vector.extract_strided_slice %1218 {offsets = [0, 10], sizes = [1, 2], strides = [1, 1]} : vector<1x16xf32> to vector<1x2xf32>
    %1229 = arith.addf %1227, %1228 : vector<1x2xf32>
    %1230 = vector.extract_strided_slice %1218 {offsets = [0, 12], sizes = [1, 2], strides = [1, 1]} : vector<1x16xf32> to vector<1x2xf32>
    %1231 = arith.addf %1229, %1230 : vector<1x2xf32>
    %1232 = vector.extract_strided_slice %1218 {offsets = [0, 14], sizes = [1, 2], strides = [1, 1]} : vector<1x16xf32> to vector<1x2xf32>
    %1233 = arith.addf %1231, %1232 : vector<1x2xf32>
    %c0_10 = arith.constant 0 : index
    %c0_11 = arith.constant 0 : index
    %1234 = vector.load %arg3[%c0_10, %c0_11] : memref<1x2xf32, #tpu.memory_space<vmem>>, vector<1x2xf32>
    tpu.vector_store %arg3[%c0_10, %c0_11], %1233 {strides = array<i32>} : memref<1x2xf32, #tpu.memory_space<vmem>>, vector<1x2xf32>,
    return
  }
  func.func @transform_0(%arg0: i32, %arg1: memref<303xf32, #tpu.memory_space<smem>>) -> (i32, i32) {
    %c0_i32 = arith.constant 0 : i32
    %c0_i32_0 = arith.constant 0 : i32
    %c0_i32_1 = arith.constant 0 : i32
    return %c0_i32, %c0_i32_0 : i32, i32
  }
  func.func @transform_1(%arg0: i32, %arg1: memref<303xf32, #tpu.memory_space<smem>>) -> (i32, i32) {
    %c0_i32 = arith.constant 0 : i32
    %c0_i32_0 = arith.constant 0 : i32
    %c0_i32_1 = arith.constant 0 : i32
    return %c0_i32, %c0_i32_0 : i32, i32
  }
}

</mosaic_0001>

<llo_original>
// kernel: forward.1
$region0: #{forward.1}
  #allocation0 [shape = 'u32[]', space=smem, size = 0x4, offset = 0x4, fixed_abs, tag = 'smem constant byte address 0x4 - core index']
  #allocation1 [shape = 'u32[72,128]{1,0:T(1,128)}', space=vmem, size = 0x9000, scoped, tag = 'internal scratch']
  #allocation2 [shape = 's32[1]{0}', space=sflag, size = 0x4, scoped, tag = 'scoped memory for forward.1']
  #allocation3 [shape = 'u8[1536]{0}', space=smem, size = 0x600, scoped, tag = 'prefetched SMEM operand 0']
  %s0 = inlined_call_operand.vmem [shape: f32[303], index: 0, kind: input, shape index: {}]
  %s1 = inlined_call_operand.vmem [shape: f32[3,64], index: 1, kind: input, shape index: {}]
  %s2 = inlined_call_operand.hbm [shape: f32[1,2], index: 2, kind: output, shape index: {}]
  %s3 = sld [smem:[#allocation0]]
  $region14: #{forward.1} parent=0
    _
  %s5 = ssub.s32 1, %s3
  %s6 = scalar_select 0, %s5, %s3
  %s8 = sshll.u32 %s0, 4
  %s9 = int_to_ptr.vmem [resolvable:$true] %s8
  %11 = dma.vmem_to_smem %s9, 48, [#allocation3], [#allocation2]
  %13 = dma.done [#allocation2], 48
  %14 = sfence
  $region1: #{forward.1} parent=0
    #allocation4 [shape = 'u8[512]{0}', space=vmem, size = 0x400, scoped, tag = 'output window, operand 0, single buffered']
    #allocation5 [shape = 's32[1]{0}', space=sflag, size = 0x4, scoped, tag = 'scoped memory for forward.1']
    %15 = vsyncpa [#allocation5], 0
    // Predicated region
    $region2: #{forward.1} parent=1 // pred_check
      _
    $region3: #{forward.1} parent=1 // pred_check_branch
      %17 = sbr.rel (0) target = $region5
    $region4: #{forward.1} parent=1 // pred_region
      _
    $region5: #{forward.1} parent=1 // pred_fallthru
      _
    %s18 = sld [smem:[#allocation3 + $0x12b]]
    %s19 = sld [smem:[#allocation3 + $0x12c]]
    %s20 = sld [smem:[#allocation3 + $0x12d]]
    %s21 = sld [smem:[#allocation3 + $0x12e]]
    %v22 = vld [vmem:[%s1] sm:$0x1]
    %v23 = vld [vmem:[%s1 + $0x1] sm:$0x1]
    %v24 = vld [vmem:[%s1 + $0x2] sm:$0x1]
    %v25 = vsub.f32 %v23, %v22
    %v26 = vrcp.pop 10.0
    %v27 = vmul.f32 10.0, %v26
    %v28 = vsub.f32 1.0, %v27
    %v29 = vmul.f32 %v26, %v28
    %v30 = vadd.f32 %v26, %v29
    %vm31 = vweird.f32 %v26
    %v32 = vsel %vm31, %v26, %v30
    %v33 = vmul.f32 %v25, %v32
    %v34 = vadd.f32 %v33, 0.5
    %v35 = vfloor.f32 %v34
    %v36 = vmul.f32 %v35, 10.0
    %v37 = vsub.f32 %v25, %v36
    %v38 = vand.u32 2147483647, %v37
    %v39 = vmax.f32 %v38, 1e-12
    %v40 = vrcp.pop %v39
    %v41 = vmul.f32 %v39, %v40
    %v42 = vsub.f32 1.0, %v41
    %v43 = vmul.f32 %v40, %v42
    %v44 = vadd.f32 %v40, %v43
    %vm45 = vweird.f32 %v39
    %vm46 = vweird.f32 %v40
    %vm47 = vmor %vm45, %vm46
    %v48 = vsel %vm47, %v40, %v44
    %v49 = vand.u32 2147483647, %v39
    %vm50 = vcmp.eq.f32.partialorder %v49, 8.507059e+37
    %v51 = vand.u32 %v39, 2147483648
    %v52 = vor.u32 1.1754944e-38, %v51
    %v53 = vsel %vm50, %v52, %v48
    %v54 = vmul.f32 1.0, %v53
    %v55 = vstv %s18
    %v56 = vsub.f32 %v38, %v55
    %v57 = vstv %s20
    %v58 = vmul.f32 %v56, %v57
    %v59 = vmul.f32 %v58, %v24
    %v60 = vstv %s19
    %v61 = vsub.f32 %v54, %v60
    %v62 = vstv %s21
    %v63 = vmul.f32 %v61, %v62
    %v64 = vmul.f32 %v63, %v24
    %s65 = sld [smem:[#allocation3 + $0x2]]
    %v66 = vstv %s65
    %s67 = sld [smem:[#allocation3]]
    %v68 = vstv %s67
    %v69 = vmul.f32 %v68, %v59
    %v70 = vadd.f32 %v66, %v69
    %s71 = sld [smem:[#allocation3 + $0x3]]
    %v72 = vstv %s71
    %s73 = sld [smem:[#allocation3 + $0x1]]
    %v74 = vstv %s73
    %v75 = vmul.f32 %v74, %v59
    %v76 = vadd.f32 %v72, %v75
    %v78 = vrot.slane %v76, 7
    %vm80 = vcmask 1040384
    %v81 = vsel %vm80, %v70, %v78
    %v82 = vtanh.pop %v81
    %s83 = sld [smem:[#allocation3 + $0xc]]
    %v84 = vstv %s83
    %s85 = sld [smem:[#allocation3 + $0x4]]
    %v86 = vstv %s85
    %v87 = vmul.f32 %v86, %v82
    %v88 = vadd.f32 %v84, %v87
    %s89 = sld [smem:[#allocation3 + $0x8]]
    %v90 = vstv %s89
    %v91 = vmul.f32 %v90, %v82
    %v93 = vrot.slane %v91, 1
    %v95 = vadd.f32 %v88, %v93
    %s96 = sld [smem:[#allocation3 + $0xd]]
    %v97 = vstv %s96
    %s98 = sld [smem:[#allocation3 + $0x5]]
    %v99 = vstv %s98
    %v100 = vmul.f32 %v99, %v82
    %v101 = vadd.f32 %v97, %v100
    %s102 = sld [smem:[#allocation3 + $0x9]]
    %v103 = vstv %s102
    %v104 = vmul.f32 %v103, %v82
    %v106 = vrot.slane %v104, 1
    %v108 = vadd.f32 %v101, %v106
    %s109 = sld [smem:[#allocation3 + $0xe]]
    %v110 = vstv %s109
    %s111 = sld [smem:[#allocation3 + $0x6]]
    %v112 = vstv %s111
    %v113 = vmul.f32 %v112, %v82
    %v114 = vadd.f32 %v110, %v113
    %s115 = sld [smem:[#allocation3 + $0xa]]
    %v116 = vstv %s115
    %v117 = vmul.f32 %v116, %v82
    %v119 = vrot.slane %v117, 1
    %v121 = vadd.f32 %v114, %v119
    %s122 = sld [smem:[#allocation3 + $0xf]]
    %v123 = vstv %s122
    %s124 = sld [smem:[#allocation3 + $0x7]]
    %v125 = vstv %s124
    %v126 = vmul.f32 %v125, %v82
    %v127 = vadd.f32 %v123, %v126
    %s128 = sld [smem:[#allocation3 + $0xb]]
    %v129 = vstv %s128
    %v130 = vmul.f32 %v129, %v82
    %v132 = vrot.slane %v130, 1
    %v134 = vadd.f32 %v127, %v132
    %v136 = vrot.slane %v108, 7
    %v139 = vrot.slane %v121, 6
    %v142 = vrot.slane %v134, 5
    %v144 = vsel %vm80, %v95, %v136
    %vm145 = vcmask 1041408
    %v146 = vsel %vm145, %v144, %v139
    %vm147 = vcmask 1042432
    %v148 = vsel %vm147, %v146, %v142
    %v149 = vtanh.pop %v148
    %s150 = sld [smem:[#allocation3 + $0x30]]
    %v151 = vstv %s150
    %s152 = sld [smem:[#allocation3 + $0x10]]
    %v153 = vstv %s152
    %v154 = vmul.f32 %v153, %v149
    %v155 = vadd.f32 %v151, %v154
    %s156 = sld [smem:[#allocation3 + $0x18]]
    %v157 = vstv %s156
    %v158 = vmul.f32 %v157, %v149
    %v160 = vrot.slane %v158, 1
    %v162 = vadd.f32 %v155, %v160
    %s163 = sld [smem:[#allocation3 + $0x20]]
    %v164 = vstv %s163
    %v165 = vmul.f32 %v164, %v149
    %v167 = vrot.slane %v165, 2
    %v169 = vadd.f32 %v162, %v167
    %s170 = sld [smem:[#allocation3 + $0x28]]
    %v171 = vstv %s170
    %v172 = vmul.f32 %v171, %v149
    %v174 = vrot.slane %v172, 3
    %v176 = vadd.f32 %v169, %v174
    %s177 = sld [smem:[#allocation3 + $0x31]]
    %v178 = vstv %s177
    %s179 = sld [smem:[#allocation3 + $0x11]]
    %v180 = vstv %s179
    %v181 = vmul.f32 %v180, %v149
    %v182 = vadd.f32 %v178, %v181
    %s183 = sld [smem:[#allocation3 + $0x19]]
    %v184 = vstv %s183
    %v185 = vmul.f32 %v184, %v149
    %v187 = vrot.slane %v185, 1
    %v189 = vadd.f32 %v182, %v187
    %s190 = sld [smem:[#allocation3 + $0x21]]
    %v191 = vstv %s190
    %v192 = vmul.f32 %v191, %v149
    %v194 = vrot.slane %v192, 2
    %v196 = vadd.f32 %v189, %v194
    %s197 = sld [smem:[#allocation3 + $0x29]]
    %v198 = vstv %s197
    %v199 = vmul.f32 %v198, %v149
    %v201 = vrot.slane %v199, 3
    %v203 = vadd.f32 %v196, %v201
    %s204 = sld [smem:[#allocation3 + $0x32]]
    %v205 = vstv %s204
    %s206 = sld [smem:[#allocation3 + $0x12]]
    %v207 = vstv %s206
    %v208 = vmul.f32 %v207, %v149
    %v209 = vadd.f32 %v205, %v208
    %s210 = sld [smem:[#allocation3 + $0x1a]]
    %v211 = vstv %s210
    %v212 = vmul.f32 %v211, %v149
    %v214 = vrot.slane %v212, 1
    %v216 = vadd.f32 %v209, %v214
    %s217 = sld [smem:[#allocation3 + $0x22]]
    %v218 = vstv %s217
    %v219 = vmul.f32 %v218, %v149
    %v221 = vrot.slane %v219, 2
    %v223 = vadd.f32 %v216, %v221
    %s224 = sld [smem:[#allocation3 + $0x2a]]
    %v225 = vstv %s224
    %v226 = vmul.f32 %v225, %v149
    %v228 = vrot.slane %v226, 3
    %v230 = vadd.f32 %v223, %v228
    %s231 = sld [smem:[#allocation3 + $0x33]]
    %v232 = vstv %s231
    %s233 = sld [smem:[#allocation3 + $0x13]]
    %v234 = vstv %s233
    %v235 = vmul.f32 %v234, %v149
    %v236 = vadd.f32 %v232, %v235
    %s237 = sld [smem:[#allocation3 + $0x1b]]
    %v238 = vstv %s237
    %v239 = vmul.f32 %v238, %v149
    %v241 = vrot.slane %v239, 1
    %v243 = vadd.f32 %v236, %v241
    %s244 = sld [smem:[#allocation3 + $0x23]]
    %v245 = vstv %s244
    %v246 = vmul.f32 %v245, %v149
    %v248 = vrot.slane %v246, 2
    %v250 = vadd.f32 %v243, %v248
    %s251 = sld [smem:[#allocation3 + $0x2b]]
    %v252 = vstv %s251
    %v253 = vmul.f32 %v252, %v149
    %v255 = vrot.slane %v253, 3
    %v257 = vadd.f32 %v250, %v255
    %s258 = sld [smem:[#allocation3 + $0x34]]
    %v259 = vstv %s258
    %s260 = sld [smem:[#allocation3 + $0x14]]
    %v261 = vstv %s260
    %v262 = vmul.f32 %v261, %v149
    %v263 = vadd.f32 %v259, %v262
    %s264 = sld [smem:[#allocation3 + $0x1c]]
    %v265 = vstv %s264
    %v266 = vmul.f32 %v265, %v149
    %v268 = vrot.slane %v266, 1
    %v270 = vadd.f32 %v263, %v268
    %s271 = sld [smem:[#allocation3 + $0x24]]
    %v272 = vstv %s271
    %v273 = vmul.f32 %v272, %v149
    %v275 = vrot.slane %v273, 2
    %v277 = vadd.f32 %v270, %v275
    %s278 = sld [smem:[#allocation3 + $0x2c]]
    %v279 = vstv %s278
    %v280 = vmul.f32 %v279, %v149
    %v282 = vrot.slane %v280, 3
    %v284 = vadd.f32 %v277, %v282
    %s285 = sld [smem:[#allocation3 + $0x35]]
    %v286 = vstv %s285
    %s287 = sld [smem:[#allocation3 + $0x15]]
    %v288 = vstv %s287
    %v289 = vmul.f32 %v288, %v149
    %v290 = vadd.f32 %v286, %v289
    %s291 = sld [smem:[#allocation3 + $0x1d]]
    %v292 = vstv %s291
    %v293 = vmul.f32 %v292, %v149
    %v295 = vrot.slane %v293, 1
    %v297 = vadd.f32 %v290, %v295
    %s298 = sld [smem:[#allocation3 + $0x25]]
    %v299 = vstv %s298
    %v300 = vmul.f32 %v299, %v149
    %v302 = vrot.slane %v300, 2
    %v304 = vadd.f32 %v297, %v302
    %s305 = sld [smem:[#allocation3 + $0x2d]]
    %v306 = vstv %s305
    %v307 = vmul.f32 %v306, %v149
    %v309 = vrot.slane %v307, 3
    %v311 = vadd.f32 %v304, %v309
    %s312 = sld [smem:[#allocation3 + $0x36]]
    %v313 = vstv %s312
    %s314 = sld [smem:[#allocation3 + $0x16]]
    %v315 = vstv %s314
    %v316 = vmul.f32 %v315, %v149
    %v317 = vadd.f32 %v313, %v316
    %s318 = sld [smem:[#allocation3 + $0x1e]]
    %v319 = vstv %s318
    %v320 = vmul.f32 %v319, %v149
    %v322 = vrot.slane %v320, 1
    %v324 = vadd.f32 %v317, %v322
    %s325 = sld [smem:[#allocation3 + $0x26]]
    %v326 = vstv %s325
    %v327 = vmul.f32 %v326, %v149
    %v329 = vrot.slane %v327, 2
    %v331 = vadd.f32 %v324, %v329
    %s332 = sld [smem:[#allocation3 + $0x2e]]
    %v333 = vstv %s332
    %v334 = vmul.f32 %v333, %v149
    %v336 = vrot.slane %v334, 3
    %v338 = vadd.f32 %v331, %v336
    %s339 = sld [smem:[#allocation3 + $0x37]]
    %v340 = vstv %s339
    %s341 = sld [smem:[#allocation3 + $0x17]]
    %v342 = vstv %s341
    %v343 = vmul.f32 %v342, %v149
    %v344 = vadd.f32 %v340, %v343
    %s345 = sld [smem:[#allocation3 + $0x1f]]
    %v346 = vstv %s345
    %v347 = vmul.f32 %v346, %v149
    %v349 = vrot.slane %v347, 1
    %v351 = vadd.f32 %v344, %v349
    %s352 = sld [smem:[#allocation3 + $0x27]]
    %v353 = vstv %s352
    %v354 = vmul.f32 %v353, %v149
    %v356 = vrot.slane %v354, 2
    %v358 = vadd.f32 %v351, %v356
    %s359 = sld [smem:[#allocation3 + $0x2f]]
    %v360 = vstv %s359
    %v361 = vmul.f32 %v360, %v149
    %v363 = vrot.slane %v361, 3
    %v365 = vadd.f32 %v358, %v363
    %v367 = vrot.slane %v203, 7
    %v370 = vrot.slane %v230, 6
    %v373 = vrot.slane %v257, 5
    %v376 = vrot.slane %v284, 4
    %v379 = vrot.slane %v311, 3
    %v382 = vrot.slane %v338, 2
    %v385 = vrot.slane %v365, 1
    %v387 = vsel %vm80, %v176, %v367
    %v388 = vsel %vm145, %v387, %v370
    %v389 = vsel %vm147, %v388, %v373
    %vm390 = vcmask 1043456
    %v391 = vsel %vm390, %v389, %v376
    %vm392 = vcmask 1044480
    %v393 = vsel %vm392, %v391, %v379
    %vm394 = vcmask 1045504
    %v395 = vsel %vm394, %v393, %v382
    %vm396 = vcmask 1046528
    %v397 = vsel %vm396, %v395, %v385
    %v398 = vtanh.pop %v397
    %v399 = vperm.slane %v59, 0
    %v400 = vmul.f32 %v398, %v399
    %s401 = sld [smem:[#allocation3 + $0x3a]]
    %v402 = vstv %s401
    %s403 = sld [smem:[#allocation3 + $0x38]]
    %v404 = vstv %s403
    %v405 = vmul.f32 %v404, %v64
    %v406 = vadd.f32 %v402, %v405
    %s407 = sld [smem:[#allocation3 + $0x3b]]
    %v408 = vstv %s407
    %s409 = sld [smem:[#allocation3 + $0x39]]
    %v410 = vstv %s409
    %v411 = vmul.f32 %v410, %v64
    %v412 = vadd.f32 %v408, %v411
    %v414 = vrot.slane %v412, 7
    %v416 = vsel %vm80, %v406, %v414
    %v417 = vtanh.pop %v416
    %s418 = sld [smem:[#allocation3 + $0x44]]
    %v419 = vstv %s418
    %s420 = sld [smem:[#allocation3 + $0x3c]]
    %v421 = vstv %s420
    %v422 = vmul.f32 %v421, %v417
    %v423 = vadd.f32 %v419, %v422
    %s424 = sld [smem:[#allocation3 + $0x40]]
    %v425 = vstv %s424
    %v426 = vmul.f32 %v425, %v417
    %v428 = vrot.slane %v426, 1
    %v430 = vadd.f32 %v423, %v428
    %s431 = sld [smem:[#allocation3 + $0x45]]
    %v432 = vstv %s431
    %s433 = sld [smem:[#allocation3 + $0x3d]]
    %v434 = vstv %s433
    %v435 = vmul.f32 %v434, %v417
    %v436 = vadd.f32 %v432, %v435
    %s437 = sld [smem:[#allocation3 + $0x41]]
    %v438 = vstv %s437
    %v439 = vmul.f32 %v438, %v417
    %v441 = vrot.slane %v439, 1
    %v443 = vadd.f32 %v436, %v441
    %s444 = sld [smem:[#allocation3 + $0x46]]
    %v445 = vstv %s444
    %s446 = sld [smem:[#allocation3 + $0x3e]]
    %v447 = vstv %s446
    %v448 = vmul.f32 %v447, %v417
    %v449 = vadd.f32 %v445, %v448
    %s450 = sld [smem:[#allocation3 + $0x42]]
    %v451 = vstv %s450
    %v452 = vmul.f32 %v451, %v417
    %v454 = vrot.slane %v452, 1
    %v456 = vadd.f32 %v449, %v454
    %s457 = sld [smem:[#allocation3 + $0x47]]
    %v458 = vstv %s457
    %s459 = sld [smem:[#allocation3 + $0x3f]]
    %v460 = vstv %s459
    %v461 = vmul.f32 %v460, %v417
    %v462 = vadd.f32 %v458, %v461
    %s463 = sld [smem:[#allocation3 + $0x43]]
    %v464 = vstv %s463
    %v465 = vmul.f32 %v464, %v417
    %v467 = vrot.slane %v465, 1
    %v469 = vadd.f32 %v462, %v467
    %v471 = vrot.slane %v443, 7
    %v474 = vrot.slane %v456, 6
    %v477 = vrot.slane %v469, 5
    %v479 = vsel %vm80, %v430, %v471
    %v480 = vsel %vm145, %v479, %v474
    %v481 = vsel %vm147, %v480, %v477
    %v482 = vtanh.pop %v481
    %s483 = sld [smem:[#allocation3 + $0x68]]
    %v484 = vstv %s483
    %s485 = sld [smem:[#allocation3 + $0x48]]
    %v486 = vstv %s485
    %v487 = vmul.f32 %v486, %v482
    %v488 = vadd.f32 %v484, %v487
    %s489 = sld [smem:[#allocation3 + $0x50]]
    %v490 = vstv %s489
    %v491 = vmul.f32 %v490, %v482
    %v493 = vrot.slane %v491, 1
    %v495 = vadd.f32 %v488, %v493
    %s496 = sld [smem:[#allocation3 + $0x58]]
    %v497 = vstv %s496
    %v498 = vmul.f32 %v497, %v482
    %v500 = vrot.slane %v498, 2
    %v502 = vadd.f32 %v495, %v500
    %s503 = sld [smem:[#allocation3 + $0x60]]
    %v504 = vstv %s503
    %v505 = vmul.f32 %v504, %v482
    %v507 = vrot.slane %v505, 3
    %v509 = vadd.f32 %v502, %v507
    %s510 = sld [smem:[#allocation3 + $0x69]]
    %v511 = vstv %s510
    %s512 = sld [smem:[#allocation3 + $0x49]]
    %v513 = vstv %s512
    %v514 = vmul.f32 %v513, %v482
    %v515 = vadd.f32 %v511, %v514
    %s516 = sld [smem:[#allocation3 + $0x51]]
    %v517 = vstv %s516
    %v518 = vmul.f32 %v517, %v482
    %v520 = vrot.slane %v518, 1
    %v522 = vadd.f32 %v515, %v520
    %s523 = sld [smem:[#allocation3 + $0x59]]
    %v524 = vstv %s523
    %v525 = vmul.f32 %v524, %v482
    %v527 = vrot.slane %v525, 2
    %v529 = vadd.f32 %v522, %v527
    %s530 = sld [smem:[#allocation3 + $0x61]]
    %v531 = vstv %s530
    %v532 = vmul.f32 %v531, %v482
    %v534 = vrot.slane %v532, 3
    %v536 = vadd.f32 %v529, %v534
    %s537 = sld [smem:[#allocation3 + $0x6a]]
    %v538 = vstv %s537
    %s539 = sld [smem:[#allocation3 + $0x4a]]
    %v540 = vstv %s539
    %v541 = vmul.f32 %v540, %v482
    %v542 = vadd.f32 %v538, %v541
    %s543 = sld [smem:[#allocation3 + $0x52]]
    %v544 = vstv %s543
    %v545 = vmul.f32 %v544, %v482
    %v547 = vrot.slane %v545, 1
    %v549 = vadd.f32 %v542, %v547
    %s550 = sld [smem:[#allocation3 + $0x5a]]
    %v551 = vstv %s550
    %v552 = vmul.f32 %v551, %v482
    %v554 = vrot.slane %v552, 2
    %v556 = vadd.f32 %v549, %v554
    %s557 = sld [smem:[#allocation3 + $0x62]]
    %v558 = vstv %s557
    %v559 = vmul.f32 %v558, %v482
    %v561 = vrot.slane %v559, 3
    %v563 = vadd.f32 %v556, %v561
    %s564 = sld [smem:[#allocation3 + $0x6b]]
    %v565 = vstv %s564
    %s566 = sld [smem:[#allocation3 + $0x4b]]
    %v567 = vstv %s566
    %v568 = vmul.f32 %v567, %v482
    %v569 = vadd.f32 %v565, %v568
    %s570 = sld [smem:[#allocation3 + $0x53]]
    %v571 = vstv %s570
    %v572 = vmul.f32 %v571, %v482
    %v574 = vrot.slane %v572, 1
    %v576 = vadd.f32 %v569, %v574
    %s577 = sld [smem:[#allocation3 + $0x5b]]
    %v578 = vstv %s577
    %v579 = vmul.f32 %v578, %v482
    %v581 = vrot.slane %v579, 2
    %v583 = vadd.f32 %v576, %v581
    %s584 = sld [smem:[#allocation3 + $0x63]]
    %v585 = vstv %s584
    %v586 = vmul.f32 %v585, %v482
    %v588 = vrot.slane %v586, 3
    %v590 = vadd.f32 %v583, %v588
    %s591 = sld [smem:[#allocation3 + $0x6c]]
    %v592 = vstv %s591
    %s593 = sld [smem:[#allocation3 + $0x4c]]
    %v594 = vstv %s593
    %v595 = vmul.f32 %v594, %v482
    %v596 = vadd.f32 %v592, %v595
    %s597 = sld [smem:[#allocation3 + $0x54]]
    %v598 = vstv %s597
    %v599 = vmul.f32 %v598, %v482
    %v601 = vrot.slane %v599, 1
    %v603 = vadd.f32 %v596, %v601
    %s604 = sld [smem:[#allocation3 + $0x5c]]
    %v605 = vstv %s604
    %v606 = vmul.f32 %v605, %v482
    %v608 = vrot.slane %v606, 2
    %v610 = vadd.f32 %v603, %v608
    %s611 = sld [smem:[#allocation3 + $0x64]]
    %v612 = vstv %s611
    %v613 = vmul.f32 %v612, %v482
    %v615 = vrot.slane %v613, 3
    %v617 = vadd.f32 %v610, %v615
    %s618 = sld [smem:[#allocation3 + $0x6d]]
    %v619 = vstv %s618
    %s620 = sld [smem:[#allocation3 + $0x4d]]
    %v621 = vstv %s620
    %v622 = vmul.f32 %v621, %v482
    %v623 = vadd.f32 %v619, %v622
    %s624 = sld [smem:[#allocation3 + $0x55]]
    %v625 = vstv %s624
    %v626 = vmul.f32 %v625, %v482
    %v628 = vrot.slane %v626, 1
    %v630 = vadd.f32 %v623, %v628
    %s631 = sld [smem:[#allocation3 + $0x5d]]
    %v632 = vstv %s631
    %v633 = vmul.f32 %v632, %v482
    %v635 = vrot.slane %v633, 2
    %v637 = vadd.f32 %v630, %v635
    %s638 = sld [smem:[#allocation3 + $0x65]]
    %v639 = vstv %s638
    %v640 = vmul.f32 %v639, %v482
    %v642 = vrot.slane %v640, 3
    %v644 = vadd.f32 %v637, %v642
    %s645 = sld [smem:[#allocation3 + $0x6e]]
    %v646 = vstv %s645
    %s647 = sld [smem:[#allocation3 + $0x4e]]
    %v648 = vstv %s647
    %v649 = vmul.f32 %v648, %v482
    %v650 = vadd.f32 %v646, %v649
    %s651 = sld [smem:[#allocation3 + $0x56]]
    %v652 = vstv %s651
    %v653 = vmul.f32 %v652, %v482
    %v655 = vrot.slane %v653, 1
    %v657 = vadd.f32 %v650, %v655
    %s658 = sld [smem:[#allocation3 + $0x5e]]
    %v659 = vstv %s658
    %v660 = vmul.f32 %v659, %v482
    %v662 = vrot.slane %v660, 2
    %v664 = vadd.f32 %v657, %v662
    %s665 = sld [smem:[#allocation3 + $0x66]]
    %v666 = vstv %s665
    %v667 = vmul.f32 %v666, %v482
    %v669 = vrot.slane %v667, 3
    %v671 = vadd.f32 %v664, %v669
    %s672 = sld [smem:[#allocation3 + $0x6f]]
    %v673 = vstv %s672
    %s674 = sld [smem:[#allocation3 + $0x4f]]
    %v675 = vstv %s674
    %v676 = vmul.f32 %v675, %v482
    %v677 = vadd.f32 %v673, %v676
    %s678 = sld [smem:[#allocation3 + $0x57]]
    %v679 = vstv %s678
    %v680 = vmul.f32 %v679, %v482
    %v682 = vrot.slane %v680, 1
    %v684 = vadd.f32 %v677, %v682
    %s685 = sld [smem:[#allocation3 + $0x5f]]
    %v686 = vstv %s685
    %v687 = vmul.f32 %v686, %v482
    %v689 = vrot.slane %v687, 2
    %v691 = vadd.f32 %v684, %v689
    %s692 = sld [smem:[#allocation3 + $0x67]]
    %v693 = vstv %s692
    %v694 = vmul.f32 %v693, %v482
    %v696 = vrot.slane %v694, 3
    %v698 = vadd.f32 %v691, %v696
    %v700 = vrot.slane %v536, 7
    %v703 = vrot.slane %v563, 6
    %v706 = vrot.slane %v590, 5
    %v709 = vrot.slane %v617, 4
    %v712 = vrot.slane %v644, 3
    %v715 = vrot.slane %v671, 2
    %v718 = vrot.slane %v698, 1
    %v720 = vsel %vm80, %v509, %v700
    %v721 = vsel %vm145, %v720, %v703
    %v722 = vsel %vm147, %v721, %v706
    %v723 = vsel %vm390, %v722, %v709
    %v724 = vsel %vm392, %v723, %v712
    %v725 = vsel %vm394, %v724, %v715
    %v726 = vsel %vm396, %v725, %v718
    %v727 = vtanh.pop %v726
    %v728 = vperm.slane %v64, 0
    %v729 = vmul.f32 %v727, %v728
    %731 = vrot.lane.b32.xlu0 %v400, 112
    %v732 = vpop.permute.xlu0 %731
    %v734 = vadd.f32 %v400, %v732
    %736 = vrot.lane.b32.xlu0 %v729, 112
    %v737 = vpop.permute.xlu0 %736
    %v739 = vadd.f32 %v729, %v737
    %740 = vrot.lane.b32.xlu0 %v400, 96
    %v741 = vpop.permute.xlu0 %740
    %v743 = vadd.f32 %v734, %v741
    %744 = vrot.lane.b32.xlu0 %v729, 96
    %v745 = vpop.permute.xlu0 %744
    %v747 = vadd.f32 %v739, %v745
    %748 = vrot.lane.b32.xlu0 %v400, 80
    %v749 = vpop.permute.xlu0 %748
    %v751 = vadd.f32 %v743, %v749
    %752 = vrot.lane.b32.xlu0 %v729, 80
    %v753 = vpop.permute.xlu0 %752
    %v755 = vadd.f32 %v747, %v753
    %s756 = sld [smem:[#allocation3 + $0xf0]]
    %v757 = vstv %s756
    %s758 = sld [smem:[#allocation3 + $0x70]]
    %v759 = vstv %s758
    %v760 = vmul.f32 %v759, %v751
    %v761 = vadd.f32 %v757, %v760
    %s762 = sld [smem:[#allocation3 + $0x78]]
    %v763 = vstv %s762
    %v764 = vmul.f32 %v763, %v751
    %v766 = vrot.slane %v764, 1
    %v768 = vadd.f32 %v761, %v766
    %s769 = sld [smem:[#allocation3 + $0x80]]
    %v770 = vstv %s769
    %v771 = vmul.f32 %v770, %v751
    %v773 = vrot.slane %v771, 2
    %v775 = vadd.f32 %v768, %v773
    %s776 = sld [smem:[#allocation3 + $0x88]]
    %v777 = vstv %s776
    %v778 = vmul.f32 %v777, %v751
    %v780 = vrot.slane %v778, 3
    %v782 = vadd.f32 %v775, %v780
    %s783 = sld [smem:[#allocation3 + $0x90]]
    %v784 = vstv %s783
    %v785 = vmul.f32 %v784, %v751
    %v787 = vrot.slane %v785, 4
    %v789 = vadd.f32 %v782, %v787
    %s790 = sld [smem:[#allocation3 + $0x98]]
    %v791 = vstv %s790
    %v792 = vmul.f32 %v791, %v751
    %v794 = vrot.slane %v792, 5
    %v796 = vadd.f32 %v789, %v794
    %s797 = sld [smem:[#allocation3 + $0xa0]]
    %v798 = vstv %s797
    %v799 = vmul.f32 %v798, %v751
    %v801 = vrot.slane %v799, 6
    %v803 = vadd.f32 %v796, %v801
    %s804 = sld [smem:[#allocation3 + $0xa8]]
    %v805 = vstv %s804
    %v806 = vmul.f32 %v805, %v751
    %v808 = vrot.slane %v806, 7
    %v810 = vadd.f32 %v803, %v808
    %s811 = sld [smem:[#allocation3 + $0xb0]]
    %v812 = vstv %s811
    %v813 = vmul.f32 %v812, %v755
    %v814 = vadd.f32 %v810, %v813
    %s815 = sld [smem:[#allocation3 + $0xb8]]
    %v816 = vstv %s815
    %v817 = vmul.f32 %v816, %v755
    %v819 = vrot.slane %v817, 1
    %v821 = vadd.f32 %v814, %v819
    %s822 = sld [smem:[#allocation3 + $0xc0]]
    %v823 = vstv %s822
    %v824 = vmul.f32 %v823, %v755
    %v826 = vrot.slane %v824, 2
    %v828 = vadd.f32 %v821, %v826
    %s829 = sld [smem:[#allocation3 + $0xc8]]
    %v830 = vstv %s829
    %v831 = vmul.f32 %v830, %v755
    %v833 = vrot.slane %v831, 3
    %v835 = vadd.f32 %v828, %v833
    %s836 = sld [smem:[#allocation3 + $0xd0]]
    %v837 = vstv %s836
    %v838 = vmul.f32 %v837, %v755
    %v840 = vrot.slane %v838, 4
    %v842 = vadd.f32 %v835, %v840
    %s843 = sld [smem:[#allocation3 + $0xd8]]
    %v844 = vstv %s843
    %v845 = vmul.f32 %v844, %v755
    %v847 = vrot.slane %v845, 5
    %v849 = vadd.f32 %v842, %v847
    %s850 = sld [smem:[#allocation3 + $0xe0]]
    %v851 = vstv %s850
    %v852 = vmul.f32 %v851, %v755
    %v854 = vrot.slane %v852, 6
    %v856 = vadd.f32 %v849, %v854
    %s857 = sld [smem:[#allocation3 + $0xe8]]
    %v858 = vstv %s857
    %v859 = vmul.f32 %v858, %v755
    %v861 = vrot.slane %v859, 7
    %v863 = vadd.f32 %v856, %v861
    %s864 = sld [smem:[#allocation3 + $0xf1]]
    %v865 = vstv %s864
    %s866 = sld [smem:[#allocation3 + $0x71]]
    %v867 = vstv %s866
    %v868 = vmul.f32 %v867, %v751
    %v869 = vadd.f32 %v865, %v868
    %s870 = sld [smem:[#allocation3 + $0x79]]
    %v871 = vstv %s870
    %v872 = vmul.f32 %v871, %v751
    %v874 = vrot.slane %v872, 1
    %v876 = vadd.f32 %v869, %v874
    %s877 = sld [smem:[#allocation3 + $0x81]]
    %v878 = vstv %s877
    %v879 = vmul.f32 %v878, %v751
    %v881 = vrot.slane %v879, 2
    %v883 = vadd.f32 %v876, %v881
    %s884 = sld [smem:[#allocation3 + $0x89]]
    %v885 = vstv %s884
    %v886 = vmul.f32 %v885, %v751
    %v888 = vrot.slane %v886, 3
    %v890 = vadd.f32 %v883, %v888
    %s891 = sld [smem:[#allocation3 + $0x91]]
    %v892 = vstv %s891
    %v893 = vmul.f32 %v892, %v751
    %v895 = vrot.slane %v893, 4
    %v897 = vadd.f32 %v890, %v895
    %s898 = sld [smem:[#allocation3 + $0x99]]
    %v899 = vstv %s898
    %v900 = vmul.f32 %v899, %v751
    %v902 = vrot.slane %v900, 5
    %v904 = vadd.f32 %v897, %v902
    %s905 = sld [smem:[#allocation3 + $0xa1]]
    %v906 = vstv %s905
    %v907 = vmul.f32 %v906, %v751
    %v909 = vrot.slane %v907, 6
    %v911 = vadd.f32 %v904, %v909
    %s912 = sld [smem:[#allocation3 + $0xa9]]
    %v913 = vstv %s912
    %v914 = vmul.f32 %v913, %v751
    %v916 = vrot.slane %v914, 7
    %v918 = vadd.f32 %v911, %v916
    %s919 = sld [smem:[#allocation3 + $0xb1]]
    %v920 = vstv %s919
    %v921 = vmul.f32 %v920, %v755
    %v922 = vadd.f32 %v918, %v921
    %s923 = sld [smem:[#allocation3 + $0xb9]]
    %v924 = vstv %s923
    %v925 = vmul.f32 %v924, %v755
    %v927 = vrot.slane %v925, 1
    %v929 = vadd.f32 %v922, %v927
    %s930 = sld [smem:[#allocation3 + $0xc1]]
    %v931 = vstv %s930
    %v932 = vmul.f32 %v931, %v755
    %v934 = vrot.slane %v932, 2
    %v936 = vadd.f32 %v929, %v934
    %s937 = sld [smem:[#allocation3 + $0xc9]]
    %v938 = vstv %s937
    %v939 = vmul.f32 %v938, %v755
    %v941 = vrot.slane %v939, 3
    %v943 = vadd.f32 %v936, %v941
    %s944 = sld [smem:[#allocation3 + $0xd1]]
    %v945 = vstv %s944
    %v946 = vmul.f32 %v945, %v755
    %v948 = vrot.slane %v946, 4
    %v950 = vadd.f32 %v943, %v948
    %s951 = sld [smem:[#allocation3 + $0xd9]]
    %v952 = vstv %s951
    %v953 = vmul.f32 %v952, %v755
    %v955 = vrot.slane %v953, 5
    %v957 = vadd.f32 %v950, %v955
    %s958 = sld [smem:[#allocation3 + $0xe1]]
    %v959 = vstv %s958
    %v960 = vmul.f32 %v959, %v755
    %v962 = vrot.slane %v960, 6
    %v964 = vadd.f32 %v957, %v962
    %s965 = sld [smem:[#allocation3 + $0xe9]]
    %v966 = vstv %s965
    %v967 = vmul.f32 %v966, %v755
    %v969 = vrot.slane %v967, 7
    %v971 = vadd.f32 %v964, %v969
    %s972 = sld [smem:[#allocation3 + $0xf2]]
    %v973 = vstv %s972
    %s974 = sld [smem:[#allocation3 + $0x72]]
    %v975 = vstv %s974
    %v976 = vmul.f32 %v975, %v751
    %v977 = vadd.f32 %v973, %v976
    %s978 = sld [smem:[#allocation3 + $0x7a]]
    %v979 = vstv %s978
    %v980 = vmul.f32 %v979, %v751
    %v982 = vrot.slane %v980, 1
    %v984 = vadd.f32 %v977, %v982
    %s985 = sld [smem:[#allocation3 + $0x82]]
    %v986 = vstv %s985
    %v987 = vmul.f32 %v986, %v751
    %v989 = vrot.slane %v987, 2
    %v991 = vadd.f32 %v984, %v989
    %s992 = sld [smem:[#allocation3 + $0x8a]]
    %v993 = vstv %s992
    %v994 = vmul.f32 %v993, %v751
    %v996 = vrot.slane %v994, 3
    %v998 = vadd.f32 %v991, %v996
    %s999 = sld [smem:[#allocation3 + $0x92]]
    %v1000 = vstv %s999
    %v1001 = vmul.f32 %v1000, %v751
    %v1003 = vrot.slane %v1001, 4
    %v1005 = vadd.f32 %v998, %v1003
    %s1006 = sld [smem:[#allocation3 + $0x9a]]
    %v1007 = vstv %s1006
    %v1008 = vmul.f32 %v1007, %v751
    %v1010 = vrot.slane %v1008, 5
    %v1012 = vadd.f32 %v1005, %v1010
    %s1013 = sld [smem:[#allocation3 + $0xa2]]
    %v1014 = vstv %s1013
    %v1015 = vmul.f32 %v1014, %v751
    %v1017 = vrot.slane %v1015, 6
    %v1019 = vadd.f32 %v1012, %v1017
    %s1020 = sld [smem:[#allocation3 + $0xaa]]
    %v1021 = vstv %s1020
    %v1022 = vmul.f32 %v1021, %v751
    %v1024 = vrot.slane %v1022, 7
    %v1026 = vadd.f32 %v1019, %v1024
    %s1027 = sld [smem:[#allocation3 + $0xb2]]
    %v1028 = vstv %s1027
    %v1029 = vmul.f32 %v1028, %v755
    %v1030 = vadd.f32 %v1026, %v1029
    %s1031 = sld [smem:[#allocation3 + $0xba]]
    %v1032 = vstv %s1031
    %v1033 = vmul.f32 %v1032, %v755
    %v1035 = vrot.slane %v1033, 1
    %v1037 = vadd.f32 %v1030, %v1035
    %s1038 = sld [smem:[#allocation3 + $0xc2]]
    %v1039 = vstv %s1038
    %v1040 = vmul.f32 %v1039, %v755
    %v1042 = vrot.slane %v1040, 2
    %v1044 = vadd.f32 %v1037, %v1042
    %s1045 = sld [smem:[#allocation3 + $0xca]]
    %v1046 = vstv %s1045
    %v1047 = vmul.f32 %v1046, %v755
    %v1049 = vrot.slane %v1047, 3
    %v1051 = vadd.f32 %v1044, %v1049
    %s1052 = sld [smem:[#allocation3 + $0xd2]]
    %v1053 = vstv %s1052
    %v1054 = vmul.f32 %v1053, %v755
    %v1056 = vrot.slane %v1054, 4
    %v1058 = vadd.f32 %v1051, %v1056
    %s1059 = sld [smem:[#allocation3 + $0xda]]
    %v1060 = vstv %s1059
    %v1061 = vmul.f32 %v1060, %v755
    %v1063 = vrot.slane %v1061, 5
    %v1065 = vadd.f32 %v1058, %v1063
    %s1066 = sld [smem:[#allocation3 + $0xe2]]
    %v1067 = vstv %s1066
    %v1068 = vmul.f32 %v1067, %v755
    %v1070 = vrot.slane %v1068, 6
    %v1072 = vadd.f32 %v1065, %v1070
    %s1073 = sld [smem:[#allocation3 + $0xea]]
    %v1074 = vstv %s1073
    %v1075 = vmul.f32 %v1074, %v755
    %v1077 = vrot.slane %v1075, 7
    %v1079 = vadd.f32 %v1072, %v1077
    %s1080 = sld [smem:[#allocation3 + $0xf3]]
    %v1081 = vstv %s1080
    %s1082 = sld [smem:[#allocation3 + $0x73]]
    %v1083 = vstv %s1082
    %v1084 = vmul.f32 %v1083, %v751
    %v1085 = vadd.f32 %v1081, %v1084
    %s1086 = sld [smem:[#allocation3 + $0x7b]]
    %v1087 = vstv %s1086
    %v1088 = vmul.f32 %v1087, %v751
    %v1090 = vrot.slane %v1088, 1
    %v1092 = vadd.f32 %v1085, %v1090
    %s1093 = sld [smem:[#allocation3 + $0x83]]
    %v1094 = vstv %s1093
    %v1095 = vmul.f32 %v1094, %v751
    %v1097 = vrot.slane %v1095, 2
    %v1099 = vadd.f32 %v1092, %v1097
    %s1100 = sld [smem:[#allocation3 + $0x8b]]
    %v1101 = vstv %s1100
    %v1102 = vmul.f32 %v1101, %v751
    %v1104 = vrot.slane %v1102, 3
    %v1106 = vadd.f32 %v1099, %v1104
    %s1107 = sld [smem:[#allocation3 + $0x93]]
    %v1108 = vstv %s1107
    %v1109 = vmul.f32 %v1108, %v751
    %v1111 = vrot.slane %v1109, 4
    %v1113 = vadd.f32 %v1106, %v1111
    %s1114 = sld [smem:[#allocation3 + $0x9b]]
    %v1115 = vstv %s1114
    %v1116 = vmul.f32 %v1115, %v751
    %v1118 = vrot.slane %v1116, 5
    %v1120 = vadd.f32 %v1113, %v1118
    %s1121 = sld [smem:[#allocation3 + $0xa3]]
    %v1122 = vstv %s1121
    %v1123 = vmul.f32 %v1122, %v751
    %v1125 = vrot.slane %v1123, 6
    %v1127 = vadd.f32 %v1120, %v1125
    %s1128 = sld [smem:[#allocation3 + $0xab]]
    %v1129 = vstv %s1128
    %v1130 = vmul.f32 %v1129, %v751
    %v1132 = vrot.slane %v1130, 7
    %v1134 = vadd.f32 %v1127, %v1132
    %s1135 = sld [smem:[#allocation3 + $0xb3]]
    %v1136 = vstv %s1135
    %v1137 = vmul.f32 %v1136, %v755
    %v1138 = vadd.f32 %v1134, %v1137
    %s1139 = sld [smem:[#allocation3 + $0xbb]]
    %v1140 = vstv %s1139
    %v1141 = vmul.f32 %v1140, %v755
    %v1143 = vrot.slane %v1141, 1
    %v1145 = vadd.f32 %v1138, %v1143
    %s1146 = sld [smem:[#allocation3 + $0xc3]]
    %v1147 = vstv %s1146
    %v1148 = vmul.f32 %v1147, %v755
    %v1150 = vrot.slane %v1148, 2
    %v1152 = vadd.f32 %v1145, %v1150
    %s1153 = sld [smem:[#allocation3 + $0xcb]]
    %v1154 = vstv %s1153
    %v1155 = vmul.f32 %v1154, %v755
    %v1157 = vrot.slane %v1155, 3
    %v1159 = vadd.f32 %v1152, %v1157
    %s1160 = sld [smem:[#allocation3 + $0xd3]]
    %v1161 = vstv %s1160
    %v1162 = vmul.f32 %v1161, %v755
    %v1164 = vrot.slane %v1162, 4
    %v1166 = vadd.f32 %v1159, %v1164
    %s1167 = sld [smem:[#allocation3 + $0xdb]]
    %v1168 = vstv %s1167
    %v1169 = vmul.f32 %v1168, %v755
    %v1171 = vrot.slane %v1169, 5
    %v1173 = vadd.f32 %v1166, %v1171
    %s1174 = sld [smem:[#allocation3 + $0xe3]]
    %v1175 = vstv %s1174
    %v1176 = vmul.f32 %v1175, %v755
    %v1178 = vrot.slane %v1176, 6
    %v1180 = vadd.f32 %v1173, %v1178
    %s1181 = sld [smem:[#allocation3 + $0xeb]]
    %v1182 = vstv %s1181
    %v1183 = vmul.f32 %v1182, %v755
    %v1185 = vrot.slane %v1183, 7
    %v1187 = vadd.f32 %v1180, %v1185
    %s1188 = sld [smem:[#allocation3 + $0xf4]]
    %v1189 = vstv %s1188
    %s1190 = sld [smem:[#allocation3 + $0x74]]
    %v1191 = vstv %s1190
    %v1192 = vmul.f32 %v1191, %v751
    %v1193 = vadd.f32 %v1189, %v1192
    %s1194 = sld [smem:[#allocation3 + $0x7c]]
    %v1195 = vstv %s1194
    %v1196 = vmul.f32 %v1195, %v751
    %v1198 = vrot.slane %v1196, 1
    %v1200 = vadd.f32 %v1193, %v1198
    %s1201 = sld [smem:[#allocation3 + $0x84]]
    %v1202 = vstv %s1201
    %v1203 = vmul.f32 %v1202, %v751
    %v1205 = vrot.slane %v1203, 2
    %v1207 = vadd.f32 %v1200, %v1205
    %s1208 = sld [smem:[#allocation3 + $0x8c]]
    %v1209 = vstv %s1208
    %v1210 = vmul.f32 %v1209, %v751
    %v1212 = vrot.slane %v1210, 3
    %v1214 = vadd.f32 %v1207, %v1212
    %s1215 = sld [smem:[#allocation3 + $0x94]]
    %v1216 = vstv %s1215
    %v1217 = vmul.f32 %v1216, %v751
    %v1219 = vrot.slane %v1217, 4
    %v1221 = vadd.f32 %v1214, %v1219
    %s1222 = sld [smem:[#allocation3 + $0x9c]]
    %v1223 = vstv %s1222
    %v1224 = vmul.f32 %v1223, %v751
    %v1226 = vrot.slane %v1224, 5
    %v1228 = vadd.f32 %v1221, %v1226
    %s1229 = sld [smem:[#allocation3 + $0xa4]]
    %v1230 = vstv %s1229
    %v1231 = vmul.f32 %v1230, %v751
    %v1233 = vrot.slane %v1231, 6
    %v1235 = vadd.f32 %v1228, %v1233
    %s1236 = sld [smem:[#allocation3 + $0xac]]
    %v1237 = vstv %s1236
    %v1238 = vmul.f32 %v1237, %v751
    %v1240 = vrot.slane %v1238, 7
    %v1242 = vadd.f32 %v1235, %v1240
    %s1243 = sld [smem:[#allocation3 + $0xb4]]
    %v1244 = vstv %s1243
    %v1245 = vmul.f32 %v1244, %v755
    %v1246 = vadd.f32 %v1242, %v1245
    %s1247 = sld [smem:[#allocation3 + $0xbc]]
    %v1248 = vstv %s1247
    %v1249 = vmul.f32 %v1248, %v755
    %v1251 = vrot.slane %v1249, 1
    %v1253 = vadd.f32 %v1246, %v1251
    %s1254 = sld [smem:[#allocation3 + $0xc4]]
    %v1255 = vstv %s1254
    %v1256 = vmul.f32 %v1255, %v755
    %v1258 = vrot.slane %v1256, 2
    %v1260 = vadd.f32 %v1253, %v1258
    %s1261 = sld [smem:[#allocation3 + $0xcc]]
    %v1262 = vstv %s1261
    %v1263 = vmul.f32 %v1262, %v755
    %v1265 = vrot.slane %v1263, 3
    %v1267 = vadd.f32 %v1260, %v1265
    %s1268 = sld [smem:[#allocation3 + $0xd4]]
    %v1269 = vstv %s1268
    %v1270 = vmul.f32 %v1269, %v755
    %v1272 = vrot.slane %v1270, 4
    %v1274 = vadd.f32 %v1267, %v1272
    %s1275 = sld [smem:[#allocation3 + $0xdc]]
    %v1276 = vstv %s1275
    %v1277 = vmul.f32 %v1276, %v755
    %v1279 = vrot.slane %v1277, 5
    %v1281 = vadd.f32 %v1274, %v1279
    %s1282 = sld [smem:[#allocation3 + $0xe4]]
    %v1283 = vstv %s1282
    %v1284 = vmul.f32 %v1283, %v755
    %v1286 = vrot.slane %v1284, 6
    %v1288 = vadd.f32 %v1281, %v1286
    %s1289 = sld [smem:[#allocation3 + $0xec]]
    %v1290 = vstv %s1289
    %v1291 = vmul.f32 %v1290, %v755
    %v1293 = vrot.slane %v1291, 7
    %v1295 = vadd.f32 %v1288, %v1293
    %s1296 = sld [smem:[#allocation3 + $0xf5]]
    %v1297 = vstv %s1296
    %s1298 = sld [smem:[#allocation3 + $0x75]]
    %v1299 = vstv %s1298
    %v1300 = vmul.f32 %v1299, %v751
    %v1301 = vadd.f32 %v1297, %v1300
    %s1302 = sld [smem:[#allocation3 + $0x7d]]
    %v1303 = vstv %s1302
    %v1304 = vmul.f32 %v1303, %v751
    %v1306 = vrot.slane %v1304, 1
    %v1308 = vadd.f32 %v1301, %v1306
    %s1309 = sld [smem:[#allocation3 + $0x85]]
    %v1310 = vstv %s1309
    %v1311 = vmul.f32 %v1310, %v751
    %v1313 = vrot.slane %v1311, 2
    %v1315 = vadd.f32 %v1308, %v1313
    %s1316 = sld [smem:[#allocation3 + $0x8d]]
    %v1317 = vstv %s1316
    %v1318 = vmul.f32 %v1317, %v751
    %v1320 = vrot.slane %v1318, 3
    %v1322 = vadd.f32 %v1315, %v1320
    %s1323 = sld [smem:[#allocation3 + $0x95]]
    %v1324 = vstv %s1323
    %v1325 = vmul.f32 %v1324, %v751
    %v1327 = vrot.slane %v1325, 4
    %v1329 = vadd.f32 %v1322, %v1327
    %s1330 = sld [smem:[#allocation3 + $0x9d]]
    %v1331 = vstv %s1330
    %v1332 = vmul.f32 %v1331, %v751
    %v1334 = vrot.slane %v1332, 5
    %v1336 = vadd.f32 %v1329, %v1334
    %s1337 = sld [smem:[#allocation3 + $0xa5]]
    %v1338 = vstv %s1337
    %v1339 = vmul.f32 %v1338, %v751
    %v1341 = vrot.slane %v1339, 6
    %v1343 = vadd.f32 %v1336, %v1341
    %s1344 = sld [smem:[#allocation3 + $0xad]]
    %v1345 = vstv %s1344
    %v1346 = vmul.f32 %v1345, %v751
    %v1348 = vrot.slane %v1346, 7
    %v1350 = vadd.f32 %v1343, %v1348
    %s1351 = sld [smem:[#allocation3 + $0xb5]]
    %v1352 = vstv %s1351
    %v1353 = vmul.f32 %v1352, %v755
    %v1354 = vadd.f32 %v1350, %v1353
    %s1355 = sld [smem:[#allocation3 + $0xbd]]
    %v1356 = vstv %s1355
    %v1357 = vmul.f32 %v1356, %v755
    %v1359 = vrot.slane %v1357, 1
    %v1361 = vadd.f32 %v1354, %v1359
    %s1362 = sld [smem:[#allocation3 + $0xc5]]
    %v1363 = vstv %s1362
    %v1364 = vmul.f32 %v1363, %v755
    %v1366 = vrot.slane %v1364, 2
    %v1368 = vadd.f32 %v1361, %v1366
    %s1369 = sld [smem:[#allocation3 + $0xcd]]
    %v1370 = vstv %s1369
    %v1371 = vmul.f32 %v1370, %v755
    %v1373 = vrot.slane %v1371, 3
    %v1375 = vadd.f32 %v1368, %v1373
    %s1376 = sld [smem:[#allocation3 + $0xd5]]
    %v1377 = vstv %s1376
    %v1378 = vmul.f32 %v1377, %v755
    %v1380 = vrot.slane %v1378, 4
    %v1382 = vadd.f32 %v1375, %v1380
    %s1383 = sld [smem:[#allocation3 + $0xdd]]
    %v1384 = vstv %s1383
    %v1385 = vmul.f32 %v1384, %v755
    %v1387 = vrot.slane %v1385, 5
    %v1389 = vadd.f32 %v1382, %v1387
    %s1390 = sld [smem:[#allocation3 + $0xe5]]
    %v1391 = vstv %s1390
    %v1392 = vmul.f32 %v1391, %v755
    %v1394 = vrot.slane %v1392, 6
    %v1396 = vadd.f32 %v1389, %v1394
    %s1397 = sld [smem:[#allocation3 + $0xed]]
    %v1398 = vstv %s1397
    %v1399 = vmul.f32 %v1398, %v755
    %v1401 = vrot.slane %v1399, 7
    %v1403 = vadd.f32 %v1396, %v1401
    %s1404 = sld [smem:[#allocation3 + $0xf6]]
    %v1405 = vstv %s1404
    %s1406 = sld [smem:[#allocation3 + $0x76]]
    %v1407 = vstv %s1406
    %v1408 = vmul.f32 %v1407, %v751
    %v1409 = vadd.f32 %v1405, %v1408
    %s1410 = sld [smem:[#allocation3 + $0x7e]]
    %v1411 = vstv %s1410
    %v1412 = vmul.f32 %v1411, %v751
    %v1414 = vrot.slane %v1412, 1
    %v1416 = vadd.f32 %v1409, %v1414
    %s1417 = sld [smem:[#allocation3 + $0x86]]
    %v1418 = vstv %s1417
    %v1419 = vmul.f32 %v1418, %v751
    %v1421 = vrot.slane %v1419, 2
    %v1423 = vadd.f32 %v1416, %v1421
    %s1424 = sld [smem:[#allocation3 + $0x8e]]
    %v1425 = vstv %s1424
    %v1426 = vmul.f32 %v1425, %v751
    %v1428 = vrot.slane %v1426, 3
    %v1430 = vadd.f32 %v1423, %v1428
    %s1431 = sld [smem:[#allocation3 + $0x96]]
    %v1432 = vstv %s1431
    %v1433 = vmul.f32 %v1432, %v751
    %v1435 = vrot.slane %v1433, 4
    %v1437 = vadd.f32 %v1430, %v1435
    %s1438 = sld [smem:[#allocation3 + $0x9e]]
    %v1439 = vstv %s1438
    %v1440 = vmul.f32 %v1439, %v751
    %v1442 = vrot.slane %v1440, 5
    %v1444 = vadd.f32 %v1437, %v1442
    %s1445 = sld [smem:[#allocation3 + $0xa6]]
    %v1446 = vstv %s1445
    %v1447 = vmul.f32 %v1446, %v751
    %v1449 = vrot.slane %v1447, 6
    %v1451 = vadd.f32 %v1444, %v1449
    %s1452 = sld [smem:[#allocation3 + $0xae]]
    %v1453 = vstv %s1452
    %v1454 = vmul.f32 %v1453, %v751
    %v1456 = vrot.slane %v1454, 7
    %v1458 = vadd.f32 %v1451, %v1456
    %s1459 = sld [smem:[#allocation3 + $0xb6]]
    %v1460 = vstv %s1459
    %v1461 = vmul.f32 %v1460, %v755
    %v1462 = vadd.f32 %v1458, %v1461
    %s1463 = sld [smem:[#allocation3 + $0xbe]]
    %v1464 = vstv %s1463
    %v1465 = vmul.f32 %v1464, %v755
    %v1467 = vrot.slane %v1465, 1
    %v1469 = vadd.f32 %v1462, %v1467
    %s1470 = sld [smem:[#allocation3 + $0xc6]]
    %v1471 = vstv %s1470
    %v1472 = vmul.f32 %v1471, %v755
    %v1474 = vrot.slane %v1472, 2
    %v1476 = vadd.f32 %v1469, %v1474
    %s1477 = sld [smem:[#allocation3 + $0xce]]
    %v1478 = vstv %s1477
    %v1479 = vmul.f32 %v1478, %v755
    %v1481 = vrot.slane %v1479, 3
    %v1483 = vadd.f32 %v1476, %v1481
    %s1484 = sld [smem:[#allocation3 + $0xd6]]
    %v1485 = vstv %s1484
    %v1486 = vmul.f32 %v1485, %v755
    %v1488 = vrot.slane %v1486, 4
    %v1490 = vadd.f32 %v1483, %v1488
    %s1491 = sld [smem:[#allocation3 + $0xde]]
    %v1492 = vstv %s1491
    %v1493 = vmul.f32 %v1492, %v755
    %v1495 = vrot.slane %v1493, 5
    %v1497 = vadd.f32 %v1490, %v1495
    %s1498 = sld [smem:[#allocation3 + $0xe6]]
    %v1499 = vstv %s1498
    %v1500 = vmul.f32 %v1499, %v755
    %v1502 = vrot.slane %v1500, 6
    %v1504 = vadd.f32 %v1497, %v1502
    %s1505 = sld [smem:[#allocation3 + $0xee]]
    %v1506 = vstv %s1505
    %v1507 = vmul.f32 %v1506, %v755
    %v1509 = vrot.slane %v1507, 7
    %v1511 = vadd.f32 %v1504, %v1509
    %s1512 = sld [smem:[#allocation3 + $0xf7]]
    %v1513 = vstv %s1512
    %s1514 = sld [smem:[#allocation3 + $0x77]]
    %v1515 = vstv %s1514
    %v1516 = vmul.f32 %v1515, %v751
    %v1517 = vadd.f32 %v1513, %v1516
    %s1518 = sld [smem:[#allocation3 + $0x7f]]
    %v1519 = vstv %s1518
    %v1520 = vmul.f32 %v1519, %v751
    %v1522 = vrot.slane %v1520, 1
    %v1524 = vadd.f32 %v1517, %v1522
    %s1525 = sld [smem:[#allocation3 + $0x87]]
    %v1526 = vstv %s1525
    %v1527 = vmul.f32 %v1526, %v751
    %v1529 = vrot.slane %v1527, 2
    %v1531 = vadd.f32 %v1524, %v1529
    %s1532 = sld [smem:[#allocation3 + $0x8f]]
    %v1533 = vstv %s1532
    %v1534 = vmul.f32 %v1533, %v751
    %v1536 = vrot.slane %v1534, 3
    %v1538 = vadd.f32 %v1531, %v1536
    %s1539 = sld [smem:[#allocation3 + $0x97]]
    %v1540 = vstv %s1539
    %v1541 = vmul.f32 %v1540, %v751
    %v1543 = vrot.slane %v1541, 4
    %v1545 = vadd.f32 %v1538, %v1543
    %s1546 = sld [smem:[#allocation3 + $0x9f]]
    %v1547 = vstv %s1546
    %v1548 = vmul.f32 %v1547, %v751
    %v1550 = vrot.slane %v1548, 5
    %v1552 = vadd.f32 %v1545, %v1550
    %s1553 = sld [smem:[#allocation3 + $0xa7]]
    %v1554 = vstv %s1553
    %v1555 = vmul.f32 %v1554, %v751
    %v1557 = vrot.slane %v1555, 6
    %v1559 = vadd.f32 %v1552, %v1557
    %s1560 = sld [smem:[#allocation3 + $0xaf]]
    %v1561 = vstv %s1560
    %v1562 = vmul.f32 %v1561, %v751
    %v1564 = vrot.slane %v1562, 7
    %v1566 = vadd.f32 %v1559, %v1564
    %s1567 = sld [smem:[#allocation3 + $0xb7]]
    %v1568 = vstv %s1567
    %v1569 = vmul.f32 %v1568, %v755
    %v1570 = vadd.f32 %v1566, %v1569
    %s1571 = sld [smem:[#allocation3 + $0xbf]]
    %v1572 = vstv %s1571
    %v1573 = vmul.f32 %v1572, %v755
    %v1575 = vrot.slane %v1573, 1
    %v1577 = vadd.f32 %v1570, %v1575
    %s1578 = sld [smem:[#allocation3 + $0xc7]]
    %v1579 = vstv %s1578
    %v1580 = vmul.f32 %v1579, %v755
    %v1582 = vrot.slane %v1580, 2
    %v1584 = vadd.f32 %v1577, %v1582
    %s1585 = sld [smem:[#allocation3 + $0xcf]]
    %v1586 = vstv %s1585
    %v1587 = vmul.f32 %v1586, %v755
    %v1589 = vrot.slane %v1587, 3
    %v1591 = vadd.f32 %v1584, %v1589
    %s1592 = sld [smem:[#allocation3 + $0xd7]]
    %v1593 = vstv %s1592
    %v1594 = vmul.f32 %v1593, %v755
    %v1596 = vrot.slane %v1594, 4
    %v1598 = vadd.f32 %v1591, %v1596
    %s1599 = sld [smem:[#allocation3 + $0xdf]]
    %v1600 = vstv %s1599
    %v1601 = vmul.f32 %v1600, %v755
    %v1603 = vrot.slane %v1601, 5
    %v1605 = vadd.f32 %v1598, %v1603
    %s1606 = sld [smem:[#allocation3 + $0xe7]]
    %v1607 = vstv %s1606
    %v1608 = vmul.f32 %v1607, %v755
    %v1610 = vrot.slane %v1608, 6
    %v1612 = vadd.f32 %v1605, %v1610
    %s1613 = sld [smem:[#allocation3 + $0xef]]
    %v1614 = vstv %s1613
    %v1615 = vmul.f32 %v1614, %v755
    %v1617 = vrot.slane %v1615, 7
    %v1619 = vadd.f32 %v1612, %v1617
    %v1621 = vrot.slane %v971, 7
    %v1624 = vrot.slane %v1079, 6
    %v1627 = vrot.slane %v1187, 5
    %v1630 = vrot.slane %v1295, 4
    %v1633 = vrot.slane %v1403, 3
    %v1636 = vrot.slane %v1511, 2
    %v1639 = vrot.slane %v1619, 1
    %v1641 = vsel %vm80, %v863, %v1621
    %v1642 = vsel %vm145, %v1641, %v1624
    %v1643 = vsel %vm147, %v1642, %v1627
    %v1644 = vsel %vm390, %v1643, %v1630
    %v1645 = vsel %vm392, %v1644, %v1633
    %v1646 = vsel %vm394, %v1645, %v1636
    %v1647 = vsel %vm396, %v1646, %v1639
    %v1648 = vtanh.pop %v1647
    %s1649 = sld [smem:[#allocation3 + $0x118]]
    %v1650 = vstv %s1649
    %s1651 = sld [smem:[#allocation3 + $0xf8]]
    %v1652 = vstv %s1651
    %v1653 = vmul.f32 %v1652, %v1648
    %v1654 = vadd.f32 %v1650, %v1653
    %s1655 = sld [smem:[#allocation3 + $0xfc]]
    %v1656 = vstv %s1655
    %v1657 = vmul.f32 %v1656, %v1648
    %v1659 = vrot.slane %v1657, 1
    %v1661 = vadd.f32 %v1654, %v1659
    %s1662 = sld [smem:[#allocation3 + $0x100]]
    %v1663 = vstv %s1662
    %v1664 = vmul.f32 %v1663, %v1648
    %v1666 = vrot.slane %v1664, 2
    %v1668 = vadd.f32 %v1661, %v1666
    %s1669 = sld [smem:[#allocation3 + $0x104]]
    %v1670 = vstv %s1669
    %v1671 = vmul.f32 %v1670, %v1648
    %v1673 = vrot.slane %v1671, 3
    %v1675 = vadd.f32 %v1668, %v1673
    %s1676 = sld [smem:[#allocation3 + $0x108]]
    %v1677 = vstv %s1676
    %v1678 = vmul.f32 %v1677, %v1648
    %v1680 = vrot.slane %v1678, 4
    %v1682 = vadd.f32 %v1675, %v1680
    %s1683 = sld [smem:[#allocation3 + $0x10c]]
    %v1684 = vstv %s1683
    %v1685 = vmul.f32 %v1684, %v1648
    %v1687 = vrot.slane %v1685, 5
    %v1689 = vadd.f32 %v1682, %v1687
    %s1690 = sld [smem:[#allocation3 + $0x110]]
    %v1691 = vstv %s1690
    %v1692 = vmul.f32 %v1691, %v1648
    %v1694 = vrot.slane %v1692, 6
    %v1696 = vadd.f32 %v1689, %v1694
    %s1697 = sld [smem:[#allocation3 + $0x114]]
    %v1698 = vstv %s1697
    %v1699 = vmul.f32 %v1698, %v1648
    %v1701 = vrot.slane %v1699, 7
    %v1703 = vadd.f32 %v1696, %v1701
    %s1704 = sld [smem:[#allocation3 + $0x119]]
    %v1705 = vstv %s1704
    %s1706 = sld [smem:[#allocation3 + $0xf9]]
    %v1707 = vstv %s1706
    %v1708 = vmul.f32 %v1707, %v1648
    %v1709 = vadd.f32 %v1705, %v1708
    %s1710 = sld [smem:[#allocation3 + $0xfd]]
    %v1711 = vstv %s1710
    %v1712 = vmul.f32 %v1711, %v1648
    %v1714 = vrot.slane %v1712, 1
    %v1716 = vadd.f32 %v1709, %v1714
    %s1717 = sld [smem:[#allocation3 + $0x101]]
    %v1718 = vstv %s1717
    %v1719 = vmul.f32 %v1718, %v1648
    %v1721 = vrot.slane %v1719, 2
    %v1723 = vadd.f32 %v1716, %v1721
    %s1724 = sld [smem:[#allocation3 + $0x105]]
    %v1725 = vstv %s1724
    %v1726 = vmul.f32 %v1725, %v1648
    %v1728 = vrot.slane %v1726, 3
    %v1730 = vadd.f32 %v1723, %v1728
    %s1731 = sld [smem:[#allocation3 + $0x109]]
    %v1732 = vstv %s1731
    %v1733 = vmul.f32 %v1732, %v1648
    %v1735 = vrot.slane %v1733, 4
    %v1737 = vadd.f32 %v1730, %v1735
    %s1738 = sld [smem:[#allocation3 + $0x10d]]
    %v1739 = vstv %s1738
    %v1740 = vmul.f32 %v1739, %v1648
    %v1742 = vrot.slane %v1740, 5
    %v1744 = vadd.f32 %v1737, %v1742
    %s1745 = sld [smem:[#allocation3 + $0x111]]
    %v1746 = vstv %s1745
    %v1747 = vmul.f32 %v1746, %v1648
    %v1749 = vrot.slane %v1747, 6
    %v1751 = vadd.f32 %v1744, %v1749
    %s1752 = sld [smem:[#allocation3 + $0x115]]
    %v1753 = vstv %s1752
    %v1754 = vmul.f32 %v1753, %v1648
    %v1756 = vrot.slane %v1754, 7
    %v1758 = vadd.f32 %v1751, %v1756
    %s1759 = sld [smem:[#allocation3 + $0x11a]]
    %v1760 = vstv %s1759
    %s1761 = sld [smem:[#allocation3 + $0xfa]]
    %v1762 = vstv %s1761
    %v1763 = vmul.f32 %v1762, %v1648
    %v1764 = vadd.f32 %v1760, %v1763
    %s1765 = sld [smem:[#allocation3 + $0xfe]]
    %v1766 = vstv %s1765
    %v1767 = vmul.f32 %v1766, %v1648
    %v1769 = vrot.slane %v1767, 1
    %v1771 = vadd.f32 %v1764, %v1769
    %s1772 = sld [smem:[#allocation3 + $0x102]]
    %v1773 = vstv %s1772
    %v1774 = vmul.f32 %v1773, %v1648
    %v1776 = vrot.slane %v1774, 2
    %v1778 = vadd.f32 %v1771, %v1776
    %s1779 = sld [smem:[#allocation3 + $0x106]]
    %v1780 = vstv %s1779
    %v1781 = vmul.f32 %v1780, %v1648
    %v1783 = vrot.slane %v1781, 3
    %v1785 = vadd.f32 %v1778, %v1783
    %s1786 = sld [smem:[#allocation3 + $0x10a]]
    %v1787 = vstv %s1786
    %v1788 = vmul.f32 %v1787, %v1648
    %v1790 = vrot.slane %v1788, 4
    %v1792 = vadd.f32 %v1785, %v1790
    %s1793 = sld [smem:[#allocation3 + $0x10e]]
    %v1794 = vstv %s1793
    %v1795 = vmul.f32 %v1794, %v1648
    %v1797 = vrot.slane %v1795, 5
    %v1799 = vadd.f32 %v1792, %v1797
    %s1800 = sld [smem:[#allocation3 + $0x112]]
    %v1801 = vstv %s1800
    %v1802 = vmul.f32 %v1801, %v1648
    %v1804 = vrot.slane %v1802, 6
    %v1806 = vadd.f32 %v1799, %v1804
    %s1807 = sld [smem:[#allocation3 + $0x116]]
    %v1808 = vstv %s1807
    %v1809 = vmul.f32 %v1808, %v1648
    %v1811 = vrot.slane %v1809, 7
    %v1813 = vadd.f32 %v1806, %v1811
    %s1814 = sld [smem:[#allocation3 + $0x11b]]
    %v1815 = vstv %s1814
    %s1816 = sld [smem:[#allocation3 + $0xfb]]
    %v1817 = vstv %s1816
    %v1818 = vmul.f32 %v1817, %v1648
    %v1819 = vadd.f32 %v1815, %v1818
    %s1820 = sld [smem:[#allocation3 + $0xff]]
    %v1821 = vstv %s1820
    %v1822 = vmul.f32 %v1821, %v1648
    %v1824 = vrot.slane %v1822, 1
    %v1826 = vadd.f32 %v1819, %v1824
    %s1827 = sld [smem:[#allocation3 + $0x103]]
    %v1828 = vstv %s1827
    %v1829 = vmul.f32 %v1828, %v1648
    %v1831 = vrot.slane %v1829, 2
    %v1833 = vadd.f32 %v1826, %v1831
    %s1834 = sld [smem:[#allocation3 + $0x107]]
    %v1835 = vstv %s1834
    %v1836 = vmul.f32 %v1835, %v1648
    %v1838 = vrot.slane %v1836, 3
    %v1840 = vadd.f32 %v1833, %v1838
    %s1841 = sld [smem:[#allocation3 + $0x10b]]
    %v1842 = vstv %s1841
    %v1843 = vmul.f32 %v1842, %v1648
    %v1845 = vrot.slane %v1843, 4
    %v1847 = vadd.f32 %v1840, %v1845
    %s1848 = sld [smem:[#allocation3 + $0x10f]]
    %v1849 = vstv %s1848
    %v1850 = vmul.f32 %v1849, %v1648
    %v1852 = vrot.slane %v1850, 5
    %v1854 = vadd.f32 %v1847, %v1852
    %s1855 = sld [smem:[#allocation3 + $0x113]]
    %v1856 = vstv %s1855
    %v1857 = vmul.f32 %v1856, %v1648
    %v1859 = vrot.slane %v1857, 6
    %v1861 = vadd.f32 %v1854, %v1859
    %s1862 = sld [smem:[#allocation3 + $0x117]]
    %v1863 = vstv %s1862
    %v1864 = vmul.f32 %v1863, %v1648
    %v1866 = vrot.slane %v1864, 7
    %v1868 = vadd.f32 %v1861, %v1866
    %v1870 = vrot.slane %v1758, 7
    %v1873 = vrot.slane %v1813, 6
    %v1876 = vrot.slane %v1868, 5
    %v1878 = vsel %vm80, %v1703, %v1870
    %v1879 = vsel %vm145, %v1878, %v1873
    %v1880 = vsel %vm147, %v1879, %v1876
    %v1881 = vtanh.pop %v1880
    %s1882 = sld [smem:[#allocation3 + $0x124]]
    %v1883 = vstv %s1882
    %s1884 = sld [smem:[#allocation3 + $0x11c]]
    %v1885 = vstv %s1884
    %v1886 = vmul.f32 %v1885, %v1881
    %v1887 = vadd.f32 %v1883, %v1886
    %s1888 = sld [smem:[#allocation3 + $0x11e]]
    %v1889 = vstv %s1888
    %v1890 = vmul.f32 %v1889, %v1881
    %v1892 = vrot.slane %v1890, 1
    %v1894 = vadd.f32 %v1887, %v1892
    %s1895 = sld [smem:[#allocation3 + $0x120]]
    %v1896 = vstv %s1895
    %v1897 = vmul.f32 %v1896, %v1881
    %v1899 = vrot.slane %v1897, 2
    %v1901 = vadd.f32 %v1894, %v1899
    %s1902 = sld [smem:[#allocation3 + $0x122]]
    %v1903 = vstv %s1902
    %v1904 = vmul.f32 %v1903, %v1881
    %v1906 = vrot.slane %v1904, 3
    %v1908 = vadd.f32 %v1901, %v1906
    %s1909 = sld [smem:[#allocation3 + $0x125]]
    %v1910 = vstv %s1909
    %s1911 = sld [smem:[#allocation3 + $0x11d]]
    %v1912 = vstv %s1911
    %v1913 = vmul.f32 %v1912, %v1881
    %v1914 = vadd.f32 %v1910, %v1913
    %s1915 = sld [smem:[#allocation3 + $0x11f]]
    %v1916 = vstv %s1915
    %v1917 = vmul.f32 %v1916, %v1881
    %v1919 = vrot.slane %v1917, 1
    %v1921 = vadd.f32 %v1914, %v1919
    %s1922 = sld [smem:[#allocation3 + $0x121]]
    %v1923 = vstv %s1922
    %v1924 = vmul.f32 %v1923, %v1881
    %v1926 = vrot.slane %v1924, 2
    %v1928 = vadd.f32 %v1921, %v1926
    %s1929 = sld [smem:[#allocation3 + $0x123]]
    %v1930 = vstv %s1929
    %v1931 = vmul.f32 %v1930, %v1881
    %v1933 = vrot.slane %v1931, 3
    %v1935 = vadd.f32 %v1928, %v1933
    %v1937 = vrot.slane %v1935, 7
    %v1939 = vsel %vm80, %v1908, %v1937
    %v1940 = vtanh.pop %v1939
    %s1941 = sld [smem:[#allocation3 + $0x128]]
    %v1942 = vstv %s1941
    %s1943 = sld [smem:[#allocation3 + $0x126]]
    %v1944 = vstv %s1943
    %v1945 = vmul.f32 %v1944, %v1940
    %v1946 = vadd.f32 %v1942, %v1945
    %s1947 = sld [smem:[#allocation3 + $0x127]]
    %v1948 = vstv %s1947
    %v1949 = vmul.f32 %v1948, %v1940
    %v1951 = vrot.slane %v1949, 1
    %v1953 = vadd.f32 %v1946, %v1951
    %v1954 = vtanh.pop %v1953
    %s1955 = sld [smem:[#allocation3 + $0x12a]]
    %v1956 = vstv %s1955
    %s1957 = sld [smem:[#allocation3 + $0x129]]
    %v1958 = vstv %s1957
    %v1959 = vmul.f32 %v1958, %v1954
    %v1960 = vadd.f32 %v1956, %v1959
    %1962 = vrot.lane.b32.xlu0 %v1960, 126
    %v1963 = vpop.permute.xlu0 %1962
    %v1965 = vadd.f32 %v1960, %v1963
    %1966 = vrot.lane.b32.xlu0 %v1960, 124
    %v1967 = vpop.permute.xlu0 %1966
    %v1969 = vadd.f32 %v1965, %v1967
    %1970 = vrot.lane.b32.xlu0 %v1960, 122
    %v1971 = vpop.permute.xlu0 %1970
    %v1973 = vadd.f32 %v1969, %v1971
    %1974 = vrot.lane.b32.xlu0 %v1960, 120
    %v1975 = vpop.permute.xlu0 %1974
    %v1977 = vadd.f32 %v1973, %v1975
    %1978 = vrot.lane.b32.xlu0 %v1960, 118
    %v1979 = vpop.permute.xlu0 %1978
    %v1981 = vadd.f32 %v1977, %v1979
    %1982 = vrot.lane.b32.xlu0 %v1960, 116
    %v1983 = vpop.permute.xlu0 %1982
    %v1985 = vadd.f32 %v1981, %v1983
    %1986 = vrot.lane.b32.xlu0 %v1960, 114
    %v1987 = vpop.permute.xlu0 %1986
    %v1989 = vadd.f32 %v1985, %v1987
    %vm1990 = vcmask 8192
    %1991 = vst.msk [vmem:[#allocation4] sm:$0x1] %vm1990, %v1989
    // Predicated region
    $region6: #{forward.1} parent=1 // pred_check
      _
    $region7: #{forward.1} parent=1 // pred_check_branch
      %1993 = sbr.rel (0) target = $region9
    $region8: #{forward.1} parent=1 // pred_region
      %1995 = vsyncadd [#allocation5], 0
      %s1997 = sshll.u32 [#allocation4], 4
      %s1998 = int_to_ptr.vmem [resolvable:$true] %s1997
      %s1999 = sshll.u32 %s2, 4
      %s2000 = int_to_ptr.hbm [resolvable:$true] %s1999
      %2002 = dma.vmem_to_hbm [thread:$0]  %s1998, 16, %s2000, [#allocation5]
    $region9: #{forward.1} parent=1 // pred_fallthru
      _
    // Predicated region
    $region10: #{forward.1} parent=1 // pred_check
      _
    $region11: #{forward.1} parent=1 // pred_check_branch
      %2004 = sbr.rel (0) target = $region13
    $region12: #{forward.1} parent=1 // pred_region
      %2006 = dma.done [#allocation5], 16
    $region13: #{forward.1} parent=1 // pred_fallthru
      _
    %2007 = vsyncpa [#allocation5], 1

</llo_original>
